<compile_context>
chip_gen: v6e
topology: v6e:2x2x1
jax: 0.10.0
libtpu: 0.0.40
codegen_flags: <defaults>
</compile_context>

<pallas_src>
import functools

import jax
import jax.numpy as jnp
from jax.experimental import pallas as pl
from jax.experimental.pallas import tpu as pltpu


# ---------------------------------------------------------------------------
# DWT / IWT (pure data movement + elementwise; XLA glue fused around the kernel)
# ---------------------------------------------------------------------------
def dwt_init(x):
    # Reference NCHW Haar DWT: (N,C,H,W) -> (4N,C,H/2,W/2)
    x01 = x[:, :, 0::2, :] / 2
    x02 = x[:, :, 1::2, :] / 2
    x1 = x01[:, :, :, 0::2]
    x2 = x02[:, :, :, 0::2]
    x3 = x01[:, :, :, 1::2]
    x4 = x02[:, :, :, 1::2]
    x_ll = x1 + x2 + x3 + x4
    x_hl = -x1 - x2 + x3 + x4
    x_lh = -x1 + x2 - x3 + x4
    x_hh = x1 - x2 - x3 + x4
    return jnp.concatenate((x_ll, x_hl, x_lh, x_hh), axis=0)


def iwt_init(x):
    # Reference NCHW inverse Haar: (4N,C,h,w) -> (N,C,2h,2w)
    in_batch, in_channel, in_h, in_w = x.shape
    out_batch = in_batch // 4
    x1 = x[0:out_batch] / 2
    x2 = x[out_batch:2 * out_batch] / 2
    x3 = x[2 * out_batch:3 * out_batch] / 2
    x4 = x[3 * out_batch:4 * out_batch] / 2
    h = jnp.zeros((out_batch, in_channel, 2 * in_h, 2 * in_w), x.dtype)
    h = h.at[:, :, 0::2, 0::2].set(x1 - x2 - x3 + x4)
    h = h.at[:, :, 1::2, 0::2].set(x1 - x2 + x3 - x4)
    h = h.at[:, :, 0::2, 1::2].set(x1 + x2 - x3 - x4)
    h = h.at[:, :, 1::2, 1::2].set(x1 + x2 + x3 + x4)
    return h


def dwt_nhwc_bf16(x_nchw):
    """Haar DWT producing NHWC bf16 directly: (N,C,H,W) -> (4N, H/2, W/2, C)."""
    x = x_nchw
    x01 = x[:, :, 0::2, :] / 2
    x02 = x[:, :, 1::2, :] / 2
    x1 = x01[:, :, :, 0::2]
    x2 = x02[:, :, :, 0::2]
    x3 = x01[:, :, :, 1::2]
    x4 = x02[:, :, :, 1::2]
    ll = x1 + x2 + x3 + x4
    hl = -x1 - x2 + x3 + x4
    lh = -x1 + x2 - x3 + x4
    hh = x1 - x2 - x3 + x4
    out = jnp.concatenate((ll, hl, lh, hh), axis=0)      # (4N, C, h, w)
    out = jnp.transpose(out, (0, 2, 3, 1))               # (4N, h, w, C)
    return out.astype(jnp.bfloat16)                      # cast fuses into DWT


def iwt_nchw_from_nhwc(x):
    """Inverse Haar consuming NHWC: (4N, h, w, C) -> (N, C, 2h, 2w) NCHW."""
    b4, h, w, c = x.shape
    n = b4 // 4
    x1 = x[0:n] / 2
    x2 = x[n:2 * n] / 2
    x3 = x[2 * n:3 * n] / 2
    x4 = x[3 * n:4 * n] / 2
    ee = x1 - x2 - x3 + x4   # (even row, even col)
    oe = x1 - x2 + x3 - x4   # (odd  row, even col)
    eo = x1 + x2 - x3 - x4   # (even row, odd  col)
    oo = x1 + x2 + x3 + x4   # (odd  row, odd  col)
    row_e = jnp.stack((ee, eo), axis=3).reshape(n, h, 2 * w, c)
    row_o = jnp.stack((oe, oo), axis=3).reshape(n, h, 2 * w, c)
    out = jnp.stack((row_e, row_o), axis=2).reshape(n, 2 * h, 2 * w, c)
    return jnp.transpose(out, (0, 3, 1, 2))


# ---------------------------------------------------------------------------
# Host-side weight folding: fused (kh-major) block-Toeplitz with the horizontal
# "same" padding folded in (edge taps clipped to zero weight rows).
# ---------------------------------------------------------------------------
def _toeplitz_weight_fused(w_hwio, w_out):
    """(KH, KW, Cin, Cout) -> (KH*W*Cin, W*Cout) bf16.

    T[kh*W*Cin + xin*Cin + ci, x*Cout + co] = w[kh, kw, ci, co] for
    xin = x + kw - (KW-1)//2 clipped to [0, W).  One MXU matmul per conv stage:
    out_rows = im2col_rows @ T, with contraction depth K = KH*W*Cin.
    """
    kh_, kw_, cin, cout = w_hwio.shape
    pw = (kw_ - 1) // 2
    w32 = w_hwio.astype(jnp.float32)                       # (KH, KW, Cin, Cout)
    t = jnp.zeros((kh_, w_out * cin, w_out * cout), jnp.float32)
    for x in range(w_out):
        for kw in range(kw_):
            xin = x + kw - pw
            if 0 <= xin < w_out:
                t = t.at[:, xin * cin:(xin + 1) * cin,
                         x * cout:(x + 1) * cout].set(w32[:, kw])
    return t.reshape(kh_ * w_out * cin, w_out * cout).astype(jnp.bfloat16)


def _tile_bias(b, w_out):
    return jnp.tile(b.astype(jnp.float32), w_out)[None, :]   # (1, W*Cout) f32


def _pick_batch_tile(n4, h):
    """Largest divisor of n4 with M = bt*h <= 256, keeping >= 2 grid steps when
    possible so v7x's two TensorCores both get work."""
    cands = [d for d in range(1, n4 + 1) if n4 % d == 0 and d * h <= 256]
    if not cands:
        return 1
    multi = [d for d in cands if n4 // d >= 2]
    return max(multi) if multi else max(cands)


# ---------------------------------------------------------------------------
# Fused Pallas kernel: conv9x9+ReLU -> conv5x5+ReLU -> conv5x5
# ---------------------------------------------------------------------------
def _srcnn_fused_kernel(x_ref, w1_ref, b1_ref, w2_ref, b2_ref, w3_ref, b3_ref,
                        o_ref, a1p, l1, a2p, l2, a3p, l3,
                        *, B, H, W, C_in, C1, C2, C_out):
    # x_ref : (B*H, W*C_in)      bf16  (B sub-band images, rows stacked)
    # wK_ref: (KH*W*Cin, W*Cout) bf16  fused block-Toeplitz weights
    # bK_ref: (1, W*Cout)        f32   tiled bias
    # o_ref : (B*H, W*C_out)     f32
    # aKp   : (B*H + KH-1, W*C)  bf16  vertically padded activation stack
    # lK    : (B*H, KH*W*C)      bf16  im2col LHS (fused-K matmul operand)
    M = B * H

    def conv_stage(src, act_ref, l_ref, w_ref, b_ref, KH, relu):
        WC = act_ref.shape[-1]
        P = KH // 2
        zrow = jnp.zeros((P, WC), act_ref.dtype)
        # Zero only the vertical pad borders (re-done every step: cheap, and
        # megacore-safe — the interior is fully overwritten below).
        act_ref[0:P, :] = zrow
        act_ref[M + P:M + 2 * P, :] = zrow
        act_ref[P:P + M, :] = src                      # (M, WC) interior

        # im2col with fused K: band kh of the LHS = rows [kh, kh+M) of the
        # padded stack.  One bulk copy per tap (lane offsets are multiples of
        # WC; 128-aligned for conv2/conv3).
        for kh in range(KH):
            l_ref[:, kh * WC:(kh + 1) * WC] = act_ref[kh:kh + M, :]

        # The bulk band copy lets rows near image boundaries read the adjacent
        # image in the stack; zero those small contaminated strips.
        for kh in range(KH):
            d = kh - P
            if d < 0:
                zfix = jnp.zeros((-d, WC), l_ref.dtype)
                for b in range(1, B):
                    l_ref[b * H:b * H - d, kh * WC:(kh + 1) * WC] = zfix
            elif d > 0:
                zfix = jnp.zeros((d, WC), l_ref.dtype)
                for b in range(B - 1):
                    l_ref[(b + 1) * H - d:(b + 1) * H,
                          kh * WC:(kh + 1) * WC] = zfix

        # One deep bf16 MXU matmul per stage, f32 accumulation + epilogue.
        acc = jnp.dot(l_ref[...], w_ref[...],
                      preferred_element_type=jnp.float32)   # (M, W*cout)
        acc = acc + b_ref[...]
        return jnp.maximum(acc, 0.0) if relu else acc

    # conv1: 9x9 pad 4, ReLU
    a1 = conv_stage(x_ref[...], a1p, l1, w1_ref, b1_ref, 9, True)   # (M, W*C1)
    # conv2: 5x5 pad 2, ReLU  (intermediate stays in VMEM, bf16 MXU input)
    a2 = conv_stage(a1.astype(jnp.bfloat16), a2p, l2, w2_ref, b2_ref, 5, True)
    # conv3: 5x5 pad 2, no ReLU
    a3 = conv_stage(a2.astype(jnp.bfloat16), a3p, l3, w3_ref, b3_ref, 5, False)

    o_ref[...] = a3                                   # direct store, no relayout


def srcnn_convs_pallas(x_nhwc_bf16, params):
    """Fused conv chain on NHWC bf16 input: (4N, H, W, Cin) -> (4N, H, W, Cout)."""
    N4, H, W, Cin = x_nhwc_bf16.shape
    C1 = params["w1"].shape[-1]
    C2 = params["w2"].shape[-1]
    Cout = params["w3"].shape[-1]

    B = _pick_batch_tile(N4, H)                  # images per grid step
    assert N4 % B == 0

    # Fused block-Toeplitz weights (horizontal pad folded in) + tiled biases.
    w1t = _toeplitz_weight_fused(params["w1"], W)     # (9*W*Cin, W*C1)
    w2t = _toeplitz_weight_fused(params["w2"], W)     # (5*W*C1,  W*C2)
    w3t = _toeplitz_weight_fused(params["w3"], W)     # (5*W*C2,  W*Cout)
    b1t = _tile_bias(params["b1"], W)
    b2t = _tile_bias(params["b2"], W)
    b3t = _tile_bias(params["b3"], W)

    # 2-D activation slab (free reshape of contiguous NHWC bf16).
    x_flat = x_nhwc_bf16.reshape(N4 * H, W * Cin)

    kernel = functools.partial(_srcnn_fused_kernel, B=B, H=H, W=W,
                               C_in=Cin, C1=C1, C2=C2, C_out=Cout)
    M = B * H

    out = pl.pallas_call(
        kernel,
        out_shape=jax.ShapeDtypeStruct((N4 * H, W * Cout), jnp.float32),
        grid_spec=pltpu.PrefetchScalarGridSpec(
            num_scalar_prefetch=0,
            grid=(N4 // B,),
            in_specs=[
                pl.BlockSpec((M, W * Cin), lambda n: (n, 0)),
                pl.BlockSpec(w1t.shape, lambda n: (0, 0)),
                pl.BlockSpec(b1t.shape, lambda n: (0, 0)),
                pl.BlockSpec(w2t.shape, lambda n: (0, 0)),
                pl.BlockSpec(b2t.shape, lambda n: (0, 0)),
                pl.BlockSpec(w3t.shape, lambda n: (0, 0)),
                pl.BlockSpec(b3t.shape, lambda n: (0, 0)),
            ],
            out_specs=pl.BlockSpec((M, W * Cout), lambda n: (n, 0)),
            scratch_shapes=[
                pltpu.VMEM((M + 8, W * Cin), jnp.bfloat16),    # conv1 pad stack
                pltpu.VMEM((M, 9 * W * Cin), jnp.bfloat16),    # conv1 im2col LHS
                pltpu.VMEM((M + 4, W * C1), jnp.bfloat16),     # conv2 pad stack
                pltpu.VMEM((M, 5 * W * C1), jnp.bfloat16),     # conv2 im2col LHS
                pltpu.VMEM((M + 4, W * C2), jnp.bfloat16),     # conv3 pad stack
                pltpu.VMEM((M, 5 * W * C2), jnp.bfloat16),     # conv3 im2col LHS
            ],
        ),
        compiler_params=pltpu.CompilerParams(
            dimension_semantics=("parallel",),
            vmem_limit_bytes=32 * 1024 * 1024),
    )(x_flat, w1t, b1t, w2t, b2t, w3t, b3t)

    return out.reshape(N4, H, W, Cout)


# ---------------------------------------------------------------------------
# SRCNN forward
# ---------------------------------------------------------------------------
def srcnn_forward(x_nchw, params):
    x = dwt_nhwc_bf16(x_nchw)             # (4N, h, w, C)   NHWC, bf16
    y = srcnn_convs_pallas(x, params)     # (4N, h, w, Co)  NHWC, f32
    return iwt_nchw_from_nhwc(y)          # (N, Co, 2h, 2w) NCHW


def init_params(key, num_channels, out_channels):
    ks = jax.random.split(key, 6)
    scale = 0.05

    def w(k, kh, kw, cin, cout):  # HWIO
        return scale * jax.random.normal(k, (kh, kw, cin, cout), jnp.float32)

    return {
        "w1": w(ks[0], 9, 9, num_channels, 64),
        "b1": scale * jax.random.normal(ks[1], (64,), jnp.float32),
        "w2": w(ks[2], 5, 5, 64, 32),
        "b2": scale * jax.random.normal(ks[3], (32,), jnp.float32),
        "w3": w(ks[4], 5, 5, 32, out_channels),
        "b3": scale * jax.random.normal(ks[5], (out_channels,), jnp.float32),
    }


# ---------------------------------------------------------------------------
# Reference (lax.conv, same bf16-input / f32-accumulate quantization)
# ---------------------------------------------------------------------------
def _conv_ref(x_nhwc, w_hwio, b, pad, apply_relu):
    out = jax.lax.conv_general_dilated(
        x_nhwc.astype(jnp.bfloat16), w_hwio.astype(jnp.bfloat16),
        window_strides=(1, 1), padding=((pad, pad), (pad, pad)),
        dimension_numbers=("NHWC", "HWIO", "NHWC"),
        preferred_element_type=jnp.float32)
    out = out + b.reshape(1, 1, 1, -1).astype(jnp.float32)
    return jnp.maximum(out, 0.0) if apply_relu else out


def srcnn_forward_ref(x_nchw, params):
    x = dwt_init(x_nchw)
    x = jnp.transpose(x, (0, 2, 3, 1))
    x = _conv_ref(x, params["w1"], params["b1"], 4, True)
    x = _conv_ref(x, params["w2"], params["b2"], 2, True)
    x = _conv_ref(x, params["w3"], params["b3"], 2, False)
    x = jnp.transpose(x, (0, 3, 1, 2))
    return iwt_init(x)


if __name__ == "__main__":
    key = jax.random.PRNGKey(0)
    k_x, k_p = jax.random.split(key)

    num_channels, out_channels = 4, 4
    x = jax.random.normal(k_x, (2, num_channels, 16, 16), jnp.float32)  # NCHW
    params = init_params(k_p, num_channels, out_channels)

    out = jax.block_until_ready(jax.jit(srcnn_forward)(x, params))
    assert out.shape == (2, out_channels, 16, 16), out.shape

    ref = jax.block_until_ready(jax.jit(srcnn_forward_ref)(x, params))
    max_err = float(jnp.max(jnp.abs(out - ref)))
    assert jnp.allclose(out, ref, rtol=1e-2, atol=1e-2), max_err

    print("KERNEL_OK")
</pallas_src>

<mosaic_0001>
module attributes {stable_mosaic.version = 11 : i64} {
  func.func @_srcnn_fused_kernel(%arg0: i32, %arg1: memref<32x32xbf16, #tpu.memory_space<vmem>>, %arg2: memref<288x512xbf16, #tpu.memory_space<vmem>>, %arg3: memref<1x512xf32, #tpu.memory_space<vmem>>, %arg4: memref<2560x256xbf16, #tpu.memory_space<vmem>>, %arg5: memref<1x256xf32, #tpu.memory_space<vmem>>, %arg6: memref<1280x32xbf16, #tpu.memory_space<vmem>>, %arg7: memref<1x32xf32, #tpu.memory_space<vmem>>, %arg8: memref<32x32xf32, #tpu.memory_space<vmem>>, %arg9: memref<40x32xbf16, #tpu.memory_space<vmem>>, %arg10: memref<32x288xbf16, #tpu.memory_space<vmem>>, %arg11: memref<36x512xbf16, #tpu.memory_space<vmem>>, %arg12: memref<32x2560xbf16, #tpu.memory_space<vmem>>, %arg13: memref<36x256xbf16, #tpu.memory_space<vmem>>, %arg14: memref<32x1280xbf16, #tpu.memory_space<vmem>>) attributes {dimension_semantics = [#tpu.dimension_semantics<parallel>], iteration_bounds = array<i64: 2>, scalar_prefetch = 0 : i64, scratch_operands = 6 : i64, tpu.core_type = #tpu.core_type<tc>, window_params = [{transform_indices = @transform_0, window_bounds = array<i64: 32, 32>}, {pipeline_mode = #tpu.pipeline_mode<synchronous>, transform_indices = @transform_1, window_bounds = array<i64: 288, 512>}, {pipeline_mode = #tpu.pipeline_mode<synchronous>, transform_indices = @transform_2, window_bounds = array<i64: 1, 512>}, {pipeline_mode = #tpu.pipeline_mode<synchronous>, transform_indices = @transform_3, window_bounds = array<i64: 2560, 256>}, {pipeline_mode = #tpu.pipeline_mode<synchronous>, transform_indices = @transform_4, window_bounds = array<i64: 1, 256>}, {pipeline_mode = #tpu.pipeline_mode<synchronous>, transform_indices = @transform_5, window_bounds = array<i64: 1280, 32>}, {pipeline_mode = #tpu.pipeline_mode<synchronous>, transform_indices = @transform_6, window_bounds = array<i64: 1, 32>}, {transform_indices = @transform_7, window_bounds = array<i64: 32, 32>}]} {
    %c0 = arith.constant 0 : index
    %c0_0 = arith.constant 0 : index
    %0 = vector.load %arg1[%c0, %c0_0] : memref<32x32xbf16, #tpu.memory_space<vmem>>, vector<32x32xbf16>
    %cst = arith.constant 0.000000e+00 : bf16
    %1 = vector.broadcast %cst : bf16 to vector<4x32xbf16>
    %c0_1 = arith.constant 0 : index
    %c0_2 = arith.constant 0 : index
    %2 = vector.load %arg9[%c0_1, %c0_2] : memref<40x32xbf16, #tpu.memory_space<vmem>>, vector<4x32xbf16>
    tpu.vector_store %arg9[%c0_1, %c0_2], %1 {strides = array<i32>} : memref<40x32xbf16, #tpu.memory_space<vmem>>, vector<4x32xbf16>,
    %c36 = arith.constant 36 : index
    %c0_3 = arith.constant 0 : index
    %3 = vector.load %arg9[%c36, %c0_3] : memref<40x32xbf16, #tpu.memory_space<vmem>>, vector<4x32xbf16>
    tpu.vector_store %arg9[%c36, %c0_3], %1 {strides = array<i32>} : memref<40x32xbf16, #tpu.memory_space<vmem>>, vector<4x32xbf16>,
    %c4 = arith.constant 4 : index
    %c0_4 = arith.constant 0 : index
    %4 = vector.load %arg9[%c4, %c0_4] : memref<40x32xbf16, #tpu.memory_space<vmem>>, vector<32x32xbf16>
    tpu.vector_store %arg9[%c4, %c0_4], %0 {strides = array<i32>} : memref<40x32xbf16, #tpu.memory_space<vmem>>, vector<32x32xbf16>,
    %c0_5 = arith.constant 0 : index
    %c0_6 = arith.constant 0 : index
    %5 = vector.load %arg9[%c0_5, %c0_6] : memref<40x32xbf16, #tpu.memory_space<vmem>>, vector<32x32xbf16>
    %c0_7 = arith.constant 0 : index
    %c0_8 = arith.constant 0 : index
    %6 = vector.load %arg10[%c0_7, %c0_8] : memref<32x288xbf16, #tpu.memory_space<vmem>>, vector<32x32xbf16>
    tpu.vector_store %arg10[%c0_7, %c0_8], %5 {strides = array<i32>} : memref<32x288xbf16, #tpu.memory_space<vmem>>, vector<32x32xbf16>,
    %c1 = arith.constant 1 : index
    %c0_9 = arith.constant 0 : index
    %7 = vector.load %arg9[%c1, %c0_9] : memref<40x32xbf16, #tpu.memory_space<vmem>>, vector<32x32xbf16>
    %c0_10 = arith.constant 0 : index
    %c32 = arith.constant 32 : index
    %8 = vector.load %arg10[%c0_10, %c32] : memref<32x288xbf16, #tpu.memory_space<vmem>>, vector<32x32xbf16>
    tpu.vector_store %arg10[%c0_10, %c32], %7 {strides = array<i32>} : memref<32x288xbf16, #tpu.memory_space<vmem>>, vector<32x32xbf16>,
    %c2 = arith.constant 2 : index
    %c0_11 = arith.constant 0 : index
    %9 = vector.load %arg9[%c2, %c0_11] : memref<40x32xbf16, #tpu.memory_space<vmem>>, vector<32x32xbf16>
    %c0_12 = arith.constant 0 : index
    %c64 = arith.constant 64 : index
    %10 = vector.load %arg10[%c0_12, %c64] : memref<32x288xbf16, #tpu.memory_space<vmem>>, vector<32x32xbf16>
    tpu.vector_store %arg10[%c0_12, %c64], %9 {strides = array<i32>} : memref<32x288xbf16, #tpu.memory_space<vmem>>, vector<32x32xbf16>,
    %c3 = arith.constant 3 : index
    %c0_13 = arith.constant 0 : index
    %11 = vector.load %arg9[%c3, %c0_13] : memref<40x32xbf16, #tpu.memory_space<vmem>>, vector<32x32xbf16>
    %c0_14 = arith.constant 0 : index
    %c96 = arith.constant 96 : index
    %12 = vector.load %arg10[%c0_14, %c96] : memref<32x288xbf16, #tpu.memory_space<vmem>>, vector<32x32xbf16>
    tpu.vector_store %arg10[%c0_14, %c96], %11 {strides = array<i32>} : memref<32x288xbf16, #tpu.memory_space<vmem>>, vector<32x32xbf16>,
    %c4_15 = arith.constant 4 : index
    %c0_16 = arith.constant 0 : index
    %13 = vector.load %arg9[%c4_15, %c0_16] : memref<40x32xbf16, #tpu.memory_space<vmem>>, vector<32x32xbf16>
    %c0_17 = arith.constant 0 : index
    %c128 = arith.constant 128 : index
    %14 = vector.load %arg10[%c0_17, %c128] : memref<32x288xbf16, #tpu.memory_space<vmem>>, vector<32x32xbf16>
    tpu.vector_store %arg10[%c0_17, %c128], %13 {strides = array<i32>} : memref<32x288xbf16, #tpu.memory_space<vmem>>, vector<32x32xbf16>,
    %c5 = arith.constant 5 : index
    %c0_18 = arith.constant 0 : index
    %15 = vector.load %arg9[%c5, %c0_18] : memref<40x32xbf16, #tpu.memory_space<vmem>>, vector<32x32xbf16>
    %c0_19 = arith.constant 0 : index
    %c160 = arith.constant 160 : index
    %16 = vector.load %arg10[%c0_19, %c160] : memref<32x288xbf16, #tpu.memory_space<vmem>>, vector<32x32xbf16>
    tpu.vector_store %arg10[%c0_19, %c160], %15 {strides = array<i32>} : memref<32x288xbf16, #tpu.memory_space<vmem>>, vector<32x32xbf16>,
    %c6 = arith.constant 6 : index
    %c0_20 = arith.constant 0 : index
    %17 = vector.load %arg9[%c6, %c0_20] : memref<40x32xbf16, #tpu.memory_space<vmem>>, vector<32x32xbf16>
    %c0_21 = arith.constant 0 : index
    %c192 = arith.constant 192 : index
    %18 = vector.load %arg10[%c0_21, %c192] : memref<32x288xbf16, #tpu.memory_space<vmem>>, vector<32x32xbf16>
    tpu.vector_store %arg10[%c0_21, %c192], %17 {strides = array<i32>} : memref<32x288xbf16, #tpu.memory_space<vmem>>, vector<32x32xbf16>,
    %c7 = arith.constant 7 : index
    %c0_22 = arith.constant 0 : index
    %19 = vector.load %arg9[%c7, %c0_22] : memref<40x32xbf16, #tpu.memory_space<vmem>>, vector<32x32xbf16>
    %c0_23 = arith.constant 0 : index
    %c224 = arith.constant 224 : index
    %20 = vector.load %arg10[%c0_23, %c224] : memref<32x288xbf16, #tpu.memory_space<vmem>>, vector<32x32xbf16>
    tpu.vector_store %arg10[%c0_23, %c224], %19 {strides = array<i32>} : memref<32x288xbf16, #tpu.memory_space<vmem>>, vector<32x32xbf16>,
    %c8 = arith.constant 8 : index
    %c0_24 = arith.constant 0 : index
    %21 = vector.load %arg9[%c8, %c0_24] : memref<40x32xbf16, #tpu.memory_space<vmem>>, vector<32x32xbf16>
    %c0_25 = arith.constant 0 : index
    %c256 = arith.constant 256 : index
    %22 = vector.load %arg10[%c0_25, %c256] : memref<32x288xbf16, #tpu.memory_space<vmem>>, vector<32x32xbf16>
    tpu.vector_store %arg10[%c0_25, %c256], %21 {strides = array<i32>} : memref<32x288xbf16, #tpu.memory_space<vmem>>, vector<32x32xbf16>,
    %cst_26 = arith.constant 0.000000e+00 : bf16
    %23 = vector.broadcast %cst_26 : bf16 to vector<4x32xbf16>
    %c8_27 = arith.constant 8 : index
    %c0_28 = arith.constant 0 : index
    %24 = vector.load %arg10[%c8_27, %c0_28] : memref<32x288xbf16, #tpu.memory_space<vmem>>, vector<4x32xbf16>
    tpu.vector_store %arg10[%c8_27, %c0_28], %23 {strides = array<i32>} : memref<32x288xbf16, #tpu.memory_space<vmem>>, vector<4x32xbf16>,
    %c16 = arith.constant 16 : index
    %c0_29 = arith.constant 0 : index
    %25 = vector.load %arg10[%c16, %c0_29] : memref<32x288xbf16, #tpu.memory_space<vmem>>, vector<4x32xbf16>
    tpu.vector_store %arg10[%c16, %c0_29], %23 {strides = array<i32>} : memref<32x288xbf16, #tpu.memory_space<vmem>>, vector<4x32xbf16>,
    %c24 = arith.constant 24 : index
    %c0_30 = arith.constant 0 : index
    %26 = vector.load %arg10[%c24, %c0_30] : memref<32x288xbf16, #tpu.memory_space<vmem>>, vector<4x32xbf16>
    tpu.vector_store %arg10[%c24, %c0_30], %23 {strides = array<i32>} : memref<32x288xbf16, #tpu.memory_space<vmem>>, vector<4x32xbf16>,
    %cst_31 = arith.constant 0.000000e+00 : bf16
    %27 = vector.broadcast %cst_31 : bf16 to vector<3x32xbf16>
    %c8_32 = arith.constant 8 : index
    %c32_33 = arith.constant 32 : index
    %28 = vector.load %arg10[%c8_32, %c32_33] : memref<32x288xbf16, #tpu.memory_space<vmem>>, vector<3x32xbf16>
    tpu.vector_store %arg10[%c8_32, %c32_33], %27 {strides = array<i32>} : memref<32x288xbf16, #tpu.memory_space<vmem>>, vector<3x32xbf16>,
    %c16_34 = arith.constant 16 : index
    %c32_35 = arith.constant 32 : index
    %29 = vector.load %arg10[%c16_34, %c32_35] : memref<32x288xbf16, #tpu.memory_space<vmem>>, vector<3x32xbf16>
    tpu.vector_store %arg10[%c16_34, %c32_35], %27 {strides = array<i32>} : memref<32x288xbf16, #tpu.memory_space<vmem>>, vector<3x32xbf16>,
    %c24_36 = arith.constant 24 : index
    %c32_37 = arith.constant 32 : index
    %30 = vector.load %arg10[%c24_36, %c32_37] : memref<32x288xbf16, #tpu.memory_space<vmem>>, vector<3x32xbf16>
    tpu.vector_store %arg10[%c24_36, %c32_37], %27 {strides = array<i32>} : memref<32x288xbf16, #tpu.memory_space<vmem>>, vector<3x32xbf16>,
    %cst_38 = arith.constant 0.000000e+00 : bf16
    %31 = vector.broadcast %cst_38 : bf16 to vector<2x32xbf16>
    %c8_39 = arith.constant 8 : index
    %c64_40 = arith.constant 64 : index
    %32 = vector.load %arg10[%c8_39, %c64_40] : memref<32x288xbf16, #tpu.memory_space<vmem>>, vector<2x32xbf16>
    tpu.vector_store %arg10[%c8_39, %c64_40], %31 {strides = array<i32>} : memref<32x288xbf16, #tpu.memory_space<vmem>>, vector<2x32xbf16>,
    %c16_41 = arith.constant 16 : index
    %c64_42 = arith.constant 64 : index
    %33 = vector.load %arg10[%c16_41, %c64_42] : memref<32x288xbf16, #tpu.memory_space<vmem>>, vector<2x32xbf16>
    tpu.vector_store %arg10[%c16_41, %c64_42], %31 {strides = array<i32>} : memref<32x288xbf16, #tpu.memory_space<vmem>>, vector<2x32xbf16>,
    %c24_43 = arith.constant 24 : index
    %c64_44 = arith.constant 64 : index
    %34 = vector.load %arg10[%c24_43, %c64_44] : memref<32x288xbf16, #tpu.memory_space<vmem>>, vector<2x32xbf16>
    tpu.vector_store %arg10[%c24_43, %c64_44], %31 {strides = array<i32>} : memref<32x288xbf16, #tpu.memory_space<vmem>>, vector<2x32xbf16>,
    %cst_45 = arith.constant 0.000000e+00 : bf16
    %35 = vector.broadcast %cst_45 : bf16 to vector<1x32xbf16>
    %c8_46 = arith.constant 8 : index
    %c96_47 = arith.constant 96 : index
    %36 = vector.load %arg10[%c8_46, %c96_47] : memref<32x288xbf16, #tpu.memory_space<vmem>>, vector<1x32xbf16>
    tpu.vector_store %arg10[%c8_46, %c96_47], %35 {strides = array<i32>} : memref<32x288xbf16, #tpu.memory_space<vmem>>, vector<1x32xbf16>,
    %c16_48 = arith.constant 16 : index
    %c96_49 = arith.constant 96 : index
    %37 = vector.load %arg10[%c16_48, %c96_49] : memref<32x288xbf16, #tpu.memory_space<vmem>>, vector<1x32xbf16>
    tpu.vector_store %arg10[%c16_48, %c96_49], %35 {strides = array<i32>} : memref<32x288xbf16, #tpu.memory_space<vmem>>, vector<1x32xbf16>,
    %c24_50 = arith.constant 24 : index
    %c96_51 = arith.constant 96 : index
    %38 = vector.load %arg10[%c24_50, %c96_51] : memref<32x288xbf16, #tpu.memory_space<vmem>>, vector<1x32xbf16>
    tpu.vector_store %arg10[%c24_50, %c96_51], %35 {strides = array<i32>} : memref<32x288xbf16, #tpu.memory_space<vmem>>, vector<1x32xbf16>,
    %cst_52 = arith.constant 0.000000e+00 : bf16
    %39 = vector.broadcast %cst_52 : bf16 to vector<1x32xbf16>
    %c7_53 = arith.constant 7 : index
    %c160_54 = arith.constant 160 : index
    %40 = vector.load %arg10[%c7_53, %c160_54] : memref<32x288xbf16, #tpu.memory_space<vmem>>, vector<1x32xbf16>
    tpu.vector_store %arg10[%c7_53, %c160_54], %39 {strides = array<i32>} : memref<32x288xbf16, #tpu.memory_space<vmem>>, vector<1x32xbf16>,
    %c15 = arith.constant 15 : index
    %c160_55 = arith.constant 160 : index
    %41 = vector.load %arg10[%c15, %c160_55] : memref<32x288xbf16, #tpu.memory_space<vmem>>, vector<1x32xbf16>
    tpu.vector_store %arg10[%c15, %c160_55], %39 {strides = array<i32>} : memref<32x288xbf16, #tpu.memory_space<vmem>>, vector<1x32xbf16>,
    %c23 = arith.constant 23 : index
    %c160_56 = arith.constant 160 : index
    %42 = vector.load %arg10[%c23, %c160_56] : memref<32x288xbf16, #tpu.memory_space<vmem>>, vector<1x32xbf16>
    tpu.vector_store %arg10[%c23, %c160_56], %39 {strides = array<i32>} : memref<32x288xbf16, #tpu.memory_space<vmem>>, vector<1x32xbf16>,
    %cst_57 = arith.constant 0.000000e+00 : bf16
    %43 = vector.broadcast %cst_57 : bf16 to vector<2x32xbf16>
    %c6_58 = arith.constant 6 : index
    %c192_59 = arith.constant 192 : index
    %44 = vector.load %arg10[%c6_58, %c192_59] : memref<32x288xbf16, #tpu.memory_space<vmem>>, vector<2x32xbf16>
    tpu.vector_store %arg10[%c6_58, %c192_59], %43 {strides = array<i32>} : memref<32x288xbf16, #tpu.memory_space<vmem>>, vector<2x32xbf16>,
    %c14 = arith.constant 14 : index
    %c192_60 = arith.constant 192 : index
    %45 = vector.load %arg10[%c14, %c192_60] : memref<32x288xbf16, #tpu.memory_space<vmem>>, vector<2x32xbf16>
    tpu.vector_store %arg10[%c14, %c192_60], %43 {strides = array<i32>} : memref<32x288xbf16, #tpu.memory_space<vmem>>, vector<2x32xbf16>,
    %c22 = arith.constant 22 : index
    %c192_61 = arith.constant 192 : index
    %46 = vector.load %arg10[%c22, %c192_61] : memref<32x288xbf16, #tpu.memory_space<vmem>>, vector<2x32xbf16>
    tpu.vector_store %arg10[%c22, %c192_61], %43 {strides = array<i32>} : memref<32x288xbf16, #tpu.memory_space<vmem>>, vector<2x32xbf16>,
    %cst_62 = arith.constant 0.000000e+00 : bf16
    %47 = vector.broadcast %cst_62 : bf16 to vector<3x32xbf16>
    %c5_63 = arith.constant 5 : index
    %c224_64 = arith.constant 224 : index
    %48 = vector.load %arg10[%c5_63, %c224_64] : memref<32x288xbf16, #tpu.memory_space<vmem>>, vector<3x32xbf16>
    tpu.vector_store %arg10[%c5_63, %c224_64], %47 {strides = array<i32>} : memref<32x288xbf16, #tpu.memory_space<vmem>>, vector<3x32xbf16>,
    %c13 = arith.constant 13 : index
    %c224_65 = arith.constant 224 : index
    %49 = vector.load %arg10[%c13, %c224_65] : memref<32x288xbf16, #tpu.memory_space<vmem>>, vector<3x32xbf16>
    tpu.vector_store %arg10[%c13, %c224_65], %47 {strides = array<i32>} : memref<32x288xbf16, #tpu.memory_space<vmem>>, vector<3x32xbf16>,
    %c21 = arith.constant 21 : index
    %c224_66 = arith.constant 224 : index
    %50 = vector.load %arg10[%c21, %c224_66] : memref<32x288xbf16, #tpu.memory_space<vmem>>, vector<3x32xbf16>
    tpu.vector_store %arg10[%c21, %c224_66], %47 {strides = array<i32>} : memref<32x288xbf16, #tpu.memory_space<vmem>>, vector<3x32xbf16>,
    %cst_67 = arith.constant 0.000000e+00 : bf16
    %51 = vector.broadcast %cst_67 : bf16 to vector<4x32xbf16>
    %c4_68 = arith.constant 4 : index
    %c256_69 = arith.constant 256 : index
    %52 = vector.load %arg10[%c4_68, %c256_69] : memref<32x288xbf16, #tpu.memory_space<vmem>>, vector<4x32xbf16>
    tpu.vector_store %arg10[%c4_68, %c256_69], %51 {strides = array<i32>} : memref<32x288xbf16, #tpu.memory_space<vmem>>, vector<4x32xbf16>,
    %c12 = arith.constant 12 : index
    %c256_70 = arith.constant 256 : index
    %53 = vector.load %arg10[%c12, %c256_70] : memref<32x288xbf16, #tpu.memory_space<vmem>>, vector<4x32xbf16>
    tpu.vector_store %arg10[%c12, %c256_70], %51 {strides = array<i32>} : memref<32x288xbf16, #tpu.memory_space<vmem>>, vector<4x32xbf16>,
    %c20 = arith.constant 20 : index
    %c256_71 = arith.constant 256 : index
    %54 = vector.load %arg10[%c20, %c256_71] : memref<32x288xbf16, #tpu.memory_space<vmem>>, vector<4x32xbf16>
    tpu.vector_store %arg10[%c20, %c256_71], %51 {strides = array<i32>} : memref<32x288xbf16, #tpu.memory_space<vmem>>, vector<4x32xbf16>,
    %c0_72 = arith.constant 0 : index
    %c0_73 = arith.constant 0 : index
    %55 = vector.load %arg10[%c0_72, %c0_73] : memref<32x288xbf16, #tpu.memory_space<vmem>>, vector<32x288xbf16>
    %c0_74 = arith.constant 0 : index
    %c0_75 = arith.constant 0 : index
    %56 = vector.load %arg2[%c0_74, %c0_75] : memref<288x512xbf16, #tpu.memory_space<vmem>>, vector<288x512xbf16>
    %cst_76 = arith.constant dense<0.000000e+00> : vector<32x512xf32>
    %57 = tpu.matmul %55, %56, %cst_76 {dimension_numbers = #tpu.dot_dimension_numbers<[1], [0], [0], [1], [0, 0, 1, 1], [], []>} : vector<32x288xbf16>, vector<288x512xbf16>, vector<32x512xf32> -> vector<32x512xf32>
    %c0_77 = arith.constant 0 : index
    %c0_78 = arith.constant 0 : index
    %58 = vector.load %arg3[%c0_77, %c0_78] : memref<1x512xf32, #tpu.memory_space<vmem>>, vector<1x512xf32>
    %59 = vector.broadcast %58 : vector<1x512xf32> to vector<32x512xf32>
    %60 = arith.addf %57, %59 : vector<32x512xf32>
    %cst_79 = arith.constant 0.000000e+00 : f32
    %61 = vector.broadcast %cst_79 : f32 to vector<32x512xf32>
    %62 = arith.maximumf %60, %61 : vector<32x512xf32>
    %63 = arith.truncf %62 : vector<32x512xf32> to vector<32x512xbf16>
    %cst_80 = arith.constant 0.000000e+00 : bf16
    %64 = vector.broadcast %cst_80 : bf16 to vector<2x512xbf16>
    %c0_81 = arith.constant 0 : index
    %c0_82 = arith.constant 0 : index
    %65 = vector.load %arg11[%c0_81, %c0_82] : memref<36x512xbf16, #tpu.memory_space<vmem>>, vector<2x512xbf16>
    tpu.vector_store %arg11[%c0_81, %c0_82], %64 {strides = array<i32>} : memref<36x512xbf16, #tpu.memory_space<vmem>>, vector<2x512xbf16>,
    %c34 = arith.constant 34 : index
    %c0_83 = arith.constant 0 : index
    %66 = vector.load %arg11[%c34, %c0_83] : memref<36x512xbf16, #tpu.memory_space<vmem>>, vector<2x512xbf16>
    tpu.vector_store %arg11[%c34, %c0_83], %64 {strides = array<i32>} : memref<36x512xbf16, #tpu.memory_space<vmem>>, vector<2x512xbf16>,
    %c2_84 = arith.constant 2 : index
    %c0_85 = arith.constant 0 : index
    %67 = vector.load %arg11[%c2_84, %c0_85] : memref<36x512xbf16, #tpu.memory_space<vmem>>, vector<32x512xbf16>
    tpu.vector_store %arg11[%c2_84, %c0_85], %63 {strides = array<i32>} : memref<36x512xbf16, #tpu.memory_space<vmem>>, vector<32x512xbf16>,
    %c0_86 = arith.constant 0 : index
    %c0_87 = arith.constant 0 : index
    %68 = vector.load %arg11[%c0_86, %c0_87] : memref<36x512xbf16, #tpu.memory_space<vmem>>, vector<32x512xbf16>
    %c0_88 = arith.constant 0 : index
    %c0_89 = arith.constant 0 : index
    %69 = vector.load %arg12[%c0_88, %c0_89] : memref<32x2560xbf16, #tpu.memory_space<vmem>>, vector<32x512xbf16>
    tpu.vector_store %arg12[%c0_88, %c0_89], %68 {strides = array<i32>} : memref<32x2560xbf16, #tpu.memory_space<vmem>>, vector<32x512xbf16>,
    %c1_90 = arith.constant 1 : index
    %c0_91 = arith.constant 0 : index
    %70 = vector.load %arg11[%c1_90, %c0_91] : memref<36x512xbf16, #tpu.memory_space<vmem>>, vector<32x512xbf16>
    %c0_92 = arith.constant 0 : index
    %c512 = arith.constant 512 : index
    %71 = vector.load %arg12[%c0_92, %c512] : memref<32x2560xbf16, #tpu.memory_space<vmem>>, vector<32x512xbf16>
    tpu.vector_store %arg12[%c0_92, %c512], %70 {strides = array<i32>} : memref<32x2560xbf16, #tpu.memory_space<vmem>>, vector<32x512xbf16>,
    %c2_93 = arith.constant 2 : index
    %c0_94 = arith.constant 0 : index
    %72 = vector.load %arg11[%c2_93, %c0_94] : memref<36x512xbf16, #tpu.memory_space<vmem>>, vector<32x512xbf16>
    %c0_95 = arith.constant 0 : index
    %c1024 = arith.constant 1024 : index
    %73 = vector.load %arg12[%c0_95, %c1024] : memref<32x2560xbf16, #tpu.memory_space<vmem>>, vector<32x512xbf16>
    tpu.vector_store %arg12[%c0_95, %c1024], %72 {strides = array<i32>} : memref<32x2560xbf16, #tpu.memory_space<vmem>>, vector<32x512xbf16>,
    %c3_96 = arith.constant 3 : index
    %c0_97 = arith.constant 0 : index
    %74 = vector.load %arg11[%c3_96, %c0_97] : memref<36x512xbf16, #tpu.memory_space<vmem>>, vector<32x512xbf16>
    %c0_98 = arith.constant 0 : index
    %c1536 = arith.constant 1536 : index
    %75 = vector.load %arg12[%c0_98, %c1536] : memref<32x2560xbf16, #tpu.memory_space<vmem>>, vector<32x512xbf16>
    tpu.vector_store %arg12[%c0_98, %c1536], %74 {strides = array<i32>} : memref<32x2560xbf16, #tpu.memory_space<vmem>>, vector<32x512xbf16>,
    %c4_99 = arith.constant 4 : index
    %c0_100 = arith.constant 0 : index
    %76 = vector.load %arg11[%c4_99, %c0_100] : memref<36x512xbf16, #tpu.memory_space<vmem>>, vector<32x512xbf16>
    %c0_101 = arith.constant 0 : index
    %c2048 = arith.constant 2048 : index
    %77 = vector.load %arg12[%c0_101, %c2048] : memref<32x2560xbf16, #tpu.memory_space<vmem>>, vector<32x512xbf16>
    tpu.vector_store %arg12[%c0_101, %c2048], %76 {strides = array<i32>} : memref<32x2560xbf16, #tpu.memory_space<vmem>>, vector<32x512xbf16>,
    %cst_102 = arith.constant 0.000000e+00 : bf16
    %78 = vector.broadcast %cst_102 : bf16 to vector<2x512xbf16>
    %c8_103 = arith.constant 8 : index
    %c0_104 = arith.constant 0 : index
    %79 = vector.load %arg12[%c8_103, %c0_104] : memref<32x2560xbf16, #tpu.memory_space<vmem>>, vector<2x512xbf16>
    tpu.vector_store %arg12[%c8_103, %c0_104], %78 {strides = array<i32>} : memref<32x2560xbf16, #tpu.memory_space<vmem>>, vector<2x512xbf16>,
    %c16_105 = arith.constant 16 : index
    %c0_106 = arith.constant 0 : index
    %80 = vector.load %arg12[%c16_105, %c0_106] : memref<32x2560xbf16, #tpu.memory_space<vmem>>, vector<2x512xbf16>
    tpu.vector_store %arg12[%c16_105, %c0_106], %78 {strides = array<i32>} : memref<32x2560xbf16, #tpu.memory_space<vmem>>, vector<2x512xbf16>,
    %c24_107 = arith.constant 24 : index
    %c0_108 = arith.constant 0 : index
    %81 = vector.load %arg12[%c24_107, %c0_108] : memref<32x2560xbf16, #tpu.memory_space<vmem>>, vector<2x512xbf16>
    tpu.vector_store %arg12[%c24_107, %c0_108], %78 {strides = array<i32>} : memref<32x2560xbf16, #tpu.memory_space<vmem>>, vector<2x512xbf16>,
    %cst_109 = arith.constant 0.000000e+00 : bf16
    %82 = vector.broadcast %cst_109 : bf16 to vector<1x512xbf16>
    %c8_110 = arith.constant 8 : index
    %c512_111 = arith.constant 512 : index
    %83 = vector.load %arg12[%c8_110, %c512_111] : memref<32x2560xbf16, #tpu.memory_space<vmem>>, vector<1x512xbf16>
    tpu.vector_store %arg12[%c8_110, %c512_111], %82 {strides = array<i32>} : memref<32x2560xbf16, #tpu.memory_space<vmem>>, vector<1x512xbf16>,
    %c16_112 = arith.constant 16 : index
    %c512_113 = arith.constant 512 : index
    %84 = vector.load %arg12[%c16_112, %c512_113] : memref<32x2560xbf16, #tpu.memory_space<vmem>>, vector<1x512xbf16>
    tpu.vector_store %arg12[%c16_112, %c512_113], %82 {strides = array<i32>} : memref<32x2560xbf16, #tpu.memory_space<vmem>>, vector<1x512xbf16>,
    %c24_114 = arith.constant 24 : index
    %c512_115 = arith.constant 512 : index
    %85 = vector.load %arg12[%c24_114, %c512_115] : memref<32x2560xbf16, #tpu.memory_space<vmem>>, vector<1x512xbf16>
    tpu.vector_store %arg12[%c24_114, %c512_115], %82 {strides = array<i32>} : memref<32x2560xbf16, #tpu.memory_space<vmem>>, vector<1x512xbf16>,
    %cst_116 = arith.constant 0.000000e+00 : bf16
    %86 = vector.broadcast %cst_116 : bf16 to vector<1x512xbf16>
    %c7_117 = arith.constant 7 : index
    %c1536_118 = arith.constant 1536 : index
    %87 = vector.load %arg12[%c7_117, %c1536_118] : memref<32x2560xbf16, #tpu.memory_space<vmem>>, vector<1x512xbf16>
    tpu.vector_store %arg12[%c7_117, %c1536_118], %86 {strides = array<i32>} : memref<32x2560xbf16, #tpu.memory_space<vmem>>, vector<1x512xbf16>,
    %c15_119 = arith.constant 15 : index
    %c1536_120 = arith.constant 1536 : index
    %88 = vector.load %arg12[%c15_119, %c1536_120] : memref<32x2560xbf16, #tpu.memory_space<vmem>>, vector<1x512xbf16>
    tpu.vector_store %arg12[%c15_119, %c1536_120], %86 {strides = array<i32>} : memref<32x2560xbf16, #tpu.memory_space<vmem>>, vector<1x512xbf16>,
    %c23_121 = arith.constant 23 : index
    %c1536_122 = arith.constant 1536 : index
    %89 = vector.load %arg12[%c23_121, %c1536_122] : memref<32x2560xbf16, #tpu.memory_space<vmem>>, vector<1x512xbf16>
    tpu.vector_store %arg12[%c23_121, %c1536_122], %86 {strides = array<i32>} : memref<32x2560xbf16, #tpu.memory_space<vmem>>, vector<1x512xbf16>,
    %cst_123 = arith.constant 0.000000e+00 : bf16
    %90 = vector.broadcast %cst_123 : bf16 to vector<2x512xbf16>
    %c6_124 = arith.constant 6 : index
    %c2048_125 = arith.constant 2048 : index
    %91 = vector.load %arg12[%c6_124, %c2048_125] : memref<32x2560xbf16, #tpu.memory_space<vmem>>, vector<2x512xbf16>
    tpu.vector_store %arg12[%c6_124, %c2048_125], %90 {strides = array<i32>} : memref<32x2560xbf16, #tpu.memory_space<vmem>>, vector<2x512xbf16>,
    %c14_126 = arith.constant 14 : index
    %c2048_127 = arith.constant 2048 : index
    %92 = vector.load %arg12[%c14_126, %c2048_127] : memref<32x2560xbf16, #tpu.memory_space<vmem>>, vector<2x512xbf16>
    tpu.vector_store %arg12[%c14_126, %c2048_127], %90 {strides = array<i32>} : memref<32x2560xbf16, #tpu.memory_space<vmem>>, vector<2x512xbf16>,
    %c22_128 = arith.constant 22 : index
    %c2048_129 = arith.constant 2048 : index
    %93 = vector.load %arg12[%c22_128, %c2048_129] : memref<32x2560xbf16, #tpu.memory_space<vmem>>, vector<2x512xbf16>
    tpu.vector_store %arg12[%c22_128, %c2048_129], %90 {strides = array<i32>} : memref<32x2560xbf16, #tpu.memory_space<vmem>>, vector<2x512xbf16>,
    %c0_130 = arith.constant 0 : index
    %c0_131 = arith.constant 0 : index
    %94 = vector.load %arg12[%c0_130, %c0_131] : memref<32x2560xbf16, #tpu.memory_space<vmem>>, vector<32x2560xbf16>
    %c0_132 = arith.constant 0 : index
    %c0_133 = arith.constant 0 : index
    %95 = vector.load %arg4[%c0_132, %c0_133] : memref<2560x256xbf16, #tpu.memory_space<vmem>>, vector<2560x256xbf16>
    %cst_134 = arith.constant dense<0.000000e+00> : vector<32x256xf32>
    %96 = tpu.matmul %94, %95, %cst_134 {dimension_numbers = #tpu.dot_dimension_numbers<[1], [0], [0], [1], [0, 0, 1, 1], [], []>} : vector<32x2560xbf16>, vector<2560x256xbf16>, vector<32x256xf32> -> vector<32x256xf32>
    %c0_135 = arith.constant 0 : index
    %c0_136 = arith.constant 0 : index
    %97 = vector.load %arg5[%c0_135, %c0_136] : memref<1x256xf32, #tpu.memory_space<vmem>>, vector<1x256xf32>
    %98 = vector.broadcast %97 : vector<1x256xf32> to vector<32x256xf32>
    %99 = arith.addf %96, %98 : vector<32x256xf32>
    %cst_137 = arith.constant 0.000000e+00 : f32
    %100 = vector.broadcast %cst_137 : f32 to vector<32x256xf32>
    %101 = arith.maximumf %99, %100 : vector<32x256xf32>
    %102 = arith.truncf %101 : vector<32x256xf32> to vector<32x256xbf16>
    %cst_138 = arith.constant 0.000000e+00 : bf16
    %103 = vector.broadcast %cst_138 : bf16 to vector<2x256xbf16>
    %c0_139 = arith.constant 0 : index
    %c0_140 = arith.constant 0 : index
    %104 = vector.load %arg13[%c0_139, %c0_140] : memref<36x256xbf16, #tpu.memory_space<vmem>>, vector<2x256xbf16>
    tpu.vector_store %arg13[%c0_139, %c0_140], %103 {strides = array<i32>} : memref<36x256xbf16, #tpu.memory_space<vmem>>, vector<2x256xbf16>,
    %c34_141 = arith.constant 34 : index
    %c0_142 = arith.constant 0 : index
    %105 = vector.load %arg13[%c34_141, %c0_142] : memref<36x256xbf16, #tpu.memory_space<vmem>>, vector<2x256xbf16>
    tpu.vector_store %arg13[%c34_141, %c0_142], %103 {strides = array<i32>} : memref<36x256xbf16, #tpu.memory_space<vmem>>, vector<2x256xbf16>,
    %c2_143 = arith.constant 2 : index
    %c0_144 = arith.constant 0 : index
    %106 = vector.load %arg13[%c2_143, %c0_144] : memref<36x256xbf16, #tpu.memory_space<vmem>>, vector<32x256xbf16>
    tpu.vector_store %arg13[%c2_143, %c0_144], %102 {strides = array<i32>} : memref<36x256xbf16, #tpu.memory_space<vmem>>, vector<32x256xbf16>,
    %c0_145 = arith.constant 0 : index
    %c0_146 = arith.constant 0 : index
    %107 = vector.load %arg13[%c0_145, %c0_146] : memref<36x256xbf16, #tpu.memory_space<vmem>>, vector<32x256xbf16>
    %c0_147 = arith.constant 0 : index
    %c0_148 = arith.constant 0 : index
    %108 = vector.load %arg14[%c0_147, %c0_148] : memref<32x1280xbf16, #tpu.memory_space<vmem>>, vector<32x256xbf16>
    tpu.vector_store %arg14[%c0_147, %c0_148], %107 {strides = array<i32>} : memref<32x1280xbf16, #tpu.memory_space<vmem>>, vector<32x256xbf16>,
    %c1_149 = arith.constant 1 : index
    %c0_150 = arith.constant 0 : index
    %109 = vector.load %arg13[%c1_149, %c0_150] : memref<36x256xbf16, #tpu.memory_space<vmem>>, vector<32x256xbf16>
    %c0_151 = arith.constant 0 : index
    %c256_152 = arith.constant 256 : index
    %110 = vector.load %arg14[%c0_151, %c256_152] : memref<32x1280xbf16, #tpu.memory_space<vmem>>, vector<32x256xbf16>
    tpu.vector_store %arg14[%c0_151, %c256_152], %109 {strides = array<i32>} : memref<32x1280xbf16, #tpu.memory_space<vmem>>, vector<32x256xbf16>,
    %c2_153 = arith.constant 2 : index
    %c0_154 = arith.constant 0 : index
    %111 = vector.load %arg13[%c2_153, %c0_154] : memref<36x256xbf16, #tpu.memory_space<vmem>>, vector<32x256xbf16>
    %c0_155 = arith.constant 0 : index
    %c512_156 = arith.constant 512 : index
    %112 = vector.load %arg14[%c0_155, %c512_156] : memref<32x1280xbf16, #tpu.memory_space<vmem>>, vector<32x256xbf16>
    tpu.vector_store %arg14[%c0_155, %c512_156], %111 {strides = array<i32>} : memref<32x1280xbf16, #tpu.memory_space<vmem>>, vector<32x256xbf16>,
    %c3_157 = arith.constant 3 : index
    %c0_158 = arith.constant 0 : index
    %113 = vector.load %arg13[%c3_157, %c0_158] : memref<36x256xbf16, #tpu.memory_space<vmem>>, vector<32x256xbf16>
    %c0_159 = arith.constant 0 : index
    %c768 = arith.constant 768 : index
    %114 = vector.load %arg14[%c0_159, %c768] : memref<32x1280xbf16, #tpu.memory_space<vmem>>, vector<32x256xbf16>
    tpu.vector_store %arg14[%c0_159, %c768], %113 {strides = array<i32>} : memref<32x1280xbf16, #tpu.memory_space<vmem>>, vector<32x256xbf16>,
    %c4_160 = arith.constant 4 : index
    %c0_161 = arith.constant 0 : index
    %115 = vector.load %arg13[%c4_160, %c0_161] : memref<36x256xbf16, #tpu.memory_space<vmem>>, vector<32x256xbf16>
    %c0_162 = arith.constant 0 : index
    %c1024_163 = arith.constant 1024 : index
    %116 = vector.load %arg14[%c0_162, %c1024_163] : memref<32x1280xbf16, #tpu.memory_space<vmem>>, vector<32x256xbf16>
    tpu.vector_store %arg14[%c0_162, %c1024_163], %115 {strides = array<i32>} : memref<32x1280xbf16, #tpu.memory_space<vmem>>, vector<32x256xbf16>,
    %cst_164 = arith.constant 0.000000e+00 : bf16
    %117 = vector.broadcast %cst_164 : bf16 to vector<2x256xbf16>
    %c8_165 = arith.constant 8 : index
    %c0_166 = arith.constant 0 : index
    %118 = vector.load %arg14[%c8_165, %c0_166] : memref<32x1280xbf16, #tpu.memory_space<vmem>>, vector<2x256xbf16>
    tpu.vector_store %arg14[%c8_165, %c0_166], %117 {strides = array<i32>} : memref<32x1280xbf16, #tpu.memory_space<vmem>>, vector<2x256xbf16>,
    %c16_167 = arith.constant 16 : index
    %c0_168 = arith.constant 0 : index
    %119 = vector.load %arg14[%c16_167, %c0_168] : memref<32x1280xbf16, #tpu.memory_space<vmem>>, vector<2x256xbf16>
    tpu.vector_store %arg14[%c16_167, %c0_168], %117 {strides = array<i32>} : memref<32x1280xbf16, #tpu.memory_space<vmem>>, vector<2x256xbf16>,
    %c24_169 = arith.constant 24 : index
    %c0_170 = arith.constant 0 : index
    %120 = vector.load %arg14[%c24_169, %c0_170] : memref<32x1280xbf16, #tpu.memory_space<vmem>>, vector<2x256xbf16>
    tpu.vector_store %arg14[%c24_169, %c0_170], %117 {strides = array<i32>} : memref<32x1280xbf16, #tpu.memory_space<vmem>>, vector<2x256xbf16>,
    %cst_171 = arith.constant 0.000000e+00 : bf16
    %121 = vector.broadcast %cst_171 : bf16 to vector<1x256xbf16>
    %c8_172 = arith.constant 8 : index
    %c256_173 = arith.constant 256 : index
    %122 = vector.load %arg14[%c8_172, %c256_173] : memref<32x1280xbf16, #tpu.memory_space<vmem>>, vector<1x256xbf16>
    tpu.vector_store %arg14[%c8_172, %c256_173], %121 {strides = array<i32>} : memref<32x1280xbf16, #tpu.memory_space<vmem>>, vector<1x256xbf16>,
    %c16_174 = arith.constant 16 : index
    %c256_175 = arith.constant 256 : index
    %123 = vector.load %arg14[%c16_174, %c256_175] : memref<32x1280xbf16, #tpu.memory_space<vmem>>, vector<1x256xbf16>
    tpu.vector_store %arg14[%c16_174, %c256_175], %121 {strides = array<i32>} : memref<32x1280xbf16, #tpu.memory_space<vmem>>, vector<1x256xbf16>,
    %c24_176 = arith.constant 24 : index
    %c256_177 = arith.constant 256 : index
    %124 = vector.load %arg14[%c24_176, %c256_177] : memref<32x1280xbf16, #tpu.memory_space<vmem>>, vector<1x256xbf16>
    tpu.vector_store %arg14[%c24_176, %c256_177], %121 {strides = array<i32>} : memref<32x1280xbf16, #tpu.memory_space<vmem>>, vector<1x256xbf16>,
    %cst_178 = arith.constant 0.000000e+00 : bf16
    %125 = vector.broadcast %cst_178 : bf16 to vector<1x256xbf16>
    %c7_179 = arith.constant 7 : index
    %c768_180 = arith.constant 768 : index
    %126 = vector.load %arg14[%c7_179, %c768_180] : memref<32x1280xbf16, #tpu.memory_space<vmem>>, vector<1x256xbf16>
    tpu.vector_store %arg14[%c7_179, %c768_180], %125 {strides = array<i32>} : memref<32x1280xbf16, #tpu.memory_space<vmem>>, vector<1x256xbf16>,
    %c15_181 = arith.constant 15 : index
    %c768_182 = arith.constant 768 : index
    %127 = vector.load %arg14[%c15_181, %c768_182] : memref<32x1280xbf16, #tpu.memory_space<vmem>>, vector<1x256xbf16>
    tpu.vector_store %arg14[%c15_181, %c768_182], %125 {strides = array<i32>} : memref<32x1280xbf16, #tpu.memory_space<vmem>>, vector<1x256xbf16>,
    %c23_183 = arith.constant 23 : index
    %c768_184 = arith.constant 768 : index
    %128 = vector.load %arg14[%c23_183, %c768_184] : memref<32x1280xbf16, #tpu.memory_space<vmem>>, vector<1x256xbf16>
    tpu.vector_store %arg14[%c23_183, %c768_184], %125 {strides = array<i32>} : memref<32x1280xbf16, #tpu.memory_space<vmem>>, vector<1x256xbf16>,
    %cst_185 = arith.constant 0.000000e+00 : bf16
    %129 = vector.broadcast %cst_185 : bf16 to vector<2x256xbf16>
    %c6_186 = arith.constant 6 : index
    %c1024_187 = arith.constant 1024 : index
    %130 = vector.load %arg14[%c6_186, %c1024_187] : memref<32x1280xbf16, #tpu.memory_space<vmem>>, vector<2x256xbf16>
    tpu.vector_store %arg14[%c6_186, %c1024_187], %129 {strides = array<i32>} : memref<32x1280xbf16, #tpu.memory_space<vmem>>, vector<2x256xbf16>,
    %c14_188 = arith.constant 14 : index
    %c1024_189 = arith.constant 1024 : index
    %131 = vector.load %arg14[%c14_188, %c1024_189] : memref<32x1280xbf16, #tpu.memory_space<vmem>>, vector<2x256xbf16>
    tpu.vector_store %arg14[%c14_188, %c1024_189], %129 {strides = array<i32>} : memref<32x1280xbf16, #tpu.memory_space<vmem>>, vector<2x256xbf16>,
    %c22_190 = arith.constant 22 : index
    %c1024_191 = arith.constant 1024 : index
    %132 = vector.load %arg14[%c22_190, %c1024_191] : memref<32x1280xbf16, #tpu.memory_space<vmem>>, vector<2x256xbf16>
    tpu.vector_store %arg14[%c22_190, %c1024_191], %129 {strides = array<i32>} : memref<32x1280xbf16, #tpu.memory_space<vmem>>, vector<2x256xbf16>,
    %c0_192 = arith.constant 0 : index
    %c0_193 = arith.constant 0 : index
    %133 = vector.load %arg14[%c0_192, %c0_193] : memref<32x1280xbf16, #tpu.memory_space<vmem>>, vector<32x1280xbf16>
    %c0_194 = arith.constant 0 : index
    %c0_195 = arith.constant 0 : index
    %134 = vector.load %arg6[%c0_194, %c0_195] : memref<1280x32xbf16, #tpu.memory_space<vmem>>, vector<1280x32xbf16>
    %cst_196 = arith.constant dense<0.000000e+00> : vector<32x32xf32>
    %135 = tpu.matmul %133, %134, %cst_196 {dimension_numbers = #tpu.dot_dimension_numbers<[1], [0], [0], [1], [0, 0, 1, 1], [], []>} : vector<32x1280xbf16>, vector<1280x32xbf16>, vector<32x32xf32> -> vector<32x32xf32>
    %c0_197 = arith.constant 0 : index
    %c0_198 = arith.constant 0 : index
    %136 = vector.load %arg7[%c0_197, %c0_198] : memref<1x32xf32, #tpu.memory_space<vmem>>, vector<1x32xf32>
    %137 = vector.broadcast %136 : vector<1x32xf32> to vector<32x32xf32>
    %138 = arith.addf %135, %137 : vector<32x32xf32>
    %c0_199 = arith.constant 0 : index
    %c0_200 = arith.constant 0 : index
    %139 = vector.load %arg8[%c0_199, %c0_200] : memref<32x32xf32, #tpu.memory_space<vmem>>, vector<32x32xf32>
    tpu.vector_store %arg8[%c0_199, %c0_200], %138 {strides = array<i32>} : memref<32x32xf32, #tpu.memory_space<vmem>>, vector<32x32xf32>,
    return
  }
  func.func @transform_0(%arg0: i32) -> (i32, i32) {
    %c0_i32 = arith.constant 0 : i32
    %c0_i32_0 = arith.constant 0 : i32
    return %arg0, %c0_i32 : i32, i32
  }
  func.func @transform_1(%arg0: i32) -> (i32, i32) {
    %c0_i32 = arith.constant 0 : i32
    %c0_i32_0 = arith.constant 0 : i32
    %c0_i32_1 = arith.constant 0 : i32
    return %c0_i32, %c0_i32_0 : i32, i32
  }
  func.func @transform_2(%arg0: i32) -> (i32, i32) {
    %c0_i32 = arith.constant 0 : i32
    %c0_i32_0 = arith.constant 0 : i32
    %c0_i32_1 = arith.constant 0 : i32
    return %c0_i32, %c0_i32_0 : i32, i32
  }
  func.func @transform_3(%arg0: i32) -> (i32, i32) {
    %c0_i32 = arith.constant 0 : i32
    %c0_i32_0 = arith.constant 0 : i32
    %c0_i32_1 = arith.constant 0 : i32
    return %c0_i32, %c0_i32_0 : i32, i32
  }
  func.func @transform_4(%arg0: i32) -> (i32, i32) {
    %c0_i32 = arith.constant 0 : i32
    %c0_i32_0 = arith.constant 0 : i32
    %c0_i32_1 = arith.constant 0 : i32
    return %c0_i32, %c0_i32_0 : i32, i32
  }
  func.func @transform_5(%arg0: i32) -> (i32, i32) {
    %c0_i32 = arith.constant 0 : i32
    %c0_i32_0 = arith.constant 0 : i32
    %c0_i32_1 = arith.constant 0 : i32
    return %c0_i32, %c0_i32_0 : i32, i32
  }
  func.func @transform_6(%arg0: i32) -> (i32, i32) {
    %c0_i32 = arith.constant 0 : i32
    %c0_i32_0 = arith.constant 0 : i32
    %c0_i32_1 = arith.constant 0 : i32
    return %c0_i32, %c0_i32_0 : i32, i32
  }
  func.func @transform_7(%arg0: i32) -> (i32, i32) {
    %c0_i32 = arith.constant 0 : i32
    %c0_i32_0 = arith.constant 0 : i32
    return %arg0, %c0_i32 : i32, i32
  }
}

</mosaic_0001>

<llo_original>
// kernel: tile.18
$region0: #{tile.18}
  #allocation0 [shape = 's32[1]{0}', space=sflag, size = 0x4, scoped, tag = 'scoped memory for tile.18']
  %s0 = inlined_call_operand.vmem [shape: f32[64], index: 0, kind: input, shape index: {}]
  %s1 = inlined_call_operand.vmem [shape: f32[8,64], index: 1, kind: output, shape index: {}]
  // Predicated region
  $region2: #{tile.18} parent=0 // pred_check
    _
  $region3: #{tile.18} parent=0 // pred_check_branch
    %3 = sbr.rel (0) target = $region5
  $region4: #{tile.18} parent=0 // pred_region
    _
  $region5: #{tile.18} parent=0 // pred_fallthru
    _
  %v4 = vld [vmem:[%s0] ss:$0 sm:$0xff]
  %5 = vst [vmem:[%s1] sm:$0xff] %v4

// kernel: tile.19
$region0: #{tile.19}
  %s0 = inlined_call_operand.vmem [shape: f32[8,64], index: 0, kind: input, shape index: {}]
  %s1 = inlined_call_operand.vmem [shape: f32[1,512], index: 1, kind: output, shape index: {}]
  $region1: #{tile.19} parent=0
    #allocation0 [shape = 'u8[16384]{0}', space=vmem, size = 0x4000, scoped, tag = 'scoped mem for output reshape']
    %v2 = vld [vmem:[%s0] ss:$2 sm:$0xf]
    %vm3 = vcmask 523264
    %4 = vst.msk [vmem:[#allocation0] ss:$8 sm:$0xf] %vm3, %v2
    %s5 = scalar_lea.vmem %s0, 1
    %v6 = vld [vmem:[%s5] ss:$2 sm:$0xf]
    %7 = vrot.lane.b32.xlu0 %v6, 64
    %v8 = vpop.permute.xlu0 %7
    %vm9 = vcmask 1048064
    %10 = vst.msk [vmem:[#allocation0] ss:$8 sm:$0xf] %vm9, %v8
    %s12 = sshll.u32 1, 1
    %s13 = ssub.s32 %s12, 1
    %v15 = vld [vmem:[#allocation0] sm:%s13]
    %s16 = sshll.u32 1, 1
    %s17 = ssub.s32 %s16, 1
    %18 = vst [vmem:[%s1] sm:%s17] %v15
    %s19 = scalar_lea.vmem [#allocation0], 8
    %v20 = vld [vmem:[%s19] sm:%s13]
    %s21 = sshll.u32 1, 1
    %s22 = ssub.s32 %s21, 1
    %s23 = scalar_lea.vmem %s1, 1
    %24 = vst [vmem:[%s23] sm:%s22] %v20
    %s25 = scalar_lea.vmem [#allocation0], 16
    %v26 = vld [vmem:[%s25] sm:%s13]
    %s27 = sshll.u32 1, 1
    %s28 = ssub.s32 %s27, 1
    %s29 = smul.addr 1, 2
    %s30 = scalar_lea.vmem %s1, %s29
    %31 = vst [vmem:[%s30] sm:%s28] %v26
    %s32 = scalar_lea.vmem [#allocation0], 24
    %v33 = vld [vmem:[%s32] sm:%s13]
    %s34 = sshll.u32 1, 1
    %s35 = ssub.s32 %s34, 1
    %s36 = smul.addr 1, 3
    %s37 = scalar_lea.vmem %s1, %s36
    %38 = vst [vmem:[%s37] sm:%s35] %v33

// kernel: tile.23
$region0: #{tile.23}
  #allocation0 [shape = 's32[1]{0}', space=sflag, size = 0x4, scoped, tag = 'scoped memory for tile.23']
  %s0 = inlined_call_operand.vmem [shape: f32[32], index: 0, kind: input, shape index: {}]
  %s1 = inlined_call_operand.vmem [shape: f32[8,32], index: 1, kind: output, shape index: {}]
  // Predicated region
  $region2: #{tile.23} parent=0 // pred_check
    _
  $region3: #{tile.23} parent=0 // pred_check_branch
    %3 = sbr.rel (0) target = $region5
  $region4: #{tile.23} parent=0 // pred_region
    _
  $region5: #{tile.23} parent=0 // pred_fallthru
    _
  %v4 = vld [vmem:[%s0] ss:$0 sm:$0xff]
  %5 = vst [vmem:[%s1] sm:$0xff] %v4

// kernel: tile.24
$region0: #{tile.24}
  %s0 = inlined_call_operand.vmem [shape: f32[8,32], index: 0, kind: input, shape index: {}]
  %s1 = inlined_call_operand.vmem [shape: f32[1,256], index: 1, kind: output, shape index: {}]
  $region1: #{tile.24} parent=0
    #allocation0 [shape = 'u8[8192]{0}', space=vmem, size = 0x2000, scoped, tag = 'scoped mem for output reshape']
    %s2 = smov 3
    %v3 = vld [vmem:[%s0] ss:$4 sm:%s2]
    %vm4 = vcmask 261120
    %5 = vst.msk [vmem:[#allocation0] ss:$8 sm:$0x3] %vm4, %v3
    %s6 = scalar_lea.vmem %s0, 3
    %s7 = smov 3
    %v8 = vld [vmem:[%s6] ss:$4 sm:%s7]
    %9 = vrot.lane.b32.xlu0 %v8, 96
    %v10 = vpop.permute.xlu0 %9
    %vm11 = vcmask 1048320
    %12 = vst.msk [vmem:[#allocation0] ss:$8 sm:$0x3] %vm11, %v10
    %s13 = scalar_lea.vmem %s0, 2
    %s14 = smov 3
    %v15 = vld [vmem:[%s13] ss:$4 sm:%s14]
    %16 = vrot.lane.b32.xlu0 %v15, 64
    %v17 = vpop.permute.xlu0 %16
    %vm18 = vcmask 785920
    %19 = vst.msk [vmem:[#allocation0] ss:$8 sm:$0x3] %vm18, %v17
    %s20 = scalar_lea.vmem %s0, 1
    %s21 = smov 3
    %v22 = vld [vmem:[%s20] ss:$4 sm:%s21]
    %23 = vrot.lane.b32.xlu0 %v22, 32
    %v24 = vpop.permute.xlu0 %23
    %vm25 = vcmask 523520
    %26 = vst.msk [vmem:[#allocation0] ss:$8 sm:$0x3] %vm25, %v24
    %s28 = sshll.u32 1, 1
    %s29 = ssub.s32 %s28, 1
    %v31 = vld [vmem:[#allocation0] sm:%s29]
    %s32 = sshll.u32 1, 1
    %s33 = ssub.s32 %s32, 1
    %34 = vst [vmem:[%s1] sm:%s33] %v31
    %s35 = scalar_lea.vmem [#allocation0], 8
    %v36 = vld [vmem:[%s35] sm:%s29]
    %s37 = sshll.u32 1, 1
    %s38 = ssub.s32 %s37, 1
    %s39 = scalar_lea.vmem %s1, 1
    %40 = vst [vmem:[%s39] sm:%s38] %v36

// kernel: tile.28
$region0: #{tile.28}
  #allocation0 [shape = 's32[1]{0}', space=sflag, size = 0x4, scoped, tag = 'scoped memory for tile.28']
  %s0 = inlined_call_operand.vmem [shape: f32[4], index: 0, kind: input, shape index: {}]
  %s1 = inlined_call_operand.vmem [shape: f32[8,4], index: 1, kind: output, shape index: {}]
  // Predicated region
  $region2: #{tile.28} parent=0 // pred_check
    _
  $region3: #{tile.28} parent=0 // pred_check_branch
    %3 = sbr.rel (0) target = $region5
  $region4: #{tile.28} parent=0 // pred_region
    _
  $region5: #{tile.28} parent=0 // pred_fallthru
    _
  %v4 = vld [vmem:[%s0] ss:$0 sm:$0xff]
  %5 = vst [vmem:[%s1] sm:$0xff] %v4

// kernel: tile.29
$region0: #{tile.29}
  %s0 = inlined_call_operand.vmem [shape: f32[8,4], index: 0, kind: input, shape index: {}]
  %s1 = inlined_call_operand.vmem [shape: f32[1,32], index: 1, kind: output, shape index: {}]
  $region1: #{tile.29} parent=0
    #allocation0 [shape = 'u8[4096]{0}', space=vmem, size = 0x1000, scoped, tag = 'scoped mem for output reshape']
    %v2 = vld [vmem:[%s0] sm:$0x1]
    %vm3 = vcmask 31744
    %4 = vst.msk [vmem:[#allocation0] sm:$0x1] %vm3, %v2
    %s5 = scalar_lea.vmem %s0, 7
    %v6 = vld [vmem:[%s5] sm:$0x1]
    %7 = vrot.lane.b32.xlu0 %v6, 28
    %v8 = vpop.permute.xlu0 %7
    %vm9 = vcmask 261344
    %10 = vst.msk [vmem:[#allocation0] sm:$0x1] %vm9, %v8
    %s11 = scalar_lea.vmem %s0, 6
    %v12 = vld [vmem:[%s11] sm:$0x1]
    %13 = vrot.lane.b32.xlu0 %v12, 24
    %v14 = vpop.permute.xlu0 %13
    %vm15 = vcmask 228544
    %16 = vst.msk [vmem:[#allocation0] sm:$0x1] %vm15, %v14
    %s17 = scalar_lea.vmem %s0, 5
    %v18 = vld [vmem:[%s17] sm:$0x1]
    %19 = vrot.lane.b32.xlu0 %v18, 20
    %v20 = vpop.permute.xlu0 %19
    %vm21 = vcmask 195744
    %22 = vst.msk [vmem:[#allocation0] sm:$0x1] %vm21, %v20
    %s23 = scalar_lea.vmem %s0, 4
    %v24 = vld [vmem:[%s23] sm:$0x1]
    %25 = vrot.lane.b32.xlu0 %v24, 16
    %v26 = vpop.permute.xlu0 %25
    %vm27 = vcmask 162944
    %28 = vst.msk [vmem:[#allocation0] sm:$0x1] %vm27, %v26
    %s29 = scalar_lea.vmem %s0, 3
    %v30 = vld [vmem:[%s29] sm:$0x1]
    %31 = vrot.lane.b32.xlu0 %v30, 12
    %v32 = vpop.permute.xlu0 %31
    %vm33 = vcmask 130144
    %34 = vst.msk [vmem:[#allocation0] sm:$0x1] %vm33, %v32
    %s35 = scalar_lea.vmem %s0, 2
    %v36 = vld [vmem:[%s35] sm:$0x1]
    %37 = vrot.lane.b32.xlu0 %v36, 8
    %v38 = vpop.permute.xlu0 %37
    %vm39 = vcmask 97344
    %40 = vst.msk [vmem:[#allocation0] sm:$0x1] %vm39, %v38
    %s41 = scalar_lea.vmem %s0, 1
    %v42 = vld [vmem:[%s41] sm:$0x1]
    %43 = vrot.lane.b32.xlu0 %v42, 4
    %v44 = vpop.permute.xlu0 %43
    %vm45 = vcmask 64544
    %46 = vst.msk [vmem:[#allocation0] sm:$0x1] %vm45, %v44
    %s48 = sshll.u32 1, 1
    %s49 = ssub.s32 %s48, 1
    %v51 = vld [vmem:[#allocation0] sm:%s49]
    %s52 = sshll.u32 1, 1
    %s53 = ssub.s32 %s52, 1
    %54 = vst [vmem:[%s1] sm:%s53] %v51

// kernel: srcnn_forward.1
$region0: #{srcnn_forward.1}
  #allocation0 [shape = 'u32[]', space=smem, size = 0x4, offset = 0x4, fixed_abs, tag = 'smem constant byte address 0x4 - core index']
  #allocation1 [shape = 'u32[144,128]{1,0:T(1,128)}', space=vmem, size = 0x12000, scoped, tag = 'internal scratch']
  #allocation2 [shape = 'bf16[40,32]{1,0:T(8,128)(2,1)}', space=vmem, size = 0x2800, scoped, tag = 'scratch operand']
  #allocation3 [shape = 'bf16[32,288]{1,0:T(8,128)(2,1)}', space=vmem, size = 0x6000, scoped, tag = 'scratch operand']
  #allocation4 [shape = 'bf16[36,512]{1,0:T(8,128)(2,1)}', space=vmem, size = 0xa000, scoped, tag = 'scratch operand']
  #allocation5 [shape = 'bf16[32,2560]{1,0:T(8,128)(2,1)}', space=vmem, size = 0x28000, scoped, tag = 'scratch operand']
  #allocation6 [shape = 'bf16[36,256]{1,0:T(8,128)(2,1)}', space=vmem, size = 0x5000, scoped, tag = 'scratch operand']
  #allocation7 [shape = 'bf16[32,1280]{1,0:T(8,128)(2,1)}', space=vmem, size = 0x14000, scoped, tag = 'scratch operand']
  %s0 = inlined_call_operand.vmem [shape: bf16[64,32], index: 0, kind: input, shape index: {}]
  %s1 = inlined_call_operand.vmem [shape: bf16[288,512], index: 1, kind: input, shape index: {}]
  %s2 = inlined_call_operand.vmem [shape: f32[1,512], index: 2, kind: input, shape index: {}]
  %s3 = inlined_call_operand.vmem [shape: bf16[2560,256], index: 3, kind: input, shape index: {}]
  %s4 = inlined_call_operand.vmem [shape: f32[1,256], index: 4, kind: input, shape index: {}]
  %s5 = inlined_call_operand.vmem [shape: bf16[1280,32], index: 5, kind: input, shape index: {}]
  %s6 = inlined_call_operand.vmem [shape: f32[1,32], index: 6, kind: input, shape index: {}]
  %s7 = inlined_call_operand.vmem [shape: f32[64,32], index: 7, kind: output, shape index: {}]
  %s8 = sld [smem:[#allocation0]]
  $region61: #{srcnn_forward.1} parent=0
    _
  %s10 = ssub.s32 1, %s8
  %s11 = scalar_select 0, %s10, %s8
  loop: start=0, step=1, limit=4
  $region2: #{srcnn_forward.1} parent=0 // loop_pre_header
    _
  $region3: #{srcnn_forward.1} parent=0 // loop_header
    %s13 = sphi 0, %s17
    %p14 = scmp.ge.s32.totalorder %s13, 4
    %s23 = sphi 0, %s25
    %s26 = sphi 0, %s23
    %s27 = sphi 0, %s26
    %s43 = sphi 0, %s27
    %s47 = sphi 0, %s47
    %s49 = sphi 0, %s47
    %s50 = sphi 0, %s49
    %s64 = sphi 0, %s50
    %s68 = sphi 0, %s68
    %s70 = sphi 0, %s68
    %s71 = sphi 0, %s70
    %s85 = sphi 0, %s71
    %s89 = sphi 0, %s89
    %s91 = sphi 0, %s89
    %s92 = sphi 0, %s91
    %s106 = sphi 0, %s92
    %s110 = sphi 0, %s110
    %s112 = sphi 0, %s110
    %s113 = sphi 0, %s112
    %s127 = sphi 0, %s113
    %s131 = sphi 0, %s131
    %s133 = sphi 0, %s131
    %s134 = sphi 0, %s133
    %s148 = sphi 0, %s134
    %s152 = sphi 0, %s152
    %s154 = sphi 0, %s152
    %s155 = sphi 0, %s154
    %s169 = sphi 0, %s155
    %s175 = sphi 0, %s177
    %s178 = sphi 0, %s175
    %s179 = sphi 0, %s178
    %s195 = sphi 0, %s179
  $region4: #{srcnn_forward.1} parent=0 // loop_header_branch
    %16 = sbr.rel (%p14) target = $region8
  $region5: #{srcnn_forward.1} parent=0 // loop_body
    %s18 = ssub.s32 %s13, 1
    %s19 = ssub.s32 %s13, 2
    %s20 = sadd.s32 %s13, 1
    %s21 = ssub.s32 %s13, %s20
    %p22 = scmp.eq.s32.totalorder %s21, 0
    %s24 = sadd.s32 %s23, 1
    %s25 = scalar_select %p22, %s23, %s24
    %p28 = pneg %p22
    %p29 = scmp.eq.s32.totalorder %s13, 1
    %p30 = por %p28, %p29
    %p31 = scmp.ne.s32.totalorder %s23, %s26
    %p32 = scmp.eq.s32.totalorder %s13, 0
    %p33 = por %p31, %p32
    %p34 = scmp.ne.s32.totalorder %s23, %s26
    %p35 = scmp.eq.s32.totalorder %s18, 1
    %p36 = por %p34, %p35
    %p37 = scmp.ne.s32.totalorder %s26, %s27
    %p38 = scmp.eq.s32.totalorder %s18, 0
    %p39 = por %p37, %p38
    %p40 = scmp.ne.s32.totalorder %s26, %s27
    %p41 = scmp.eq.s32.totalorder %s19, 1
    %p42 = por %p40, %p41
    %p44 = scmp.ne.s32.totalorder %s27, %s43
    %p45 = scmp.eq.s32.totalorder %s19, 0
    %p46 = por %p44, %p45
    %s48 = sadd.s32 %s47, 1
    %p51 = scmp.eq.s32.totalorder %s13, 1
    %p52 = scmp.ne.s32.totalorder %s47, %s49
    %p53 = scmp.eq.s32.totalorder %s13, 0
    %p54 = por %p52, %p53
    %p55 = scmp.ne.s32.totalorder %s47, %s49
    %p56 = scmp.eq.s32.totalorder %s18, 1
    %p57 = por %p55, %p56
    %p58 = scmp.ne.s32.totalorder %s49, %s50
    %p59 = scmp.eq.s32.totalorder %s18, 0
    %p60 = por %p58, %p59
    %p61 = scmp.ne.s32.totalorder %s49, %s50
    %p62 = scmp.eq.s32.totalorder %s19, 1
    %p63 = por %p61, %p62
    %p65 = scmp.ne.s32.totalorder %s50, %s64
    %p66 = scmp.eq.s32.totalorder %s19, 0
    %p67 = por %p65, %p66
    %s69 = sadd.s32 %s68, 1
    %p72 = scmp.eq.s32.totalorder %s13, 1
    %p73 = scmp.ne.s32.totalorder %s68, %s70
    %p74 = scmp.eq.s32.totalorder %s13, 0
    %p75 = por %p73, %p74
    %p76 = scmp.ne.s32.totalorder %s68, %s70
    %p77 = scmp.eq.s32.totalorder %s18, 1
    %p78 = por %p76, %p77
    %p79 = scmp.ne.s32.totalorder %s70, %s71
    %p80 = scmp.eq.s32.totalorder %s18, 0
    %p81 = por %p79, %p80
    %p82 = scmp.ne.s32.totalorder %s70, %s71
    %p83 = scmp.eq.s32.totalorder %s19, 1
    %p84 = por %p82, %p83
    %p86 = scmp.ne.s32.totalorder %s71, %s85
    %p87 = scmp.eq.s32.totalorder %s19, 0
    %p88 = por %p86, %p87
    %s90 = sadd.s32 %s89, 1
    %p93 = scmp.eq.s32.totalorder %s13, 1
    %p94 = scmp.ne.s32.totalorder %s89, %s91
    %p95 = scmp.eq.s32.totalorder %s13, 0
    %p96 = por %p94, %p95
    %p97 = scmp.ne.s32.totalorder %s89, %s91
    %p98 = scmp.eq.s32.totalorder %s18, 1
    %p99 = por %p97, %p98
    %p100 = scmp.ne.s32.totalorder %s91, %s92
    %p101 = scmp.eq.s32.totalorder %s18, 0
    %p102 = por %p100, %p101
    %p103 = scmp.ne.s32.totalorder %s91, %s92
    %p104 = scmp.eq.s32.totalorder %s19, 1
    %p105 = por %p103, %p104
    %p107 = scmp.ne.s32.totalorder %s92, %s106
    %p108 = scmp.eq.s32.totalorder %s19, 0
    %p109 = por %p107, %p108
    %s111 = sadd.s32 %s110, 1
    %p114 = scmp.eq.s32.totalorder %s13, 1
    %p115 = scmp.ne.s32.totalorder %s110, %s112
    %p116 = scmp.eq.s32.totalorder %s13, 0
    %p117 = por %p115, %p116
    %p118 = scmp.ne.s32.totalorder %s110, %s112
    %p119 = scmp.eq.s32.totalorder %s18, 1
    %p120 = por %p118, %p119
    %p121 = scmp.ne.s32.totalorder %s112, %s113
    %p122 = scmp.eq.s32.totalorder %s18, 0
    %p123 = por %p121, %p122
    %p124 = scmp.ne.s32.totalorder %s112, %s113
    %p125 = scmp.eq.s32.totalorder %s19, 1
    %p126 = por %p124, %p125
    %p128 = scmp.ne.s32.totalorder %s113, %s127
    %p129 = scmp.eq.s32.totalorder %s19, 0
    %p130 = por %p128, %p129
    %s132 = sadd.s32 %s131, 1
    %p135 = scmp.eq.s32.totalorder %s13, 1
    %p136 = scmp.ne.s32.totalorder %s131, %s133
    %p137 = scmp.eq.s32.totalorder %s13, 0
    %p138 = por %p136, %p137
    %p139 = scmp.ne.s32.totalorder %s131, %s133
    %p140 = scmp.eq.s32.totalorder %s18, 1
    %p141 = por %p139, %p140
    %p142 = scmp.ne.s32.totalorder %s133, %s134
    %p143 = scmp.eq.s32.totalorder %s18, 0
    %p144 = por %p142, %p143
    %p145 = scmp.ne.s32.totalorder %s133, %s134
    %p146 = scmp.eq.s32.totalorder %s19, 1
    %p147 = por %p145, %p146
    %p149 = scmp.ne.s32.totalorder %s134, %s148
    %p150 = scmp.eq.s32.totalorder %s19, 0
    %p151 = por %p149, %p150
    %s153 = sadd.s32 %s152, 1
    %p156 = scmp.eq.s32.totalorder %s13, 1
    %p157 = scmp.ne.s32.totalorder %s152, %s154
    %p158 = scmp.eq.s32.totalorder %s13, 0
    %p159 = por %p157, %p158
    %p160 = scmp.ne.s32.totalorder %s152, %s154
    %p161 = scmp.eq.s32.totalorder %s18, 1
    %p162 = por %p160, %p161
    %p163 = scmp.ne.s32.totalorder %s154, %s155
    %p164 = scmp.eq.s32.totalorder %s18, 0
    %p165 = por %p163, %p164
    %p166 = scmp.ne.s32.totalorder %s154, %s155
    %p167 = scmp.eq.s32.totalorder %s19, 1
    %p168 = por %p166, %p167
    %p170 = scmp.ne.s32.totalorder %s155, %s169
    %p171 = scmp.eq.s32.totalorder %s19, 0
    %p172 = por %p170, %p171
    %s173 = ssub.s32 %s13, %s20
    %p174 = scmp.eq.s32.totalorder %s173, 0
    %s176 = sadd.s32 %s175, 1
    %s177 = scalar_select %p174, %s175, %s176
    %p180 = pneg %p174
    %p181 = scmp.eq.s32.totalorder %s13, 1
    %p182 = por %p180, %p181
    %p183 = scmp.ne.s32.totalorder %s175, %s178
    %p184 = scmp.eq.s32.totalorder %s13, 0
    %p185 = por %p183, %p184
    %p186 = scmp.ne.s32.totalorder %s175, %s178
    %p187 = scmp.eq.s32.totalorder %s18, 1
    %p188 = por %p186, %p187
    %p189 = scmp.ne.s32.totalorder %s178, %s179
    %p190 = scmp.eq.s32.totalorder %s18, 0
    %p191 = por %p189, %p190
    %p192 = scmp.ne.s32.totalorder %s178, %s179
    %p193 = scmp.eq.s32.totalorder %s19, 1
    %p194 = por %p192, %p193
    %p196 = scmp.ne.s32.totalorder %s179, %s195
    %p197 = scmp.eq.s32.totalorder %s19, 0
    %p198 = por %p196, %p197
    %p199 = scmp.le.s32.totalorder 1, %s13
    %p200 = scmp.lt.s32.totalorder %s13, 3
    %p201 = pnand %p199, %p200
    %p202 = pneg %p201
    // Predicated region
    $region9: #{srcnn_forward.1} parent=5 // pred_check
      _
    $region10: #{srcnn_forward.1} parent=5 // pred_check_branch
      %204 = sbr.rel (%p201) target = $region12
    $region11: #{srcnn_forward.1} parent=5 // pred_region
      %s205 = ssub.s32 %s13, 1
      // Predicated region
      $region13: #{srcnn_forward.1} parent=11 // pred_check
        %p206 = pneg %p60
      $region14: #{srcnn_forward.1} parent=11 // pred_check_branch
        %208 = sbr.rel (%p206) target = $region16
      $region15: #{srcnn_forward.1} parent=11 // pred_region
        _
      $region16: #{srcnn_forward.1} parent=11 // pred_fallthru
        _
      // Predicated region
      $region17: #{srcnn_forward.1} parent=11 // pred_check
        %p209 = pneg %p81
      $region18: #{srcnn_forward.1} parent=11 // pred_check_branch
        %211 = sbr.rel (%p209) target = $region20
      $region19: #{srcnn_forward.1} parent=11 // pred_region
        _
      $region20: #{srcnn_forward.1} parent=11 // pred_fallthru
        _
      // Predicated region
      $region21: #{srcnn_forward.1} parent=11 // pred_check
        %p212 = pneg %p102
      $region22: #{srcnn_forward.1} parent=11 // pred_check_branch
        %214 = sbr.rel (%p212) target = $region24
      $region23: #{srcnn_forward.1} parent=11 // pred_region
        _
      $region24: #{srcnn_forward.1} parent=11 // pred_fallthru
        _
      // Predicated region
      $region25: #{srcnn_forward.1} parent=11 // pred_check
        %p215 = pneg %p123
      $region26: #{srcnn_forward.1} parent=11 // pred_check_branch
        %217 = sbr.rel (%p215) target = $region28
      $region27: #{srcnn_forward.1} parent=11 // pred_region
        _
      $region28: #{srcnn_forward.1} parent=11 // pred_fallthru
        _
      // Predicated region
      $region29: #{srcnn_forward.1} parent=11 // pred_check
        %p218 = pneg %p144
      $region30: #{srcnn_forward.1} parent=11 // pred_check_branch
        %220 = sbr.rel (%p218) target = $region32
      $region31: #{srcnn_forward.1} parent=11 // pred_region
        _
      $region32: #{srcnn_forward.1} parent=11 // pred_fallthru
        _
      // Predicated region
      $region33: #{srcnn_forward.1} parent=11 // pred_check
        %p221 = pneg %p165
      $region34: #{srcnn_forward.1} parent=11 // pred_check_branch
        %223 = sbr.rel (%p221) target = $region36
      $region35: #{srcnn_forward.1} parent=11 // pred_region
        _
      $region36: #{srcnn_forward.1} parent=11 // pred_fallthru
        _
    $region12: #{srcnn_forward.1} parent=5 // pred_fallthru
      _
    %p224 = scmp.lt.s32.totalorder %s13, 2
    // Predicated region
    $region37: #{srcnn_forward.1} parent=5 // pred_check
      %p225 = pneg %p224
    $region38: #{srcnn_forward.1} parent=5 // pred_check_branch
      %227 = sbr.rel (%p225) target = $region40
    $region39: #{srcnn_forward.1} parent=5 // pred_region
      // Predicated region
      $region41: #{srcnn_forward.1} parent=39 // pred_check
        %p228 = pneg %p33
      $region42: #{srcnn_forward.1} parent=39 // pred_check_branch
        %230 = sbr.rel (%p228) target = $region44
      $region43: #{srcnn_forward.1} parent=39 // pred_region
        %s231 = smul.u32 4, %s13
        %p232 = scmp.lt.s32.totalorder %s231, 7
        %s233 = scalar_select %p232, %s231, 7
        %s234 = smul.addr %s233, 4
        %s235 = scalar_lea.vmem %s0, %s234
        %s236 = smul.u32 4, %s13
      $region44: #{srcnn_forward.1} parent=39 // pred_fallthru
        _
    $region40: #{srcnn_forward.1} parent=5 // pred_fallthru
      _
    %p237 = scmp.le.s32.totalorder 1, %s13
    %p238 = scmp.lt.s32.totalorder %s13, 3
    %p239 = pnand %p237, %p238
    %p240 = pneg %p239
    // Predicated region
    $region45: #{srcnn_forward.1} parent=5 // pred_check
      _
    $region46: #{srcnn_forward.1} parent=5 // pred_check_branch
      %242 = sbr.rel (%p239) target = $region48
    $region47: #{srcnn_forward.1} parent=5 // pred_region
      %s243 = ssub.s32 %s13, 1
      %s244 = smul.u32 4, %s18
      %p245 = scmp.lt.s32.totalorder %s244, 7
      %s246 = scalar_select %p245, %s244, 7
      %s247 = smul.addr %s246, 4
      %s248 = scalar_lea.vmem %s0, %s247
      %p249 = pneg %p39
      %p250 = pneg %p36
      %p251 = pneg %p60
      %p252 = pneg %p57
      %p253 = pneg %p81
      %p254 = pneg %p78
      %p255 = pneg %p102
      %p256 = pneg %p99
      %p257 = pneg %p123
      %p258 = pneg %p120
      %p259 = pneg %p144
      %p260 = pneg %p141
      %p261 = pneg %p165
      %p262 = pneg %p162
      %p263 = pneg %p191
      %p264 = pneg %p188
      %s265 = smul.u32 4, %s18
      %p266 = scmp.lt.s32.totalorder %s265, 7
      %s267 = scalar_select %p266, %s265, 7
      %s268 = smul.addr %s267, 8
      %s269 = scalar_lea.vmem %s7, %s268
      %s270 = smul.u32 4, %s18
      %p271 = scmp.lt.s32.totalorder %s270, 7
      %s272 = scalar_select %p271, %s270, 7
      %s273 = smul.addr %s272, 4
      %s274 = scalar_lea.vmem %s0, %s273
      %s275 = smul.u32 4, %s18
      %s276 = smul.u32 4, %s18
      %p277 = scmp.lt.s32.totalorder %s276, 7
      %s278 = scalar_select %p277, %s276, 7
      %s279 = smul.addr %s278, 8
      %s280 = scalar_lea.vmem %s7, %s279
      %s281 = smul.u32 4, %s18
      %v283 = vld [vmem:[%s274] sm:$0xf]
      %v284 = vld [vmem:[%s274 + $0x4] sm:$0xf]
      %v285 = vld [vmem:[%s274 + $0x8] sm:$0xf]
      %v286 = vld [vmem:[%s274 + $0xc] sm:$0xf]
      %vm287 = vcmask 254976
      %288 = vst.msk [vmem:[#allocation2] sm:$0x3] %vm287, 0
      %vm289 = vcmask 257026
      %290 = vst.msk [vmem:[#allocation2 + $0x10] sm:$0xc] %vm289, 0
      %vm295 = vcmask 1041408
      %vm296 = vcmask 1045508
      %vm297 = vmor %vm295, %vm296
      %v298 = vrot.slane %v283, 6
      %v299 = vrot.slane %v298, 4
      %v300 = vrot.slane %v284, 6
      %v301 = vsel %vm297, %v299, %v300
      %v302 = vrot.slane %v300, 4
      %v303 = vrot.slane %v285, 6
      %v304 = vsel %vm297, %v302, %v303
      %v305 = vrot.slane %v303, 4
      %v306 = vrot.slane %v286, 6
      %v307 = vsel %vm297, %v305, %v306
      %v308 = vrot.slane %v306, 4
      %314 = vst.msk [vmem:[#allocation2] sm:$0xc] %vm289, %v298
      %vm315 = vcmask 257024
      %316 = vst.msk [vmem:[#allocation2 + $0x4] sm:$0xf] %vm315, %v301
      %317 = vst.msk [vmem:[#allocation2 + $0x8] sm:$0xf] %vm315, %v304
      %318 = vst.msk [vmem:[#allocation2 + $0xc] sm:$0xf] %vm315, %v307
      %319 = vst.msk [vmem:[#allocation2 + $0x10] sm:$0x3] %vm287, %v308
      %v320 = vld [vmem:[#allocation2] sm:$0xf]
      %v321 = vld [vmem:[#allocation2 + $0x4] sm:$0xf]
      %v322 = vld [vmem:[#allocation2 + $0x8] sm:$0xf]
      %v323 = vld [vmem:[#allocation2 + $0xc] sm:$0xf]
      %324 = vst.msk [vmem:[#allocation3] sm:$0xf] %vm315, %v320
      %325 = vst.msk [vmem:[#allocation3 + $0xc] sm:$0xf] %vm315, %v321
      %326 = vst.msk [vmem:[#allocation3 + $0x18] sm:$0xf] %vm315, %v322
      %327 = vst.msk [vmem:[#allocation3 + $0x24] sm:$0xf] %vm315, %v323
      %v328 = vld [vmem:[#allocation2] sm:$0xf]
      %v329 = vld [vmem:[#allocation2 + $0x4] sm:$0xf]
      %v330 = vld [vmem:[#allocation2 + $0x8] sm:$0xf]
      %v331 = vld [vmem:[#allocation2 + $0xc] sm:$0xf]
      %v332 = vld [vmem:[#allocation2 + $0x10] sm:$0x1]
      %vm333 = vsmask.f32 3328
      %vm334 = vsmask.f32 7440
      %vm335 = vmor %vm333, %vm334
      %v337 = vshrl.u32 %v328, 16
      %v339 = vrot.slane %v337, 4
      %v340 = vshll.u32 %v328, 16
      %v342 = vrot.slane %v340, 5
      %v343 = vor.u32 %v339, %v342
      %v344 = vrot.slane %v343, 4
      %v346 = vshll.u32 %v329, 16
      %v348 = vrot.slane %v346, 5
      %v349 = vsel %vm335, %v344, %v348
      %v350 = vshrl.u32 %v329, 16
      %v352 = vrot.slane %v350, 4
      %v353 = vor.u32 %v352, %v348
      %v354 = vrot.slane %v353, 4
      %v356 = vshll.u32 %v330, 16
      %v358 = vrot.slane %v356, 5
      %v359 = vsel %vm335, %v354, %v358
      %v360 = vshrl.u32 %v330, 16
      %v362 = vrot.slane %v360, 4
      %v363 = vor.u32 %v362, %v358
      %v364 = vrot.slane %v363, 4
      %v366 = vshll.u32 %v331, 16
      %v368 = vrot.slane %v366, 5
      %v369 = vsel %vm335, %v364, %v368
      %v370 = vshrl.u32 %v331, 16
      %v372 = vrot.slane %v370, 4
      %v373 = vor.u32 %v372, %v368
      %v374 = vrot.slane %v373, 4
      %v376 = vshll.u32 %v332, 16
      %v378 = vrot.slane %v376, 5
      %v379 = vsel %vm335, %v374, %v378
      %380 = vrot.lane.b32.xlu0 %v349, 32
      %v381 = vpop.permute.xlu0 %380
      %382 = vrot.lane.b32.xlu0 %v359, 32
      %v383 = vpop.permute.xlu0 %382
      %384 = vrot.lane.b32.xlu0 %v369, 32
      %v385 = vpop.permute.xlu0 %384
      %386 = vrot.lane.b32.xlu0 %v379, 32
      %v387 = vpop.permute.xlu0 %386
      %vm392 = vcmask 519424
      %393 = vst.msk [vmem:[#allocation3] sm:$0xf] %vm392, %v381
      %394 = vst.msk [vmem:[#allocation3 + $0xc] sm:$0xf] %vm392, %v383
      %395 = vst.msk [vmem:[#allocation3 + $0x18] sm:$0xf] %vm392, %v385
      %396 = vst.msk [vmem:[#allocation3 + $0x24] sm:$0xf] %vm392, %v387
      %v397 = vld [vmem:[#allocation2] sm:$0xe]
      %v398 = vld [vmem:[#allocation2 + $0x4] sm:$0xf]
      %v399 = vld [vmem:[#allocation2 + $0x8] sm:$0xf]
      %v400 = vld [vmem:[#allocation2 + $0xc] sm:$0xf]
      %v401 = vld [vmem:[#allocation2 + $0x10] sm:$0x1]
      %vm407 = vcmask 1042432
      %vm408 = vcmask 1046532
      %vm409 = vmor %vm407, %vm408
      %v410 = vrot.slane %v397, 5
      %v411 = vrot.slane %v410, 4
      %v412 = vrot.slane %v398, 5
      %v413 = vsel %vm409, %v411, %v412
      %v414 = vrot.slane %v412, 4
      %v415 = vrot.slane %v399, 5
      %v416 = vsel %vm409, %v414, %v415
      %v417 = vrot.slane %v415, 4
      %v418 = vrot.slane %v400, 5
      %v419 = vsel %vm409, %v417, %v418
      %v420 = vrot.slane %v418, 4
      %v421 = vrot.slane %v401, 5
      %v422 = vsel %vm409, %v420, %v421
      %423 = vrot.lane.b32.xlu0 %v413, 64
      %v424 = vpop.permute.xlu0 %423
      %425 = vrot.lane.b32.xlu0 %v416, 64
      %v426 = vpop.permute.xlu0 %425
      %427 = vrot.lane.b32.xlu0 %v419, 64
      %v428 = vpop.permute.xlu0 %427
      %429 = vrot.lane.b32.xlu0 %v422, 64
      %v430 = vpop.permute.xlu0 %429
      %vm435 = vcmask 781824
      %436 = vst.msk [vmem:[#allocation3] sm:$0xf] %vm435, %v424
      %437 = vst.msk [vmem:[#allocation3 + $0xc] sm:$0xf] %vm435, %v426
      %438 = vst.msk [vmem:[#allocation3 + $0x18] sm:$0xf] %vm435, %v428
      %439 = vst.msk [vmem:[#allocation3 + $0x24] sm:$0xf] %vm435, %v430
      %v440 = vld [vmem:[#allocation2] sm:$0xe]
      %v441 = vld [vmem:[#allocation2 + $0x4] sm:$0xf]
      %v442 = vld [vmem:[#allocation2 + $0x8] sm:$0xf]
      %v443 = vld [vmem:[#allocation2 + $0xc] sm:$0xf]
      %v444 = vld [vmem:[#allocation2 + $0x10] sm:$0x3]
      %vm445 = vsmask.f32 2304
      %vm446 = vsmask.f32 6416
      %vm447 = vmor %vm445, %vm446
      %v449 = vshrl.u32 %v440, 16
      %v451 = vrot.slane %v449, 5
      %v452 = vshll.u32 %v440, 16
      %v454 = vrot.slane %v452, 6
      %v455 = vor.u32 %v451, %v454
      %v456 = vrot.slane %v455, 4
      %v458 = vshrl.u32 %v441, 16
      %v460 = vrot.slane %v458, 5
      %v461 = vshll.u32 %v441, 16
      %v463 = vrot.slane %v461, 6
      %v464 = vor.u32 %v460, %v463
      %v465 = vsel %vm447, %v456, %v464
      %v466 = vrot.slane %v464, 4
      %v468 = vshrl.u32 %v442, 16
      %v470 = vrot.slane %v468, 5
      %v471 = vshll.u32 %v442, 16
      %v473 = vrot.slane %v471, 6
      %v474 = vor.u32 %v470, %v473
      %v475 = vsel %vm447, %v466, %v474
      %v476 = vrot.slane %v474, 4
      %v478 = vshrl.u32 %v443, 16
      %v480 = vrot.slane %v478, 5
      %v481 = vshll.u32 %v443, 16
      %v483 = vrot.slane %v481, 6
      %v484 = vor.u32 %v480, %v483
      %v485 = vsel %vm447, %v476, %v484
      %v486 = vrot.slane %v484, 4
      %v488 = vshrl.u32 %v444, 16
      %v490 = vrot.slane %v488, 5
      %v491 = vshll.u32 %v444, 16
      %v493 = vrot.slane %v491, 6
      %v494 = vor.u32 %v490, %v493
      %v495 = vsel %vm447, %v486, %v494
      %496 = vrot.lane.b32.xlu0 %v465, 96
      %v497 = vpop.permute.xlu0 %496
      %498 = vrot.lane.b32.xlu0 %v475, 96
      %v499 = vpop.permute.xlu0 %498
      %500 = vrot.lane.b32.xlu0 %v485, 96
      %v501 = vpop.permute.xlu0 %500
      %502 = vrot.lane.b32.xlu0 %v495, 96
      %v503 = vpop.permute.xlu0 %502
      %vm508 = vcmask 1044224
      %509 = vst.msk [vmem:[#allocation3] sm:$0xf] %vm508, %v497
      %510 = vst.msk [vmem:[#allocation3 + $0xc] sm:$0xf] %vm508, %v499
      %511 = vst.msk [vmem:[#allocation3 + $0x18] sm:$0xf] %vm508, %v501
      %512 = vst.msk [vmem:[#allocation3 + $0x24] sm:$0xf] %vm508, %v503
      %v513 = vld [vmem:[#allocation2] sm:$0xc]
      %v514 = vld [vmem:[#allocation2 + $0x4] sm:$0xf]
      %v515 = vld [vmem:[#allocation2 + $0x8] sm:$0xf]
      %v516 = vld [vmem:[#allocation2 + $0xc] sm:$0xf]
      %v517 = vld [vmem:[#allocation2 + $0x10] sm:$0x3]
      %v523 = vrot.slane %v513, 6
      %v524 = vrot.slane %v523, 4
      %v525 = vrot.slane %v514, 6
      %v526 = vsel %vm297, %v524, %v525
      %v527 = vrot.slane %v525, 4
      %v528 = vrot.slane %v515, 6
      %v529 = vsel %vm297, %v527, %v528
      %v530 = vrot.slane %v528, 4
      %v531 = vrot.slane %v516, 6
      %v532 = vsel %vm297, %v530, %v531
      %v533 = vrot.slane %v531, 4
      %v534 = vrot.slane %v517, 6
      %v535 = vsel %vm297, %v533, %v534
      %540 = vst.msk [vmem:[#allocation3 + $0x4] sm:$0xf] %vm315, %v526
      %541 = vst.msk [vmem:[#allocation3 + $0x10] sm:$0xf] %vm315, %v529
      %542 = vst.msk [vmem:[#allocation3 + $0x1c] sm:$0xf] %vm315, %v532
      %543 = vst.msk [vmem:[#allocation3 + $0x28] sm:$0xf] %vm315, %v535
      %v544 = vld [vmem:[#allocation2] sm:$0xc]
      %v545 = vld [vmem:[#allocation2 + $0x4] sm:$0xf]
      %v546 = vld [vmem:[#allocation2 + $0x8] sm:$0xf]
      %v547 = vld [vmem:[#allocation2 + $0xc] sm:$0xf]
      %v548 = vld [vmem:[#allocation2 + $0x10] sm:$0x7]
      %vm549 = vsmask.f32 1280
      %vm550 = vsmask.f32 5392
      %vm551 = vmor %vm549, %vm550
      %v553 = vshrl.u32 %v544, 16
      %v555 = vrot.slane %v553, 6
      %v556 = vshll.u32 %v544, 16
      %v558 = vrot.slane %v556, 7
      %v559 = vor.u32 %v555, %v558
      %v560 = vrot.slane %v559, 4
      %v562 = vshrl.u32 %v545, 16
      %v564 = vrot.slane %v562, 6
      %v565 = vshll.u32 %v545, 16
      %v567 = vrot.slane %v565, 7
      %v568 = vor.u32 %v564, %v567
      %v569 = vsel %vm551, %v560, %v568
      %v570 = vrot.slane %v568, 4
      %v572 = vshrl.u32 %v546, 16
      %v574 = vrot.slane %v572, 6
      %v575 = vshll.u32 %v546, 16
      %v577 = vrot.slane %v575, 7
      %v578 = vor.u32 %v574, %v577
      %v579 = vsel %vm551, %v570, %v578
      %v580 = vrot.slane %v578, 4
      %v582 = vshrl.u32 %v547, 16
      %v584 = vrot.slane %v582, 6
      %v585 = vshll.u32 %v547, 16
      %v587 = vrot.slane %v585, 7
      %v588 = vor.u32 %v584, %v587
      %v589 = vsel %vm551, %v580, %v588
      %v590 = vrot.slane %v588, 4
      %v592 = vshrl.u32 %v548, 16
      %v594 = vrot.slane %v592, 6
      %v595 = vshll.u32 %v548, 16
      %v597 = vrot.slane %v595, 7
      %v598 = vor.u32 %v594, %v597
      %v599 = vsel %vm551, %v590, %v598
      %600 = vrot.lane.b32.xlu0 %v569, 32
      %v601 = vpop.permute.xlu0 %600
      %602 = vrot.lane.b32.xlu0 %v579, 32
      %v603 = vpop.permute.xlu0 %602
      %604 = vrot.lane.b32.xlu0 %v589, 32
      %v605 = vpop.permute.xlu0 %604
      %606 = vrot.lane.b32.xlu0 %v599, 32
      %v607 = vpop.permute.xlu0 %606
      %612 = vst.msk [vmem:[#allocation3 + $0x4] sm:$0xf] %vm392, %v601
      %613 = vst.msk [vmem:[#allocation3 + $0x10] sm:$0xf] %vm392, %v603
      %614 = vst.msk [vmem:[#allocation3 + $0x1c] sm:$0xf] %vm392, %v605
      %615 = vst.msk [vmem:[#allocation3 + $0x28] sm:$0xf] %vm392, %v607
      %v616 = vld [vmem:[#allocation2] sm:$0x8]
      %v617 = vld [vmem:[#allocation2 + $0x4] sm:$0xf]
      %v618 = vld [vmem:[#allocation2 + $0x8] sm:$0xf]
      %v619 = vld [vmem:[#allocation2 + $0xc] sm:$0xf]
      %v620 = vld [vmem:[#allocation2 + $0x10] sm:$0x7]
      %vm626 = vcmask 1040384
      %vm627 = vcmask 1044484
      %vm628 = vmor %vm626, %vm627
      %v629 = vrot.slane %v616, 7
      %v630 = vrot.slane %v629, 4
      %v631 = vrot.slane %v617, 7
      %v632 = vsel %vm628, %v630, %v631
      %v633 = vrot.slane %v631, 4
      %v634 = vrot.slane %v618, 7
      %v635 = vsel %vm628, %v633, %v634
      %v636 = vrot.slane %v634, 4
      %v637 = vrot.slane %v619, 7
      %v638 = vsel %vm628, %v636, %v637
      %v639 = vrot.slane %v637, 4
      %v640 = vrot.slane %v620, 7
      %v641 = vsel %vm628, %v639, %v640
      %642 = vrot.lane.b32.xlu0 %v632, 64
      %v643 = vpop.permute.xlu0 %642
      %644 = vrot.lane.b32.xlu0 %v635, 64
      %v645 = vpop.permute.xlu0 %644
      %646 = vrot.lane.b32.xlu0 %v638, 64
      %v647 = vpop.permute.xlu0 %646
      %648 = vrot.lane.b32.xlu0 %v641, 64
      %v649 = vpop.permute.xlu0 %648
      %654 = vst.msk [vmem:[#allocation3 + $0x4] sm:$0xf] %vm435, %v643
      %655 = vst.msk [vmem:[#allocation3 + $0x10] sm:$0xf] %vm435, %v645
      %656 = vst.msk [vmem:[#allocation3 + $0x1c] sm:$0xf] %vm435, %v647
      %657 = vst.msk [vmem:[#allocation3 + $0x28] sm:$0xf] %vm435, %v649
      %v658 = vld [vmem:[#allocation2] sm:$0x8]
      %v659 = vld [vmem:[#allocation2 + $0x4] sm:$0xf]
      %v660 = vld [vmem:[#allocation2 + $0x8] sm:$0xf]
      %v661 = vld [vmem:[#allocation2 + $0xc] sm:$0xf]
      %v662 = vld [vmem:[#allocation2 + $0x10] sm:$0xf]
      %vm663 = vsmask.f32 256
      %vm664 = vsmask.f32 4368
      %vm665 = vmor %vm663, %vm664
      %v667 = vshrl.u32 %v658, 16
      %v669 = vrot.slane %v667, 7
      %v670 = vrot.slane %v669, 4
      %v672 = vshrl.u32 %v659, 16
      %v674 = vrot.slane %v672, 7
      %v675 = vshll.u32 %v659, 16
      %v677 = vor.u32 %v674, %v675
      %v678 = vsel %vm665, %v670, %v677
      %v679 = vrot.slane %v674, 4
      %v681 = vshrl.u32 %v660, 16
      %v683 = vrot.slane %v681, 7
      %v684 = vshll.u32 %v660, 16
      %v686 = vor.u32 %v683, %v684
      %v687 = vsel %vm665, %v679, %v686
      %v688 = vrot.slane %v683, 4
      %v690 = vshrl.u32 %v661, 16
      %v692 = vrot.slane %v690, 7
      %v693 = vshll.u32 %v661, 16
      %v695 = vor.u32 %v692, %v693
      %v696 = vsel %vm665, %v688, %v695
      %v697 = vrot.slane %v692, 4
      %v699 = vshrl.u32 %v662, 16
      %v701 = vrot.slane %v699, 7
      %v702 = vshll.u32 %v662, 16
      %v704 = vor.u32 %v701, %v702
      %v705 = vsel %vm665, %v697, %v704
      %706 = vrot.lane.b32.xlu0 %v678, 96
      %v707 = vpop.permute.xlu0 %706
      %708 = vrot.lane.b32.xlu0 %v687, 96
      %v709 = vpop.permute.xlu0 %708
      %710 = vrot.lane.b32.xlu0 %v696, 96
      %v711 = vpop.permute.xlu0 %710
      %712 = vrot.lane.b32.xlu0 %v705, 96
      %v713 = vpop.permute.xlu0 %712
      %718 = vst.msk [vmem:[#allocation3 + $0x4] sm:$0xf] %vm508, %v707
      %719 = vst.msk [vmem:[#allocation3 + $0x10] sm:$0xf] %vm508, %v709
      %720 = vst.msk [vmem:[#allocation3 + $0x1c] sm:$0xf] %vm508, %v711
      %721 = vst.msk [vmem:[#allocation3 + $0x28] sm:$0xf] %vm508, %v713
      %v722 = vld [vmem:[#allocation2 + $0x4] sm:$0xf]
      %v723 = vld [vmem:[#allocation2 + $0x8] sm:$0xf]
      %v724 = vld [vmem:[#allocation2 + $0xc] sm:$0xf]
      %v725 = vld [vmem:[#allocation2 + $0x10] sm:$0xf]
      %726 = vst.msk [vmem:[#allocation3 + $0x8] sm:$0xf] %vm315, %v722
      %727 = vst.msk [vmem:[#allocation3 + $0x14] sm:$0xf] %vm315, %v723
      %728 = vst.msk [vmem:[#allocation3 + $0x20] sm:$0xf] %vm315, %v724
      %729 = vst.msk [vmem:[#allocation3 + $0x2c] sm:$0xf] %vm315, %v725
      %730 = vst.msk [vmem:[#allocation3 + $0xc] sm:$0x3] %vm287, 0
      %731 = vst.msk [vmem:[#allocation3 + $0x18] sm:$0x3] %vm287, 0
      %732 = vst.msk [vmem:[#allocation3 + $0x24] sm:$0x3] %vm287, 0
      %vm733 = vcmask 517376
      %vm734 = vmand %vm733, %vm549
      %v735 = vld [vmem:[#allocation3 + $0xc] sm:$0x3]
      %v736 = vsel %vm734, 0, %v735
      %737 = vst [vmem:[#allocation3 + $0xc] sm:$0x3] %v736
      %v738 = vld [vmem:[#allocation3 + $0x18] sm:$0x3]
      %v739 = vsel %vm734, 0, %v738
      %740 = vst [vmem:[#allocation3 + $0x18] sm:$0x3] %v739
      %v741 = vld [vmem:[#allocation3 + $0x24] sm:$0x3]
      %v742 = vsel %vm734, 0, %v741
      %743 = vst [vmem:[#allocation3 + $0x24] sm:$0x3] %v742
      %vm744 = vcmask 778752
      %745 = vst.msk [vmem:[#allocation3 + $0xc] sm:$0x1] %vm744, 0
      %746 = vst.msk [vmem:[#allocation3 + $0x18] sm:$0x1] %vm744, 0
      %747 = vst.msk [vmem:[#allocation3 + $0x24] sm:$0x1] %vm744, 0
      %vm748 = vcmask 1041152
      %vm749 = vmand %vm748, %vm663
      %v750 = vld [vmem:[#allocation3 + $0xc] sm:$0x1]
      %v751 = vsel %vm749, 0, %v750
      %752 = vst [vmem:[#allocation3 + $0xc] sm:$0x1] %v751
      %v753 = vld [vmem:[#allocation3 + $0x18] sm:$0x1]
      %v754 = vsel %vm749, 0, %v753
      %755 = vst [vmem:[#allocation3 + $0x18] sm:$0x1] %v754
      %v756 = vld [vmem:[#allocation3 + $0x24] sm:$0x1]
      %v757 = vsel %vm749, 0, %v756
      %758 = vst [vmem:[#allocation3 + $0x24] sm:$0x1] %v757
      %vm759 = vcmask 519427
      %vm760 = vsmask.f32 7950
      %vm761 = vmand %vm759, %vm760
      %v762 = vld [vmem:[#allocation3 + $0x4] sm:$0x8]
      %v763 = vsel %vm761, 0, %v762
      %764 = vst [vmem:[#allocation3 + $0x4] sm:$0x8] %v763
      %v765 = vld [vmem:[#allocation3 + $0x10] sm:$0x8]
      %v766 = vsel %vm761, 0, %v765
      %767 = vst [vmem:[#allocation3 + $0x10] sm:$0x8] %v766
      %v768 = vld [vmem:[#allocation3 + $0x1c] sm:$0x8]
      %v769 = vsel %vm761, 0, %v768
      %770 = vst [vmem:[#allocation3 + $0x1c] sm:$0x8] %v769
      %vm771 = vcmask 781827
      %772 = vst.msk [vmem:[#allocation3 + $0x4] sm:$0x8] %vm771, 0
      %773 = vst.msk [vmem:[#allocation3 + $0x10] sm:$0x8] %vm771, 0
      %774 = vst.msk [vmem:[#allocation3 + $0x1c] sm:$0x8] %vm771, 0
      %vm775 = vcmask 1044226
      %vm776 = vsmask.f32 7946
      %vm777 = vmand %vm775, %vm776
      %v778 = vld [vmem:[#allocation3 + $0x4] sm:$0xc]
      %v779 = vsel %vm777, 0, %v778
      %780 = vst [vmem:[#allocation3 + $0x4] sm:$0xc] %v779
      %v781 = vld [vmem:[#allocation3 + $0x10] sm:$0xc]
      %v782 = vsel %vm777, 0, %v781
      %783 = vst [vmem:[#allocation3 + $0x10] sm:$0xc] %v782
      %v784 = vld [vmem:[#allocation3 + $0x1c] sm:$0xc]
      %v785 = vsel %vm777, 0, %v784
      %786 = vst [vmem:[#allocation3 + $0x1c] sm:$0xc] %v785
      %787 = vst.msk [vmem:[#allocation3 + $0x8] sm:$0xc] %vm289, 0
      %788 = vst.msk [vmem:[#allocation3 + $0x14] sm:$0xc] %vm289, 0
      %789 = vst.msk [vmem:[#allocation3 + $0x20] sm:$0xc] %vm289, 0
      %v790 = vld [vmem:[#allocation3] sm:$0xff]
      %v791 = vld [vmem:[#allocation3 + $0x8] sm:$0xf]
      %v792 = vld [vmem:[#allocation3 + $0xc] sm:$0xff]
      %v793 = vld [vmem:[#allocation3 + $0x14] sm:$0xf]
      %v794 = vld [vmem:[#allocation3 + $0x18] sm:$0xff]
      %v795 = vld [vmem:[#allocation3 + $0x20] sm:$0xf]
      %v796 = vld [vmem:[#allocation3 + $0x24] sm:$0xff]
      %v797 = vld [vmem:[#allocation3 + $0x2c] sm:$0xf]
      %v798 = vld [vmem:[%s1] sm:$0xff]
      %v799 = vld [vmem:[%s1 + $0x8] sm:$0xff]
      %v800 = vld [vmem:[%s1 + $0x10] sm:$0xff]
      %v801 = vld [vmem:[%s1 + $0x18] sm:$0xff]
      %v802 = vld [vmem:[%s1 + $0x20] sm:$0xff]
      %v803 = vld [vmem:[%s1 + $0x28] sm:$0xff]
      %v804 = vld [vmem:[%s1 + $0x30] sm:$0xff]
      %v805 = vld [vmem:[%s1 + $0x38] sm:$0xff]
      %v806 = vld [vmem:[%s1 + $0x40] sm:$0xff]
      %v807 = vld [vmem:[%s1 + $0x48] sm:$0xff]
      %v808 = vld [vmem:[%s1 + $0x50] sm:$0xff]
      %v809 = vld [vmem:[%s1 + $0x58] sm:$0xff]
      %v810 = vld [vmem:[%s1 + $0x60] sm:$0xff]
      %v811 = vld [vmem:[%s1 + $0x68] sm:$0xff]
      %v812 = vld [vmem:[%s1 + $0x70] sm:$0xff]
      %v813 = vld [vmem:[%s1 + $0x78] sm:$0xff]
      %v814 = vld [vmem:[%s1 + $0x80] sm:$0xff]
      %v815 = vld [vmem:[%s1 + $0x88] sm:$0xff]
      %v816 = vld [vmem:[%s1 + $0x90] sm:$0xff]
      %v817 = vld [vmem:[%s1 + $0x98] sm:$0xff]
      %v818 = vld [vmem:[%s1 + $0xa0] sm:$0xff]
      %v819 = vld [vmem:[%s1 + $0xa8] sm:$0xff]
      %v820 = vld [vmem:[%s1 + $0xb0] sm:$0xff]
      %v821 = vld [vmem:[%s1 + $0xb8] sm:$0xff]
      %v822 = vld [vmem:[%s1 + $0xc0] sm:$0xff]
      %v823 = vld [vmem:[%s1 + $0xc8] sm:$0xff]
      %v824 = vld [vmem:[%s1 + $0xd0] sm:$0xff]
      %v825 = vld [vmem:[%s1 + $0xd8] sm:$0xff]
      %v826 = vld [vmem:[%s1 + $0xe0] sm:$0xff]
      %v827 = vld [vmem:[%s1 + $0xe8] sm:$0xff]
      %v828 = vld [vmem:[%s1 + $0xf0] sm:$0xff]
      %v829 = vld [vmem:[%s1 + $0xf8] sm:$0xff]
      %v830 = vld [vmem:[%s1 + $0x100] sm:$0xff]
      %v831 = vld [vmem:[%s1 + $0x108] sm:$0xff]
      %v832 = vld [vmem:[%s1 + $0x110] sm:$0xff]
      %v833 = vld [vmem:[%s1 + $0x118] sm:$0xff]
      %v834 = vld [vmem:[%s1 + $0x120] sm:$0xff]
      %v835 = vld [vmem:[%s1 + $0x128] sm:$0xff]
      %v836 = vld [vmem:[%s1 + $0x130] sm:$0xff]
      %v837 = vld [vmem:[%s1 + $0x138] sm:$0xff]
      %v838 = vld [vmem:[%s1 + $0x140] sm:$0xff]
      %v839 = vld [vmem:[%s1 + $0x148] sm:$0xff]
      %v840 = vld [vmem:[%s1 + $0x150] sm:$0xff]
      %v841 = vld [vmem:[%s1 + $0x158] sm:$0xff]
      %v842 = vld [vmem:[%s1 + $0x160] sm:$0xff]
      %v843 = vld [vmem:[%s1 + $0x168] sm:$0xff]
      %v844 = vld [vmem:[%s1 + $0x170] sm:$0xff]
      %v845 = vld [vmem:[%s1 + $0x178] sm:$0xff]
      %v846 = vld [vmem:[%s1 + $0x180] sm:$0xff]
      %v847 = vld [vmem:[%s1 + $0x188] sm:$0xff]
      %v848 = vld [vmem:[%s1 + $0x190] sm:$0xff]
      %v849 = vld [vmem:[%s1 + $0x198] sm:$0xff]
      %v850 = vld [vmem:[%s1 + $0x1a0] sm:$0xff]
      %v851 = vld [vmem:[%s1 + $0x1a8] sm:$0xff]
      %v852 = vld [vmem:[%s1 + $0x1b0] sm:$0xff]
      %v853 = vld [vmem:[%s1 + $0x1b8] sm:$0xff]
      %v854 = vld [vmem:[%s1 + $0x1c0] sm:$0xff]
      %v855 = vld [vmem:[%s1 + $0x1c8] sm:$0xff]
      %v856 = vld [vmem:[%s1 + $0x1d0] sm:$0xff]
      %v857 = vld [vmem:[%s1 + $0x1d8] sm:$0xff]
      %v858 = vld [vmem:[%s1 + $0x1e0] sm:$0xff]
      %v859 = vld [vmem:[%s1 + $0x1e8] sm:$0xff]
      %v860 = vld [vmem:[%s1 + $0x1f0] sm:$0xff]
      %v861 = vld [vmem:[%s1 + $0x1f8] sm:$0xff]
      %v862 = vld [vmem:[%s1 + $0x200] sm:$0xff]
      %v863 = vld [vmem:[%s1 + $0x208] sm:$0xff]
      %v864 = vld [vmem:[%s1 + $0x210] sm:$0xff]
      %v865 = vld [vmem:[%s1 + $0x218] sm:$0xff]
      %v866 = vld [vmem:[%s1 + $0x220] sm:$0xff]
      %v867 = vld [vmem:[%s1 + $0x228] sm:$0xff]
      %v868 = vld [vmem:[%s1 + $0x230] sm:$0xff]
      %v869 = vld [vmem:[%s1 + $0x238] sm:$0xff]
      %v870 = vld [vmem:[%s2] sm:$0xf]
      %v872 = vlaneseq
      %v873 = vshrl.u32 %v872, 7
      %v874 = vsub.s32 0, %v873
      %v875 = vrot.slane %v870, %v874
      %v876 = vlaneseq
      %v877 = vshrl.u32 %v876, 7
      %v878 = vsub.s32 1, %v877
      %v879 = vrot.slane %v870, %v878
      %v880 = vlaneseq
      %v881 = vshrl.u32 %v880, 7
      %v882 = vsub.s32 2, %v881
      %v883 = vrot.slane %v870, %v882
      %v884 = vlaneseq
      %v885 = vshrl.u32 %v884, 7
      %v886 = vsub.s32 3, %v885
      %v887 = vrot.slane %v870, %v886
      %v900 = vunpack.c.l.b16 %v790
      %v901 = vunpack.c.h.b16 %v790
      %v902 = vunpack.c.l.b16 %v791
      %v903 = vunpack.c.l.b16 %v792
      %v904 = vunpack.c.h.b16 %v792
      %v905 = vunpack.c.l.b16 %v793
      %v906 = vunpack.c.l.b16 %v794
      %v907 = vunpack.c.h.b16 %v794
      %v908 = vunpack.c.l.b16 %v795
      %v909 = vunpack.c.l.b16 %v796
      %v910 = vunpack.c.h.b16 %v796
      %v911 = vunpack.c.l.b16 %v797
      %v912 = vpack.c.b16 %v903, %v900
      %v913 = vpack.c.b16 %v904, %v901
      %v914 = vpack.c.b16 %v905, %v902
      %v915 = vpack.c.b16 %v909, %v906
      %v916 = vpack.c.b16 %v910, %v907
      %v917 = vpack.c.b16 %v911, %v908
      %v994 = vunpack.c.l.b16 %v798
      %v995 = vunpack.c.h.b16 %v798
      %v996 = vunpack.c.l.b16 %v799
      %v997 = vunpack.c.h.b16 %v799
      %v998 = vunpack.c.l.b16 %v800
      %v999 = vunpack.c.h.b16 %v800
      %v1000 = vunpack.c.l.b16 %v801
      %v1001 = vunpack.c.h.b16 %v801
      %v1002 = vunpack.c.l.b16 %v802
      %v1003 = vunpack.c.h.b16 %v802
      %v1004 = vunpack.c.l.b16 %v803
      %v1005 = vunpack.c.h.b16 %v803
      %v1006 = vunpack.c.l.b16 %v804
      %v1007 = vunpack.c.h.b16 %v804
      %v1008 = vunpack.c.l.b16 %v805
      %v1009 = vunpack.c.h.b16 %v805
      %v1010 = vunpack.c.l.b16 %v806
      %v1011 = vunpack.c.h.b16 %v806
      %v1012 = vunpack.c.l.b16 %v807
      %v1013 = vunpack.c.h.b16 %v807
      %v1014 = vunpack.c.l.b16 %v808
      %v1015 = vunpack.c.h.b16 %v808
      %v1016 = vunpack.c.l.b16 %v809
      %v1017 = vunpack.c.h.b16 %v809
      %v1018 = vunpack.c.l.b16 %v810
      %v1019 = vunpack.c.h.b16 %v810
      %v1020 = vunpack.c.l.b16 %v811
      %v1021 = vunpack.c.h.b16 %v811
      %v1022 = vunpack.c.l.b16 %v812
      %v1023 = vunpack.c.h.b16 %v812
      %v1024 = vunpack.c.l.b16 %v813
      %v1025 = vunpack.c.h.b16 %v813
      %v1026 = vunpack.c.l.b16 %v814
      %v1027 = vunpack.c.h.b16 %v814
      %v1028 = vunpack.c.l.b16 %v815
      %v1029 = vunpack.c.h.b16 %v815
      %v1030 = vunpack.c.l.b16 %v816
      %v1031 = vunpack.c.h.b16 %v816
      %v1032 = vunpack.c.l.b16 %v817
      %v1033 = vunpack.c.h.b16 %v817
      %v1034 = vunpack.c.l.b16 %v818
      %v1035 = vunpack.c.h.b16 %v818
      %v1036 = vunpack.c.l.b16 %v819
      %v1037 = vunpack.c.h.b16 %v819
      %v1038 = vunpack.c.l.b16 %v820
      %v1039 = vunpack.c.h.b16 %v820
      %v1040 = vunpack.c.l.b16 %v821
      %v1041 = vunpack.c.h.b16 %v821
      %v1042 = vunpack.c.l.b16 %v822
      %v1043 = vunpack.c.h.b16 %v822
      %v1044 = vunpack.c.l.b16 %v823
      %v1045 = vunpack.c.h.b16 %v823
      %v1046 = vunpack.c.l.b16 %v824
      %v1047 = vunpack.c.h.b16 %v824
      %v1048 = vunpack.c.l.b16 %v825
      %v1049 = vunpack.c.h.b16 %v825
      %v1050 = vunpack.c.l.b16 %v826
      %v1051 = vunpack.c.h.b16 %v826
      %v1052 = vunpack.c.l.b16 %v827
      %v1053 = vunpack.c.h.b16 %v827
      %v1054 = vunpack.c.l.b16 %v828
      %v1055 = vunpack.c.h.b16 %v828
      %v1056 = vunpack.c.l.b16 %v829
      %v1057 = vunpack.c.h.b16 %v829
      %v1058 = vunpack.c.l.b16 %v830
      %v1059 = vunpack.c.h.b16 %v830
      %v1060 = vunpack.c.l.b16 %v831
      %v1061 = vunpack.c.h.b16 %v831
      %v1062 = vunpack.c.l.b16 %v832
      %v1063 = vunpack.c.h.b16 %v832
      %v1064 = vunpack.c.l.b16 %v833
      %v1065 = vunpack.c.h.b16 %v833
      %v1066 = vunpack.c.l.b16 %v834
      %v1067 = vunpack.c.h.b16 %v834
      %v1068 = vunpack.c.l.b16 %v835
      %v1069 = vunpack.c.h.b16 %v835
      %v1070 = vunpack.c.l.b16 %v836
      %v1071 = vunpack.c.h.b16 %v836
      %v1072 = vunpack.c.l.b16 %v837
      %v1073 = vunpack.c.h.b16 %v837
      %v1074 = vunpack.c.l.b16 %v838
      %v1075 = vunpack.c.h.b16 %v838
      %v1076 = vunpack.c.l.b16 %v839
      %v1077 = vunpack.c.h.b16 %v839
      %v1078 = vunpack.c.l.b16 %v840
      %v1079 = vunpack.c.h.b16 %v840
      %v1080 = vunpack.c.l.b16 %v841
      %v1081 = vunpack.c.h.b16 %v841
      %v1082 = vunpack.c.l.b16 %v842
      %v1083 = vunpack.c.h.b16 %v842
      %v1084 = vunpack.c.l.b16 %v843
      %v1085 = vunpack.c.h.b16 %v843
      %v1086 = vunpack.c.l.b16 %v844
      %v1087 = vunpack.c.h.b16 %v844
      %v1088 = vunpack.c.l.b16 %v845
      %v1089 = vunpack.c.h.b16 %v845
      %v1090 = vunpack.c.l.b16 %v846
      %v1091 = vunpack.c.h.b16 %v846
      %v1092 = vunpack.c.l.b16 %v847
      %v1093 = vunpack.c.h.b16 %v847
      %v1094 = vunpack.c.l.b16 %v848
      %v1095 = vunpack.c.h.b16 %v848
      %v1096 = vunpack.c.l.b16 %v849
      %v1097 = vunpack.c.h.b16 %v849
      %v1098 = vunpack.c.l.b16 %v850
      %v1099 = vunpack.c.h.b16 %v850
      %v1100 = vunpack.c.l.b16 %v851
      %v1101 = vunpack.c.h.b16 %v851
      %v1102 = vunpack.c.l.b16 %v852
      %v1103 = vunpack.c.h.b16 %v852
      %v1104 = vunpack.c.l.b16 %v853
      %v1105 = vunpack.c.h.b16 %v853
      %v1106 = vunpack.c.l.b16 %v854
      %v1107 = vunpack.c.h.b16 %v854
      %v1108 = vunpack.c.l.b16 %v855
      %v1109 = vunpack.c.h.b16 %v855
      %v1110 = vunpack.c.l.b16 %v856
      %v1111 = vunpack.c.h.b16 %v856
      %v1112 = vunpack.c.l.b16 %v857
      %v1113 = vunpack.c.h.b16 %v857
      %v1114 = vunpack.c.l.b16 %v858
      %v1115 = vunpack.c.h.b16 %v858
      %v1116 = vunpack.c.l.b16 %v859
      %v1117 = vunpack.c.h.b16 %v859
      %v1118 = vunpack.c.l.b16 %v860
      %v1119 = vunpack.c.h.b16 %v860
      %v1120 = vunpack.c.l.b16 %v861
      %v1121 = vunpack.c.h.b16 %v861
      %v1122 = vunpack.c.l.b16 %v862
      %v1123 = vunpack.c.h.b16 %v862
      %v1124 = vunpack.c.l.b16 %v863
      %v1125 = vunpack.c.h.b16 %v863
      %v1126 = vunpack.c.l.b16 %v864
      %v1127 = vunpack.c.h.b16 %v864
      %v1128 = vunpack.c.l.b16 %v865
      %v1129 = vunpack.c.h.b16 %v865
      %v1130 = vunpack.c.l.b16 %v866
      %v1131 = vunpack.c.h.b16 %v866
      %v1132 = vunpack.c.l.b16 %v867
      %v1133 = vunpack.c.h.b16 %v867
      %v1134 = vunpack.c.l.b16 %v868
      %v1135 = vunpack.c.h.b16 %v868
      %v1136 = vunpack.c.l.b16 %v869
      %v1137 = vunpack.c.h.b16 %v869
      %v1138 = vpack.c.b16 %v998, %v994
      %v1139 = vpack.c.b16 %v999, %v995
      %v1140 = vpack.c.b16 %v1000, %v996
      %v1141 = vpack.c.b16 %v1001, %v997
      %v1142 = vpack.c.b16 %v1006, %v1002
      %v1143 = vpack.c.b16 %v1007, %v1003
      %v1144 = vpack.c.b16 %v1008, %v1004
      %v1145 = vpack.c.b16 %v1009, %v1005
      %v1146 = vpack.c.b16 %v1014, %v1010
      %v1147 = vpack.c.b16 %v1015, %v1011
      %v1148 = vpack.c.b16 %v1016, %v1012
      %v1149 = vpack.c.b16 %v1017, %v1013
      %v1150 = vpack.c.b16 %v1022, %v1018
      %v1151 = vpack.c.b16 %v1023, %v1019
      %v1152 = vpack.c.b16 %v1024, %v1020
      %v1153 = vpack.c.b16 %v1025, %v1021
      %v1154 = vpack.c.b16 %v1030, %v1026
      %v1155 = vpack.c.b16 %v1031, %v1027
      %v1156 = vpack.c.b16 %v1032, %v1028
      %v1157 = vpack.c.b16 %v1033, %v1029
      %v1158 = vpack.c.b16 %v1038, %v1034
      %v1159 = vpack.c.b16 %v1039, %v1035
      %v1160 = vpack.c.b16 %v1040, %v1036
      %v1161 = vpack.c.b16 %v1041, %v1037
      %v1162 = vpack.c.b16 %v1046, %v1042
      %v1163 = vpack.c.b16 %v1047, %v1043
      %v1164 = vpack.c.b16 %v1048, %v1044
      %v1165 = vpack.c.b16 %v1049, %v1045
      %v1166 = vpack.c.b16 %v1054, %v1050
      %v1167 = vpack.c.b16 %v1055, %v1051
      %v1168 = vpack.c.b16 %v1056, %v1052
      %v1169 = vpack.c.b16 %v1057, %v1053
      %v1170 = vpack.c.b16 %v1062, %v1058
      %v1171 = vpack.c.b16 %v1063, %v1059
      %v1172 = vpack.c.b16 %v1064, %v1060
      %v1173 = vpack.c.b16 %v1065, %v1061
      %v1174 = vpack.c.b16 %v1070, %v1066
      %v1175 = vpack.c.b16 %v1071, %v1067
      %v1176 = vpack.c.b16 %v1072, %v1068
      %v1177 = vpack.c.b16 %v1073, %v1069
      %v1178 = vpack.c.b16 %v1078, %v1074
      %v1179 = vpack.c.b16 %v1079, %v1075
      %v1180 = vpack.c.b16 %v1080, %v1076
      %v1181 = vpack.c.b16 %v1081, %v1077
      %v1182 = vpack.c.b16 %v1086, %v1082
      %v1183 = vpack.c.b16 %v1087, %v1083
      %v1184 = vpack.c.b16 %v1088, %v1084
      %v1185 = vpack.c.b16 %v1089, %v1085
      %v1186 = vpack.c.b16 %v1094, %v1090
      %v1187 = vpack.c.b16 %v1095, %v1091
      %v1188 = vpack.c.b16 %v1096, %v1092
      %v1189 = vpack.c.b16 %v1097, %v1093
      %v1190 = vpack.c.b16 %v1102, %v1098
      %v1191 = vpack.c.b16 %v1103, %v1099
      %v1192 = vpack.c.b16 %v1104, %v1100
      %v1193 = vpack.c.b16 %v1105, %v1101
      %v1194 = vpack.c.b16 %v1110, %v1106
      %v1195 = vpack.c.b16 %v1111, %v1107
      %v1196 = vpack.c.b16 %v1112, %v1108
      %v1197 = vpack.c.b16 %v1113, %v1109
      %v1198 = vpack.c.b16 %v1118, %v1114
      %v1199 = vpack.c.b16 %v1119, %v1115
      %v1200 = vpack.c.b16 %v1120, %v1116
      %v1201 = vpack.c.b16 %v1121, %v1117
      %v1202 = vpack.c.b16 %v1126, %v1122
      %v1203 = vpack.c.b16 %v1127, %v1123
      %v1204 = vpack.c.b16 %v1128, %v1124
      %v1205 = vpack.c.b16 %v1129, %v1125
      %v1206 = vpack.c.b16 %v1134, %v1130
      %v1207 = vpack.c.b16 %v1135, %v1131
      %v1208 = vpack.c.b16 %v1136, %v1132
      %v1209 = vpack.c.b16 %v1137, %v1133
      %vm1282 = vcmask 261120
      %v1284 = vsel %vm1282, %v914, 0
      %v1287 = vsel %vm1282, %v917, 0
      %1289 = vmatprep.subr.bf16.mxu0 %v1167
      %1290 = vmatpush1.bf16.msra.mxu0 %v1166
      %1291 = vmatprep.subr.bf16.mxu0 %v1163
      %1292 = vmatpush1.bf16.msra.mxu0 %v1162
      %1293 = vmatprep.subr.bf16.mxu0 %v1159
      %1294 = vmatpush1.bf16.msra.mxu0 %v1158
      %1295 = vmatprep.subr.bf16.mxu0 %v1155
      %1296 = vmatpush1.bf16.msra.mxu0 %v1154
      %1297 = vmatprep.subr.bf16.mxu0 %v1151
      %1298 = vmatpush1.bf16.msra.mxu0 %v1150
      %1299 = vmatprep.subr.bf16.mxu0 %v1147
      %1300 = vmatpush1.bf16.msra.mxu0 %v1146
      %1301 = vmatprep.subr.bf16.mxu0 %v1143
      %1302 = vmatpush1.bf16.msra.mxu0 %v1142
      %1303 = vmatprep.subr.bf16.mxu0 %v1139
      %1304 = vmatpush1.bf16.msra.mxu0 %v1138
      %1305 = vmatprep.subr.bf16.mxu0 %v1199
      %1306 = vmatpush2.bf16.msra.mxu0 %v1198
      %1307 = vmatprep.subr.bf16.mxu0 %v1195
      %1308 = vmatpush2.bf16.msra.mxu0 %v1194
      %1309 = vmatprep.subr.bf16.mxu0 %v1191
      %1310 = vmatpush2.bf16.msra.mxu0 %v1190
      %1311 = vmatprep.subr.bf16.mxu0 %v1187
      %1312 = vmatpush2.bf16.msra.mxu0 %v1186
      %1313 = vmatprep.subr.bf16.mxu0 %v1183
      %1314 = vmatpush2.bf16.msra.mxu0 %v1182
      %1315 = vmatprep.subr.bf16.mxu0 %v1179
      %1316 = vmatpush2.bf16.msra.mxu0 %v1178
      %1317 = vmatprep.subr.bf16.mxu0 %v1175
      %1318 = vmatpush2.bf16.msra.mxu0 %v1174
      %1319 = vmatprep.subr.bf16.mxu0 %v1171
      %1320 = vmatpush2.bf16.msra.mxu0 %v1170
      %1321 = vmatprep.mubr.bf16.mxu0 %v913
      %1322 = vmatmul.mubr.bf16.gmra.mxu0 %v912
      %v1323 = vpop.f32.mrf.mxu0
      %v1324 = vadd.f32 %v875, %v1323
      %v1325 = vpop.f32.mrf.mxu0
      %v1326 = vadd.f32 %v879, %v1325
      %v1327 = vpop.f32.mrf.mxu0
      %v1328 = vadd.f32 %v875, %v1327
      %v1329 = vpop.f32.mrf.mxu0
      %v1330 = vadd.f32 %v879, %v1329
      %1331 = vmatprep.mubr.bf16.mxu0 %v916
      %1332 = vmatmul.mubr.bf16.gmra.mxu0 %v915
      %v1333 = vpop.f32.mrf.mxu0
      %v1334 = vadd.f32 %v875, %v1333
      %v1335 = vpop.f32.mrf.mxu0
      %v1336 = vadd.f32 %v879, %v1335
      %v1337 = vpop.f32.mrf.mxu0
      %v1338 = vadd.f32 %v875, %v1337
      %v1339 = vpop.f32.mrf.mxu0
      %v1340 = vadd.f32 %v879, %v1339
      %1341 = vdwg.mxu0
      %1342 = vmatprep.subr.bf16.mxu0 0
      %1343 = vmatpush1.bf16.msra.mxu0 0
      %1344 = vmatprep.subr.bf16.mxu0 0
      %1345 = vmatpush1.bf16.msra.mxu0 0
      %1346 = vmatprep.subr.bf16.mxu0 0
      %1347 = vmatpush1.bf16.msra.mxu0 0
      %1348 = vmatprep.subr.bf16.mxu0 0
      %1349 = vmatpush1.bf16.msra.mxu0 0
      %1350 = vmatprep.subr.bf16.mxu0 0
      %1351 = vmatpush1.bf16.msra.mxu0 0
      %1352 = vmatprep.subr.bf16.mxu0 0
      %1353 = vmatpush1.bf16.msra.mxu0 0
      %1354 = vmatprep.subr.bf16.mxu0 %v1207
      %1355 = vmatpush1.bf16.msra.mxu0 %v1206
      %1356 = vmatprep.subr.bf16.mxu0 %v1203
      %1357 = vmatpush1.bf16.msra.mxu0 %v1202
      %1358 = vmatprep.subr.bf16.mxu0 0
      %1359 = vmatpush2.bf16.msra.mxu0 0
      %1360 = vmatprep.subr.bf16.mxu0 0
      %1361 = vmatpush2.bf16.msra.mxu0 0
      %1362 = vmatprep.subr.bf16.mxu0 0
      %1363 = vmatpush2.bf16.msra.mxu0 0
      %1364 = vmatprep.subr.bf16.mxu0 0
      %1365 = vmatpush2.bf16.msra.mxu0 0
      %1366 = vmatprep.subr.bf16.mxu0 0
      %1367 = vmatpush2.bf16.msra.mxu0 0
      %1368 = vmatprep.subr.bf16.mxu0 0
      %1369 = vmatpush2.bf16.msra.mxu0 0
      %1370 = vmatprep.subr.bf16.mxu0 0
      %1371 = vmatpush2.bf16.msra.mxu0 0
      %1372 = vmatprep.subr.bf16.mxu0 0
      %1373 = vmatpush2.bf16.msra.mxu0 0
      %1374 = vmatprep.mubr.bf16.mxu0 0
      %1375 = vmatmul.mubr.bf16.gmra.mxu0 %v1284
      %v1376 = vpop.f32.mrf.mxu0
      %v1377 = vadd.f32 %v1324, %v1376
      %v1378 = vpop.f32.mrf.mxu0
      %v1379 = vadd.f32 %v1326, %v1378
      %v1380 = vpop.f32.mrf.mxu0
      %v1381 = vadd.f32 %v1328, %v1380
      %v1382 = vpop.f32.mrf.mxu0
      %v1383 = vadd.f32 %v1330, %v1382
      %1384 = vmatprep.mubr.bf16.mxu0 0
      %1385 = vmatmul.mubr.bf16.gmra.mxu0 %v1287
      %v1386 = vpop.f32.mrf.mxu0
      %v1387 = vadd.f32 %v1334, %v1386
      %v1388 = vpop.f32.mrf.mxu0
      %v1389 = vadd.f32 %v1336, %v1388
      %v1390 = vpop.f32.mrf.mxu0
      %v1391 = vadd.f32 %v1338, %v1390
      %v1392 = vpop.f32.mrf.mxu0
      %v1393 = vadd.f32 %v1340, %v1392
      %1394 = vdwg.mxu0
      %1395 = vmatprep.subr.bf16.mxu0 %v1169
      %1396 = vmatpush1.bf16.msra.mxu0 %v1168
      %1397 = vmatprep.subr.bf16.mxu0 %v1165
      %1398 = vmatpush1.bf16.msra.mxu0 %v1164
      %1399 = vmatprep.subr.bf16.mxu0 %v1161
      %1400 = vmatpush1.bf16.msra.mxu0 %v1160
      %1401 = vmatprep.subr.bf16.mxu0 %v1157
      %1402 = vmatpush1.bf16.msra.mxu0 %v1156
      %1403 = vmatprep.subr.bf16.mxu0 %v1153
      %1404 = vmatpush1.bf16.msra.mxu0 %v1152
      %1405 = vmatprep.subr.bf16.mxu0 %v1149
      %1406 = vmatpush1.bf16.msra.mxu0 %v1148
      %1407 = vmatprep.subr.bf16.mxu0 %v1145
      %1408 = vmatpush1.bf16.msra.mxu0 %v1144
      %1409 = vmatprep.subr.bf16.mxu0 %v1141
      %1410 = vmatpush1.bf16.msra.mxu0 %v1140
      %1411 = vmatprep.subr.bf16.mxu0 %v1201
      %1412 = vmatpush2.bf16.msra.mxu0 %v1200
      %1413 = vmatprep.subr.bf16.mxu0 %v1197
      %1414 = vmatpush2.bf16.msra.mxu0 %v1196
      %1415 = vmatprep.subr.bf16.mxu0 %v1193
      %1416 = vmatpush2.bf16.msra.mxu0 %v1192
      %1417 = vmatprep.subr.bf16.mxu0 %v1189
      %1418 = vmatpush2.bf16.msra.mxu0 %v1188
      %1419 = vmatprep.subr.bf16.mxu0 %v1185
      %1420 = vmatpush2.bf16.msra.mxu0 %v1184
      %1421 = vmatprep.subr.bf16.mxu0 %v1181
      %1422 = vmatpush2.bf16.msra.mxu0 %v1180
      %1423 = vmatprep.subr.bf16.mxu0 %v1177
      %1424 = vmatpush2.bf16.msra.mxu0 %v1176
      %1425 = vmatprep.subr.bf16.mxu0 %v1173
      %1426 = vmatpush2.bf16.msra.mxu0 %v1172
      %1427 = vmatprep.mubr.bf16.mxu0 %v913
      %1428 = vmatmul.mubr.bf16.gmra.mxu0 %v912
      %v1429 = vpop.f32.mrf.mxu0
      %v1430 = vadd.f32 %v883, %v1429
      %v1431 = vpop.f32.mrf.mxu0
      %v1432 = vadd.f32 %v887, %v1431
      %v1433 = vpop.f32.mrf.mxu0
      %v1434 = vadd.f32 %v883, %v1433
      %v1435 = vpop.f32.mrf.mxu0
      %v1436 = vadd.f32 %v887, %v1435
      %1437 = vmatprep.mubr.bf16.mxu0 %v916
      %1438 = vmatmul.mubr.bf16.gmra.mxu0 %v915
      %v1439 = vpop.f32.mrf.mxu0
      %v1440 = vadd.f32 %v883, %v1439
      %v1441 = vpop.f32.mrf.mxu0
      %v1442 = vadd.f32 %v887, %v1441
      %v1443 = vpop.f32.mrf.mxu0
      %v1444 = vadd.f32 %v883, %v1443
      %v1445 = vpop.f32.mrf.mxu0
      %v1446 = vadd.f32 %v887, %v1445
      %1447 = vdwg.mxu0
      %1448 = vmatprep.subr.bf16.mxu0 0
      %1449 = vmatpush1.bf16.msra.mxu0 0
      %1450 = vmatprep.subr.bf16.mxu0 0
      %1451 = vmatpush1.bf16.msra.mxu0 0
      %1452 = vmatprep.subr.bf16.mxu0 0
      %1453 = vmatpush1.bf16.msra.mxu0 0
      %1454 = vmatprep.subr.bf16.mxu0 0
      %1455 = vmatpush1.bf16.msra.mxu0 0
      %1456 = vmatprep.subr.bf16.mxu0 0
      %1457 = vmatpush1.bf16.msra.mxu0 0
      %1458 = vmatprep.subr.bf16.mxu0 0
      %1459 = vmatpush1.bf16.msra.mxu0 0
      %1460 = vmatprep.subr.bf16.mxu0 %v1209
      %1461 = vmatpush1.bf16.msra.mxu0 %v1208
      %1462 = vmatprep.subr.bf16.mxu0 %v1205
      %1463 = vmatpush1.bf16.msra.mxu0 %v1204
      %1464 = vmatprep.subr.bf16.mxu0 0
      %1465 = vmatpush2.bf16.msra.mxu0 0
      %1466 = vmatprep.subr.bf16.mxu0 0
      %1467 = vmatpush2.bf16.msra.mxu0 0
      %1468 = vmatprep.subr.bf16.mxu0 0
      %1469 = vmatpush2.bf16.msra.mxu0 0
      %1470 = vmatprep.subr.bf16.mxu0 0
      %1471 = vmatpush2.bf16.msra.mxu0 0
      %1472 = vmatprep.subr.bf16.mxu0 0
      %1473 = vmatpush2.bf16.msra.mxu0 0
      %1474 = vmatprep.subr.bf16.mxu0 0
      %1475 = vmatpush2.bf16.msra.mxu0 0
      %1476 = vmatprep.subr.bf16.mxu0 0
      %1477 = vmatpush2.bf16.msra.mxu0 0
      %1478 = vmatprep.subr.bf16.mxu0 0
      %1479 = vmatpush2.bf16.msra.mxu0 0
      %1480 = vmatprep.mubr.bf16.mxu0 0
      %1481 = vmatmul.mubr.bf16.gmra.mxu0 %v1284
      %v1482 = vpop.f32.mrf.mxu0
      %v1483 = vadd.f32 %v1430, %v1482
      %v1484 = vpop.f32.mrf.mxu0
      %v1485 = vadd.f32 %v1432, %v1484
      %v1486 = vpop.f32.mrf.mxu0
      %v1487 = vadd.f32 %v1434, %v1486
      %v1488 = vpop.f32.mrf.mxu0
      %v1489 = vadd.f32 %v1436, %v1488
      %1490 = vmatprep.mubr.bf16.mxu0 0
      %1491 = vmatmul.mubr.bf16.gmra.mxu0 %v1287
      %v1492 = vpop.f32.mrf.mxu0
      %v1493 = vadd.f32 %v1440, %v1492
      %v1494 = vpop.f32.mrf.mxu0
      %v1495 = vadd.f32 %v1442, %v1494
      %v1496 = vpop.f32.mrf.mxu0
      %v1497 = vadd.f32 %v1444, %v1496
      %v1498 = vpop.f32.mrf.mxu0
      %v1499 = vadd.f32 %v1446, %v1498
      %1500 = vdwg.mxu0
      %v1501 = vmax.f32 %v1377, 0.0
      %v1502 = vmax.f32 %v1379, 0.0
      %v1503 = vmax.f32 %v1483, 0.0
      %v1504 = vmax.f32 %v1485, 0.0
      %v1505 = vmax.f32 %v1381, 0.0
      %v1506 = vmax.f32 %v1383, 0.0
      %v1507 = vmax.f32 %v1487, 0.0
      %v1508 = vmax.f32 %v1489, 0.0
      %v1509 = vmax.f32 %v1387, 0.0
      %v1510 = vmax.f32 %v1389, 0.0
      %v1511 = vmax.f32 %v1493, 0.0
      %v1512 = vmax.f32 %v1495, 0.0
      %v1513 = vmax.f32 %v1391, 0.0
      %v1514 = vmax.f32 %v1393, 0.0
      %v1515 = vmax.f32 %v1497, 0.0
      %v1516 = vmax.f32 %v1499, 0.0
      %v1517 = vpack.c.bf16 %v1505, %v1501
      %v1518 = vpack.c.bf16 %v1506, %v1502
      %v1519 = vpack.c.bf16 %v1507, %v1503
      %v1520 = vpack.c.bf16 %v1508, %v1504
      %v1521 = vpack.c.bf16 %v1513, %v1509
      %v1522 = vpack.c.bf16 %v1514, %v1510
      %v1523 = vpack.c.bf16 %v1515, %v1511
      %v1524 = vpack.c.bf16 %v1516, %v1512
      %1525 = vst [vmem:[#allocation4] sm:$0x11] 0
      %1526 = vst [vmem:[#allocation4 + $0x8] sm:$0x11] 0
      %1527 = vst [vmem:[#allocation4 + $0x40] sm:$0x22] 0
      %1528 = vst [vmem:[#allocation4 + $0x48] sm:$0x22] 0
      %v1537 = vunpack.c.l.b16 %v1517
      %v1538 = vunpack.c.l.b16 %v1518
      %v1539 = vunpack.c.l.b16 %v1519
      %v1540 = vunpack.c.l.b16 %v1520
      %v1541 = vunpack.c.h.b16 %v1517
      %v1542 = vunpack.c.h.b16 %v1518
      %v1543 = vunpack.c.h.b16 %v1519
      %v1544 = vunpack.c.h.b16 %v1520
      %v1545 = vunpack.c.l.b16 %v1521
      %v1546 = vunpack.c.l.b16 %v1522
      %v1547 = vunpack.c.l.b16 %v1523
      %v1548 = vunpack.c.l.b16 %v1524
      %v1549 = vunpack.c.h.b16 %v1521
      %v1550 = vunpack.c.h.b16 %v1522
      %v1551 = vunpack.c.h.b16 %v1523
      %v1552 = vunpack.c.h.b16 %v1524
      %v1553 = vpack.c.b16 %v1538, %v1537
      %v1554 = vpack.c.b16 %v1540, %v1539
      %v1555 = vpack.c.b16 %v1542, %v1541
      %v1556 = vpack.c.b16 %v1544, %v1543
      %v1557 = vpack.c.b16 %v1546, %v1545
      %v1558 = vpack.c.b16 %v1548, %v1547
      %v1559 = vpack.c.b16 %v1550, %v1549
      %v1560 = vpack.c.b16 %v1552, %v1551
      %v1561 = vrot.slane %v1553, 7
      %v1562 = vrot.slane %v1554, 7
      %v1563 = vrot.slane %v1561, 4
      %v1564 = vrot.slane %v1555, 7
      %v1565 = vsel %vm628, %v1563, %v1564
      %v1566 = vrot.slane %v1562, 4
      %v1567 = vrot.slane %v1556, 7
      %v1568 = vsel %vm628, %v1566, %v1567
      %v1569 = vrot.slane %v1564, 4
      %v1570 = vrot.slane %v1557, 7
      %v1571 = vsel %vm628, %v1569, %v1570
      %v1572 = vrot.slane %v1567, 4
      %v1573 = vrot.slane %v1558, 7
      %v1574 = vsel %vm628, %v1572, %v1573
      %v1575 = vrot.slane %v1570, 4
      %v1576 = vrot.slane %v1559, 7
      %v1577 = vsel %vm628, %v1575, %v1576
      %v1578 = vrot.slane %v1573, 4
      %v1579 = vrot.slane %v1560, 7
      %v1580 = vsel %vm628, %v1578, %v1579
      %v1581 = vrot.slane %v1576, 4
      %v1582 = vrot.slane %v1579, 4
      %1593 = vst [vmem:[#allocation4] sm:$0xee] %v1561
      %1594 = vst [vmem:[#allocation4 + $0x8] sm:$0xee] %v1562
      %1595 = vst [vmem:[#allocation4 + $0x10] sm:$0xff] %v1565
      %1596 = vst [vmem:[#allocation4 + $0x18] sm:$0xff] %v1568
      %1597 = vst [vmem:[#allocation4 + $0x20] sm:$0xff] %v1571
      %1598 = vst [vmem:[#allocation4 + $0x28] sm:$0xff] %v1574
      %1599 = vst [vmem:[#allocation4 + $0x30] sm:$0xff] %v1577
      %1600 = vst [vmem:[#allocation4 + $0x38] sm:$0xff] %v1580
      %1601 = vst [vmem:[#allocation4 + $0x40] sm:$0x11] %v1581
      %1602 = vst [vmem:[#allocation4 + $0x48] sm:$0x11] %v1582
      %v1603 = vld [vmem:[#allocation4] sm:$0xff]
      %v1604 = vld [vmem:[#allocation4 + $0x8] sm:$0xff]
      %v1605 = vld [vmem:[#allocation4 + $0x10] sm:$0xff]
      %v1606 = vld [vmem:[#allocation4 + $0x18] sm:$0xff]
      %v1607 = vld [vmem:[#allocation4 + $0x20] sm:$0xff]
      %v1608 = vld [vmem:[#allocation4 + $0x28] sm:$0xff]
      %v1609 = vld [vmem:[#allocation4 + $0x30] sm:$0xff]
      %v1610 = vld [vmem:[#allocation4 + $0x38] sm:$0xff]
      %1611 = vst [vmem:[#allocation5] sm:$0xff] %v1603
      %1612 = vst [vmem:[#allocation5 + $0x8] sm:$0xff] %v1604
      %1613 = vst [vmem:[#allocation5 + $0x50] sm:$0xff] %v1605
      %1614 = vst [vmem:[#allocation5 + $0x58] sm:$0xff] %v1606
      %1615 = vst [vmem:[#allocation5 + $0xa0] sm:$0xff] %v1607
      %1616 = vst [vmem:[#allocation5 + $0xa8] sm:$0xff] %v1608
      %1617 = vst [vmem:[#allocation5 + $0xf0] sm:$0xff] %v1609
      %1618 = vst [vmem:[#allocation5 + $0xf8] sm:$0xff] %v1610
      %v1619 = vld [vmem:[#allocation4] sm:$0xff]
      %v1620 = vld [vmem:[#allocation4 + $0x8] sm:$0xff]
      %v1621 = vld [vmem:[#allocation4 + $0x10] sm:$0xff]
      %v1622 = vld [vmem:[#allocation4 + $0x18] sm:$0xff]
      %v1623 = vld [vmem:[#allocation4 + $0x20] sm:$0xff]
      %v1624 = vld [vmem:[#allocation4 + $0x28] sm:$0xff]
      %v1625 = vld [vmem:[#allocation4 + $0x30] sm:$0xff]
      %v1626 = vld [vmem:[#allocation4 + $0x38] sm:$0xff]
      %v1627 = vld [vmem:[#allocation4 + $0x40] sm:$0x11]
      %v1628 = vld [vmem:[#allocation4 + $0x48] sm:$0x11]
      %v1630 = vshrl.u32 %v1619, 16
      %v1632 = vrot.slane %v1630, 4
      %v1633 = vshll.u32 %v1619, 16
      %v1635 = vrot.slane %v1633, 5
      %v1636 = vor.u32 %v1632, %v1635
      %v1637 = vrot.slane %v1636, 4
      %v1639 = vshll.u32 %v1621, 16
      %v1641 = vrot.slane %v1639, 5
      %v1642 = vsel %vm335, %v1637, %v1641
      %v1644 = vshrl.u32 %v1620, 16
      %v1646 = vrot.slane %v1644, 4
      %v1647 = vshll.u32 %v1620, 16
      %v1649 = vrot.slane %v1647, 5
      %v1650 = vor.u32 %v1646, %v1649
      %v1651 = vrot.slane %v1650, 4
      %v1653 = vshll.u32 %v1622, 16
      %v1655 = vrot.slane %v1653, 5
      %v1656 = vsel %vm335, %v1651, %v1655
      %v1657 = vshrl.u32 %v1621, 16
      %v1659 = vrot.slane %v1657, 4
      %v1660 = vor.u32 %v1659, %v1641
      %v1661 = vrot.slane %v1660, 4
      %v1663 = vshll.u32 %v1623, 16
      %v1665 = vrot.slane %v1663, 5
      %v1666 = vsel %vm335, %v1661, %v1665
      %v1667 = vshrl.u32 %v1622, 16
      %v1669 = vrot.slane %v1667, 4
      %v1670 = vor.u32 %v1669, %v1655
      %v1671 = vrot.slane %v1670, 4
      %v1673 = vshll.u32 %v1624, 16
      %v1675 = vrot.slane %v1673, 5
      %v1676 = vsel %vm335, %v1671, %v1675
      %v1677 = vshrl.u32 %v1623, 16
      %v1679 = vrot.slane %v1677, 4
      %v1680 = vor.u32 %v1679, %v1665
      %v1681 = vrot.slane %v1680, 4
      %v1683 = vshll.u32 %v1625, 16
      %v1685 = vrot.slane %v1683, 5
      %v1686 = vsel %vm335, %v1681, %v1685
      %v1687 = vshrl.u32 %v1624, 16
      %v1689 = vrot.slane %v1687, 4
      %v1690 = vor.u32 %v1689, %v1675
      %v1691 = vrot.slane %v1690, 4
      %v1693 = vshll.u32 %v1626, 16
      %v1695 = vrot.slane %v1693, 5
      %v1696 = vsel %vm335, %v1691, %v1695
      %v1697 = vshrl.u32 %v1625, 16
      %v1699 = vrot.slane %v1697, 4
      %v1700 = vor.u32 %v1699, %v1685
      %v1701 = vrot.slane %v1700, 4
      %v1703 = vshll.u32 %v1627, 16
      %v1705 = vrot.slane %v1703, 5
      %v1706 = vsel %vm335, %v1701, %v1705
      %v1707 = vshrl.u32 %v1626, 16
      %v1709 = vrot.slane %v1707, 4
      %v1710 = vor.u32 %v1709, %v1695
      %v1711 = vrot.slane %v1710, 4
      %v1713 = vshll.u32 %v1628, 16
      %v1715 = vrot.slane %v1713, 5
      %v1716 = vsel %vm335, %v1711, %v1715
      %1725 = vst [vmem:[#allocation5 + $0x10] sm:$0xff] %v1642
      %1726 = vst [vmem:[#allocation5 + $0x18] sm:$0xff] %v1656
      %1727 = vst [vmem:[#allocation5 + $0x60] sm:$0xff] %v1666
      %1728 = vst [vmem:[#allocation5 + $0x68] sm:$0xff] %v1676
      %1729 = vst [vmem:[#allocation5 + $0xb0] sm:$0xff] %v1686
      %1730 = vst [vmem:[#allocation5 + $0xb8] sm:$0xff] %v1696
      %1731 = vst [vmem:[#allocation5 + $0x100] sm:$0xff] %v1706
      %1732 = vst [vmem:[#allocation5 + $0x108] sm:$0xff] %v1716
      %v1733 = vld [vmem:[#allocation4] sm:$0xee]
      %v1734 = vld [vmem:[#allocation4 + $0x8] sm:$0xee]
      %v1735 = vld [vmem:[#allocation4 + $0x10] sm:$0xff]
      %v1736 = vld [vmem:[#allocation4 + $0x18] sm:$0xff]
      %v1737 = vld [vmem:[#allocation4 + $0x20] sm:$0xff]
      %v1738 = vld [vmem:[#allocation4 + $0x28] sm:$0xff]
      %v1739 = vld [vmem:[#allocation4 + $0x30] sm:$0xff]
      %v1740 = vld [vmem:[#allocation4 + $0x38] sm:$0xff]
      %v1741 = vld [vmem:[#allocation4 + $0x40] sm:$0x11]
      %v1742 = vld [vmem:[#allocation4 + $0x48] sm:$0x11]
      %v1753 = vrot.slane %v1733, 5
      %v1754 = vrot.slane %v1753, 4
      %v1755 = vrot.slane %v1735, 5
      %v1756 = vsel %vm409, %v1754, %v1755
      %v1757 = vrot.slane %v1734, 5
      %v1758 = vrot.slane %v1757, 4
      %v1759 = vrot.slane %v1736, 5
      %v1760 = vsel %vm409, %v1758, %v1759
      %v1761 = vrot.slane %v1755, 4
      %v1762 = vrot.slane %v1737, 5
      %v1763 = vsel %vm409, %v1761, %v1762
      %v1764 = vrot.slane %v1759, 4
      %v1765 = vrot.slane %v1738, 5
      %v1766 = vsel %vm409, %v1764, %v1765
      %v1767 = vrot.slane %v1762, 4
      %v1768 = vrot.slane %v1739, 5
      %v1769 = vsel %vm409, %v1767, %v1768
      %v1770 = vrot.slane %v1765, 4
      %v1771 = vrot.slane %v1740, 5
      %v1772 = vsel %vm409, %v1770, %v1771
      %v1773 = vrot.slane %v1768, 4
      %v1774 = vrot.slane %v1741, 5
      %v1775 = vsel %vm409, %v1773, %v1774
      %v1776 = vrot.slane %v1771, 4
      %v1777 = vrot.slane %v1742, 5
      %v1778 = vsel %vm409, %v1776, %v1777
      %1787 = vst [vmem:[#allocation5 + $0x20] sm:$0xff] %v1756
      %1788 = vst [vmem:[#allocation5 + $0x28] sm:$0xff] %v1760
      %1789 = vst [vmem:[#allocation5 + $0x70] sm:$0xff] %v1763
      %1790 = vst [vmem:[#allocation5 + $0x78] sm:$0xff] %v1766
      %1791 = vst [vmem:[#allocation5 + $0xc0] sm:$0xff] %v1769
      %1792 = vst [vmem:[#allocation5 + $0xc8] sm:$0xff] %v1772
      %1793 = vst [vmem:[#allocation5 + $0x110] sm:$0xff] %v1775
      %1794 = vst [vmem:[#allocation5 + $0x118] sm:$0xff] %v1778
      %v1795 = vld [vmem:[#allocation4] sm:$0xee]
      %v1796 = vld [vmem:[#allocation4 + $0x8] sm:$0xee]
      %v1797 = vld [vmem:[#allocation4 + $0x10] sm:$0xff]
      %v1798 = vld [vmem:[#allocation4 + $0x18] sm:$0xff]
      %v1799 = vld [vmem:[#allocation4 + $0x20] sm:$0xff]
      %v1800 = vld [vmem:[#allocation4 + $0x28] sm:$0xff]
      %v1801 = vld [vmem:[#allocation4 + $0x30] sm:$0xff]
      %v1802 = vld [vmem:[#allocation4 + $0x38] sm:$0xff]
      %v1803 = vld [vmem:[#allocation4 + $0x40] sm:$0x33]
      %v1804 = vld [vmem:[#allocation4 + $0x48] sm:$0x33]
      %v1806 = vshrl.u32 %v1795, 16
      %v1808 = vrot.slane %v1806, 5
      %v1809 = vshll.u32 %v1795, 16
      %v1811 = vrot.slane %v1809, 6
      %v1812 = vor.u32 %v1808, %v1811
      %v1813 = vrot.slane %v1812, 4
      %v1815 = vshrl.u32 %v1797, 16
      %v1817 = vrot.slane %v1815, 5
      %v1818 = vshll.u32 %v1797, 16
      %v1820 = vrot.slane %v1818, 6
      %v1821 = vor.u32 %v1817, %v1820
      %v1822 = vsel %vm447, %v1813, %v1821
      %v1824 = vshrl.u32 %v1796, 16
      %v1826 = vrot.slane %v1824, 5
      %v1827 = vshll.u32 %v1796, 16
      %v1829 = vrot.slane %v1827, 6
      %v1830 = vor.u32 %v1826, %v1829
      %v1831 = vrot.slane %v1830, 4
      %v1833 = vshrl.u32 %v1798, 16
      %v1835 = vrot.slane %v1833, 5
      %v1836 = vshll.u32 %v1798, 16
      %v1838 = vrot.slane %v1836, 6
      %v1839 = vor.u32 %v1835, %v1838
      %v1840 = vsel %vm447, %v1831, %v1839
      %v1841 = vrot.slane %v1821, 4
      %v1843 = vshrl.u32 %v1799, 16
      %v1845 = vrot.slane %v1843, 5
      %v1846 = vshll.u32 %v1799, 16
      %v1848 = vrot.slane %v1846, 6
      %v1849 = vor.u32 %v1845, %v1848
      %v1850 = vsel %vm447, %v1841, %v1849
      %v1851 = vrot.slane %v1839, 4
      %v1853 = vshrl.u32 %v1800, 16
      %v1855 = vrot.slane %v1853, 5
      %v1856 = vshll.u32 %v1800, 16
      %v1858 = vrot.slane %v1856, 6
      %v1859 = vor.u32 %v1855, %v1858
      %v1860 = vsel %vm447, %v1851, %v1859
      %v1861 = vrot.slane %v1849, 4
      %v1863 = vshrl.u32 %v1801, 16
      %v1865 = vrot.slane %v1863, 5
      %v1866 = vshll.u32 %v1801, 16
      %v1868 = vrot.slane %v1866, 6
      %v1869 = vor.u32 %v1865, %v1868
      %v1870 = vsel %vm447, %v1861, %v1869
      %v1871 = vrot.slane %v1859, 4
      %v1873 = vshrl.u32 %v1802, 16
      %v1875 = vrot.slane %v1873, 5
      %v1876 = vshll.u32 %v1802, 16
      %v1878 = vrot.slane %v1876, 6
      %v1879 = vor.u32 %v1875, %v1878
      %v1880 = vsel %vm447, %v1871, %v1879
      %v1881 = vrot.slane %v1869, 4
      %v1883 = vshrl.u32 %v1803, 16
      %v1885 = vrot.slane %v1883, 5
      %v1886 = vshll.u32 %v1803, 16
      %v1888 = vrot.slane %v1886, 6
      %v1889 = vor.u32 %v1885, %v1888
      %v1890 = vsel %vm447, %v1881, %v1889
      %v1891 = vrot.slane %v1879, 4
      %v1893 = vshrl.u32 %v1804, 16
      %v1895 = vrot.slane %v1893, 5
      %v1896 = vshll.u32 %v1804, 16
      %v1898 = vrot.slane %v1896, 6
      %v1899 = vor.u32 %v1895, %v1898
      %v1900 = vsel %vm447, %v1891, %v1899
      %1909 = vst [vmem:[#allocation5 + $0x30] sm:$0xff] %v1822
      %1910 = vst [vmem:[#allocation5 + $0x38] sm:$0xff] %v1840
      %1911 = vst [vmem:[#allocation5 + $0x80] sm:$0xff] %v1850
      %1912 = vst [vmem:[#allocation5 + $0x88] sm:$0xff] %v1860
      %1913 = vst [vmem:[#allocation5 + $0xd0] sm:$0xff] %v1870
      %1914 = vst [vmem:[#allocation5 + $0xd8] sm:$0xff] %v1880
      %1915 = vst [vmem:[#allocation5 + $0x120] sm:$0xff] %v1890
      %1916 = vst [vmem:[#allocation5 + $0x128] sm:$0xff] %v1900
      %v1917 = vld [vmem:[#allocation4] sm:$0xcc]
      %v1918 = vld [vmem:[#allocation4 + $0x8] sm:$0xcc]
      %v1919 = vld [vmem:[#allocation4 + $0x10] sm:$0xff]
      %v1920 = vld [vmem:[#allocation4 + $0x18] sm:$0xff]
      %v1921 = vld [vmem:[#allocation4 + $0x20] sm:$0xff]
      %v1922 = vld [vmem:[#allocation4 + $0x28] sm:$0xff]
      %v1923 = vld [vmem:[#allocation4 + $0x30] sm:$0xff]
      %v1924 = vld [vmem:[#allocation4 + $0x38] sm:$0xff]
      %v1925 = vld [vmem:[#allocation4 + $0x40] sm:$0x33]
      %v1926 = vld [vmem:[#allocation4 + $0x48] sm:$0x33]
      %v1937 = vrot.slane %v1917, 6
      %v1938 = vrot.slane %v1937, 4
      %v1939 = vrot.slane %v1919, 6
      %v1940 = vsel %vm297, %v1938, %v1939
      %v1941 = vrot.slane %v1918, 6
      %v1942 = vrot.slane %v1941, 4
      %v1943 = vrot.slane %v1920, 6
      %v1944 = vsel %vm297, %v1942, %v1943
      %v1945 = vrot.slane %v1939, 4
      %v1946 = vrot.slane %v1921, 6
      %v1947 = vsel %vm297, %v1945, %v1946
      %v1948 = vrot.slane %v1943, 4
      %v1949 = vrot.slane %v1922, 6
      %v1950 = vsel %vm297, %v1948, %v1949
      %v1951 = vrot.slane %v1946, 4
      %v1952 = vrot.slane %v1923, 6
      %v1953 = vsel %vm297, %v1951, %v1952
      %v1954 = vrot.slane %v1949, 4
      %v1955 = vrot.slane %v1924, 6
      %v1956 = vsel %vm297, %v1954, %v1955
      %v1957 = vrot.slane %v1952, 4
      %v1958 = vrot.slane %v1925, 6
      %v1959 = vsel %vm297, %v1957, %v1958
      %v1960 = vrot.slane %v1955, 4
      %v1961 = vrot.slane %v1926, 6
      %v1962 = vsel %vm297, %v1960, %v1961
      %1971 = vst [vmem:[#allocation5 + $0x40] sm:$0xff] %v1940
      %1972 = vst [vmem:[#allocation5 + $0x48] sm:$0xff] %v1944
      %1973 = vst [vmem:[#allocation5 + $0x90] sm:$0xff] %v1947
      %1974 = vst [vmem:[#allocation5 + $0x98] sm:$0xff] %v1950
      %1975 = vst [vmem:[#allocation5 + $0xe0] sm:$0xff] %v1953
      %1976 = vst [vmem:[#allocation5 + $0xe8] sm:$0xff] %v1956
      %1977 = vst [vmem:[#allocation5 + $0x130] sm:$0xff] %v1959
      %1978 = vst [vmem:[#allocation5 + $0x138] sm:$0xff] %v1962
      %1979 = vst [vmem:[#allocation5 + $0x50] sm:$0x11] 0
      %1980 = vst [vmem:[#allocation5 + $0x58] sm:$0x11] 0
      %1981 = vst [vmem:[#allocation5 + $0xa0] sm:$0x11] 0
      %1982 = vst [vmem:[#allocation5 + $0xa8] sm:$0x11] 0
      %1983 = vst [vmem:[#allocation5 + $0xf0] sm:$0x11] 0
      %1984 = vst [vmem:[#allocation5 + $0xf8] sm:$0x11] 0
      %vm1985 = vmand %vm626, %vm663
      %vm1986 = vsmask.f32 4352
      %vm1987 = vmand %vm627, %vm1986
      %vm1988 = vmor %vm1987, %vm1985
      %v1989 = vld [vmem:[#allocation5 + $0x60] sm:$0x11]
      %v1990 = vsel %vm1988, 0, %v1989
      %1991 = vst [vmem:[#allocation5 + $0x60] sm:$0x11] %v1990
      %v1992 = vld [vmem:[#allocation5 + $0x68] sm:$0x11]
      %v1993 = vsel %vm1988, 0, %v1992
      %1994 = vst [vmem:[#allocation5 + $0x68] sm:$0x11] %v1993
      %v1995 = vld [vmem:[#allocation5 + $0xb0] sm:$0x11]
      %v1996 = vsel %vm1988, 0, %v1995
      %1997 = vst [vmem:[#allocation5 + $0xb0] sm:$0x11] %v1996
      %v1998 = vld [vmem:[#allocation5 + $0xb8] sm:$0x11]
      %v1999 = vsel %vm1988, 0, %v1998
      %2000 = vst [vmem:[#allocation5 + $0xb8] sm:$0x11] %v1999
      %v2001 = vld [vmem:[#allocation5 + $0x100] sm:$0x11]
      %v2002 = vsel %vm1988, 0, %v2001
      %2003 = vst [vmem:[#allocation5 + $0x100] sm:$0x11] %v2002
      %v2004 = vld [vmem:[#allocation5 + $0x108] sm:$0x11]
      %v2005 = vsel %vm1988, 0, %v2004
      %2006 = vst [vmem:[#allocation5 + $0x108] sm:$0x11] %v2005
      %vm2007 = vcmask 1043459
      %vm2008 = vmand %vm2007, %vm760
      %vm2009 = vcmask 1047559
      %vm2010 = vsmask.f32 7966
      %vm2011 = vmand %vm2009, %vm2010
      %vm2012 = vmor %vm2011, %vm2008
      %v2013 = vld [vmem:[#allocation5 + $0x30] sm:$0x88]
      %v2014 = vsel %vm2012, 0, %v2013
      %2015 = vst [vmem:[#allocation5 + $0x30] sm:$0x88] %v2014
      %v2016 = vld [vmem:[#allocation5 + $0x38] sm:$0x88]
      %v2017 = vsel %vm2012, 0, %v2016
      %2018 = vst [vmem:[#allocation5 + $0x38] sm:$0x88] %v2017
      %v2019 = vld [vmem:[#allocation5 + $0x80] sm:$0x88]
      %v2020 = vsel %vm2012, 0, %v2019
      %2021 = vst [vmem:[#allocation5 + $0x80] sm:$0x88] %v2020
      %v2022 = vld [vmem:[#allocation5 + $0x88] sm:$0x88]
      %v2023 = vsel %vm2012, 0, %v2022
      %2024 = vst [vmem:[#allocation5 + $0x88] sm:$0x88] %v2023
      %v2025 = vld [vmem:[#allocation5 + $0xd0] sm:$0x88]
      %v2026 = vsel %vm2012, 0, %v2025
      %2027 = vst [vmem:[#allocation5 + $0xd0] sm:$0x88] %v2026
      %v2028 = vld [vmem:[#allocation5 + $0xd8] sm:$0x88]
      %v2029 = vsel %vm2012, 0, %v2028
      %2030 = vst [vmem:[#allocation5 + $0xd8] sm:$0x88] %v2029
      %2031 = vst [vmem:[#allocation5 + $0x40] sm:$0x88] 0
      %2032 = vst [vmem:[#allocation5 + $0x48] sm:$0x88] 0
      %2033 = vst [vmem:[#allocation5 + $0x90] sm:$0x88] 0
      %2034 = vst [vmem:[#allocation5 + $0x98] sm:$0x88] 0
      %2035 = vst [vmem:[#allocation5 + $0xe0] sm:$0x88] 0
      %2036 = vst [vmem:[#allocation5 + $0xe8] sm:$0x88] 0
      %v2037 = vld [vmem:[#allocation5] sm:$0xff]
      %v2038 = vld [vmem:[#allocation5 + $0x8] sm:$0xff]
      %v2039 = vld [vmem:[#allocation5 + $0x10] sm:$0xff]
      %v2040 = vld [vmem:[#allocation5 + $0x18] sm:$0xff]
      %v2041 = vld [vmem:[#allocation5 + $0x20] sm:$0xff]
      %v2042 = vld [vmem:[#allocation5 + $0x28] sm:$0xff]
      %v2043 = vld [vmem:[#allocation5 + $0x30] sm:$0xff]
      %v2044 = vld [vmem:[#allocation5 + $0x38] sm:$0xff]
      %v2045 = vld [vmem:[#allocation5 + $0x40] sm:$0xff]
      %v2046 = vld [vmem:[#allocation5 + $0x48] sm:$0xff]
      %v2047 = vld [vmem:[#allocation5 + $0x50] sm:$0xff]
      %v2048 = vld [vmem:[#allocation5 + $0x58] sm:$0xff]
      %v2049 = vld [vmem:[#allocation5 + $0x60] sm:$0xff]
      %v2050 = vld [vmem:[#allocation5 + $0x68] sm:$0xff]
      %v2051 = vld [vmem:[#allocation5 + $0x70] sm:$0xff]
      %v2052 = vld [vmem:[#allocation5 + $0x78] sm:$0xff]
      %v2053 = vld [vmem:[#allocation5 + $0x80] sm:$0xff]
      %v2054 = vld [vmem:[#allocation5 + $0x88] sm:$0xff]
      %v2055 = vld [vmem:[#allocation5 + $0x90] sm:$0xff]
      %v2056 = vld [vmem:[#allocation5 + $0x98] sm:$0xff]
      %v2057 = vld [vmem:[#allocation5 + $0xa0] sm:$0xff]
      %v2058 = vld [vmem:[#allocation5 + $0xa8] sm:$0xff]
      %v2059 = vld [vmem:[#allocation5 + $0xb0] sm:$0xff]
      %v2060 = vld [vmem:[#allocation5 + $0xb8] sm:$0xff]
      %v2061 = vld [vmem:[#allocation5 + $0xc0] sm:$0xff]
      %v2062 = vld [vmem:[#allocation5 + $0xc8] sm:$0xff]
      %v2063 = vld [vmem:[#allocation5 + $0xd0] sm:$0xff]
      %v2064 = vld [vmem:[#allocation5 + $0xd8] sm:$0xff]
      %v2065 = vld [vmem:[#allocation5 + $0xe0] sm:$0xff]
      %v2066 = vld [vmem:[#allocation5 + $0xe8] sm:$0xff]
      %v2067 = vld [vmem:[#allocation5 + $0xf0] sm:$0xff]
      %v2068 = vld [vmem:[#allocation5 + $0xf8] sm:$0xff]
      %v2069 = vld [vmem:[#allocation5 + $0x100] sm:$0xff]
      %v2070 = vld [vmem:[#allocation5 + $0x108] sm:$0xff]
      %v2071 = vld [vmem:[#allocation5 + $0x110] sm:$0xff]
      %v2072 = vld [vmem:[#allocation5 + $0x118] sm:$0xff]
      %v2073 = vld [vmem:[#allocation5 + $0x120] sm:$0xff]
      %v2074 = vld [vmem:[#allocation5 + $0x128] sm:$0xff]
      %v2075 = vld [vmem:[#allocation5 + $0x130] sm:$0xff]
      %v2076 = vld [vmem:[#allocation5 + $0x138] sm:$0xff]
      %v2077 = vld [vmem:[%s3] sm:$0xff]
      %v2078 = vld [vmem:[%s3 + $0x8] sm:$0xff]
      %v2079 = vld [vmem:[%s3 + $0x10] sm:$0xff]
      %v2080 = vld [vmem:[%s3 + $0x18] sm:$0xff]
      %v2081 = vld [vmem:[%s3 + $0x20] sm:$0xff]
      %v2082 = vld [vmem:[%s3 + $0x28] sm:$0xff]
      %v2083 = vld [vmem:[%s3 + $0x30] sm:$0xff]
      %v2084 = vld [vmem:[%s3 + $0x38] sm:$0xff]
      %v2085 = vld [vmem:[%s3 + $0x40] sm:$0xff]
      %v2086 = vld [vmem:[%s3 + $0x48] sm:$0xff]
      %v2087 = vld [vmem:[%s3 + $0x50] sm:$0xff]
      %v2088 = vld [vmem:[%s3 + $0x58] sm:$0xff]
      %v2089 = vld [vmem:[%s3 + $0x60] sm:$0xff]
      %v2090 = vld [vmem:[%s3 + $0x68] sm:$0xff]
      %v2091 = vld [vmem:[%s3 + $0x70] sm:$0xff]
      %v2092 = vld [vmem:[%s3 + $0x78] sm:$0xff]
      %v2093 = vld [vmem:[%s3 + $0x80] sm:$0xff]
      %v2094 = vld [vmem:[%s3 + $0x88] sm:$0xff]
      %v2095 = vld [vmem:[%s3 + $0x90] sm:$0xff]
      %v2096 = vld [vmem:[%s3 + $0x98] sm:$0xff]
      %v2097 = vld [vmem:[%s3 + $0xa0] sm:$0xff]
      %v2098 = vld [vmem:[%s3 + $0xa8] sm:$0xff]
      %v2099 = vld [vmem:[%s3 + $0xb0] sm:$0xff]
      %v2100 = vld [vmem:[%s3 + $0xb8] sm:$0xff]
      %v2101 = vld [vmem:[%s3 + $0xc0] sm:$0xff]
      %v2102 = vld [vmem:[%s3 + $0xc8] sm:$0xff]
      %v2103 = vld [vmem:[%s3 + $0xd0] sm:$0xff]
      %v2104 = vld [vmem:[%s3 + $0xd8] sm:$0xff]
      %v2105 = vld [vmem:[%s3 + $0xe0] sm:$0xff]
      %v2106 = vld [vmem:[%s3 + $0xe8] sm:$0xff]
      %v2107 = vld [vmem:[%s3 + $0xf0] sm:$0xff]
      %v2108 = vld [vmem:[%s3 + $0xf8] sm:$0xff]
      %v2109 = vld [vmem:[%s3 + $0x100] sm:$0xff]
      %v2110 = vld [vmem:[%s3 + $0x108] sm:$0xff]
      %v2111 = vld [vmem:[%s3 + $0x110] sm:$0xff]
      %v2112 = vld [vmem:[%s3 + $0x118] sm:$0xff]
      %v2113 = vld [vmem:[%s3 + $0x120] sm:$0xff]
      %v2114 = vld [vmem:[%s3 + $0x128] sm:$0xff]
      %v2115 = vld [vmem:[%s3 + $0x130] sm:$0xff]
      %v2116 = vld [vmem:[%s3 + $0x138] sm:$0xff]
      %v2117 = vld [vmem:[%s3 + $0x140] sm:$0xff]
      %v2118 = vld [vmem:[%s3 + $0x148] sm:$0xff]
      %v2119 = vld [vmem:[%s3 + $0x150] sm:$0xff]
      %v2120 = vld [vmem:[%s3 + $0x158] sm:$0xff]
      %v2121 = vld [vmem:[%s3 + $0x160] sm:$0xff]
      %v2122 = vld [vmem:[%s3 + $0x168] sm:$0xff]
      %v2123 = vld [vmem:[%s3 + $0x170] sm:$0xff]
      %v2124 = vld [vmem:[%s3 + $0x178] sm:$0xff]
      %v2125 = vld [vmem:[%s3 + $0x180] sm:$0xff]
      %v2126 = vld [vmem:[%s3 + $0x188] sm:$0xff]
      %v2127 = vld [vmem:[%s3 + $0x190] sm:$0xff]
      %v2128 = vld [vmem:[%s3 + $0x198] sm:$0xff]
      %v2129 = vld [vmem:[%s3 + $0x1a0] sm:$0xff]
      %v2130 = vld [vmem:[%s3 + $0x1a8] sm:$0xff]
      %v2131 = vld [vmem:[%s3 + $0x1b0] sm:$0xff]
      %v2132 = vld [vmem:[%s3 + $0x1b8] sm:$0xff]
      %v2133 = vld [vmem:[%s3 + $0x1c0] sm:$0xff]
      %v2134 = vld [vmem:[%s3 + $0x1c8] sm:$0xff]
      %v2135 = vld [vmem:[%s3 + $0x1d0] sm:$0xff]
      %v2136 = vld [vmem:[%s3 + $0x1d8] sm:$0xff]
      %v2137 = vld [vmem:[%s3 + $0x1e0] sm:$0xff]
      %v2138 = vld [vmem:[%s3 + $0x1e8] sm:$0xff]
      %v2139 = vld [vmem:[%s3 + $0x1f0] sm:$0xff]
      %v2140 = vld [vmem:[%s3 + $0x1f8] sm:$0xff]
      %v2141 = vld [vmem:[%s3 + $0x200] sm:$0xff]
      %v2142 = vld [vmem:[%s3 + $0x208] sm:$0xff]
      %v2143 = vld [vmem:[%s3 + $0x210] sm:$0xff]
      %v2144 = vld [vmem:[%s3 + $0x218] sm:$0xff]
      %v2145 = vld [vmem:[%s3 + $0x220] sm:$0xff]
      %v2146 = vld [vmem:[%s3 + $0x228] sm:$0xff]
      %v2147 = vld [vmem:[%s3 + $0x230] sm:$0xff]
      %v2148 = vld [vmem:[%s3 + $0x238] sm:$0xff]
      %v2149 = vld [vmem:[%s3 + $0x240] sm:$0xff]
      %v2150 = vld [vmem:[%s3 + $0x248] sm:$0xff]
      %v2151 = vld [vmem:[%s3 + $0x250] sm:$0xff]
      %v2152 = vld [vmem:[%s3 + $0x258] sm:$0xff]
      %v2153 = vld [vmem:[%s3 + $0x260] sm:$0xff]
      %v2154 = vld [vmem:[%s3 + $0x268] sm:$0xff]
      %v2155 = vld [vmem:[%s3 + $0x270] sm:$0xff]
      %v2156 = vld [vmem:[%s3 + $0x278] sm:$0xff]
      %v2157 = vld [vmem:[%s3 + $0x280] sm:$0xff]
      %v2158 = vld [vmem:[%s3 + $0x288] sm:$0xff]
      %v2159 = vld [vmem:[%s3 + $0x290] sm:$0xff]
      %v2160 = vld [vmem:[%s3 + $0x298] sm:$0xff]
      %v2161 = vld [vmem:[%s3 + $0x2a0] sm:$0xff]
      %v2162 = vld [vmem:[%s3 + $0x2a8] sm:$0xff]
      %v2163 = vld [vmem:[%s3 + $0x2b0] sm:$0xff]
      %v2164 = vld [vmem:[%s3 + $0x2b8] sm:$0xff]
      %v2165 = vld [vmem:[%s3 + $0x2c0] sm:$0xff]
      %v2166 = vld [vmem:[%s3 + $0x2c8] sm:$0xff]
      %v2167 = vld [vmem:[%s3 + $0x2d0] sm:$0xff]
      %v2168 = vld [vmem:[%s3 + $0x2d8] sm:$0xff]
      %v2169 = vld [vmem:[%s3 + $0x2e0] sm:$0xff]
      %v2170 = vld [vmem:[%s3 + $0x2e8] sm:$0xff]
      %v2171 = vld [vmem:[%s3 + $0x2f0] sm:$0xff]
      %v2172 = vld [vmem:[%s3 + $0x2f8] sm:$0xff]
      %v2173 = vld [vmem:[%s3 + $0x300] sm:$0xff]
      %v2174 = vld [vmem:[%s3 + $0x308] sm:$0xff]
      %v2175 = vld [vmem:[%s3 + $0x310] sm:$0xff]
      %v2176 = vld [vmem:[%s3 + $0x318] sm:$0xff]
      %v2177 = vld [vmem:[%s3 + $0x320] sm:$0xff]
      %v2178 = vld [vmem:[%s3 + $0x328] sm:$0xff]
      %v2179 = vld [vmem:[%s3 + $0x330] sm:$0xff]
      %v2180 = vld [vmem:[%s3 + $0x338] sm:$0xff]
      %v2181 = vld [vmem:[%s3 + $0x340] sm:$0xff]
      %v2182 = vld [vmem:[%s3 + $0x348] sm:$0xff]
      %v2183 = vld [vmem:[%s3 + $0x350] sm:$0xff]
      %v2184 = vld [vmem:[%s3 + $0x358] sm:$0xff]
      %v2185 = vld [vmem:[%s3 + $0x360] sm:$0xff]
      %v2186 = vld [vmem:[%s3 + $0x368] sm:$0xff]
      %v2187 = vld [vmem:[%s3 + $0x370] sm:$0xff]
      %v2188 = vld [vmem:[%s3 + $0x378] sm:$0xff]
      %v2189 = vld [vmem:[%s3 + $0x380] sm:$0xff]
      %v2190 = vld [vmem:[%s3 + $0x388] sm:$0xff]
      %v2191 = vld [vmem:[%s3 + $0x390] sm:$0xff]
      %v2192 = vld [vmem:[%s3 + $0x398] sm:$0xff]
      %v2193 = vld [vmem:[%s3 + $0x3a0] sm:$0xff]
      %v2194 = vld [vmem:[%s3 + $0x3a8] sm:$0xff]
      %v2195 = vld [vmem:[%s3 + $0x3b0] sm:$0xff]
      %v2196 = vld [vmem:[%s3 + $0x3b8] sm:$0xff]
      %v2197 = vld [vmem:[%s3 + $0x3c0] sm:$0xff]
      %v2198 = vld [vmem:[%s3 + $0x3c8] sm:$0xff]
      %v2199 = vld [vmem:[%s3 + $0x3d0] sm:$0xff]
      %v2200 = vld [vmem:[%s3 + $0x3d8] sm:$0xff]
      %v2201 = vld [vmem:[%s3 + $0x3e0] sm:$0xff]
      %v2202 = vld [vmem:[%s3 + $0x3e8] sm:$0xff]
      %v2203 = vld [vmem:[%s3 + $0x3f0] sm:$0xff]
      %v2204 = vld [vmem:[%s3 + $0x3f8] sm:$0xff]
      %v2205 = vld [vmem:[%s3 + $0x400] sm:$0xff]
      %v2206 = vld [vmem:[%s3 + $0x408] sm:$0xff]
      %v2207 = vld [vmem:[%s3 + $0x410] sm:$0xff]
      %v2208 = vld [vmem:[%s3 + $0x418] sm:$0xff]
      %v2209 = vld [vmem:[%s3 + $0x420] sm:$0xff]
      %v2210 = vld [vmem:[%s3 + $0x428] sm:$0xff]
      %v2211 = vld [vmem:[%s3 + $0x430] sm:$0xff]
      %v2212 = vld [vmem:[%s3 + $0x438] sm:$0xff]
      %v2213 = vld [vmem:[%s3 + $0x440] sm:$0xff]
      %v2214 = vld [vmem:[%s3 + $0x448] sm:$0xff]
      %v2215 = vld [vmem:[%s3 + $0x450] sm:$0xff]
      %v2216 = vld [vmem:[%s3 + $0x458] sm:$0xff]
      %v2217 = vld [vmem:[%s3 + $0x460] sm:$0xff]
      %v2218 = vld [vmem:[%s3 + $0x468] sm:$0xff]
      %v2219 = vld [vmem:[%s3 + $0x470] sm:$0xff]
      %v2220 = vld [vmem:[%s3 + $0x478] sm:$0xff]
      %v2221 = vld [vmem:[%s3 + $0x480] sm:$0xff]
      %v2222 = vld [vmem:[%s3 + $0x488] sm:$0xff]
      %v2223 = vld [vmem:[%s3 + $0x490] sm:$0xff]
      %v2224 = vld [vmem:[%s3 + $0x498] sm:$0xff]
      %v2225 = vld [vmem:[%s3 + $0x4a0] sm:$0xff]
      %v2226 = vld [vmem:[%s3 + $0x4a8] sm:$0xff]
      %v2227 = vld [vmem:[%s3 + $0x4b0] sm:$0xff]
      %v2228 = vld [vmem:[%s3 + $0x4b8] sm:$0xff]
      %v2229 = vld [vmem:[%s3 + $0x4c0] sm:$0xff]
      %v2230 = vld [vmem:[%s3 + $0x4c8] sm:$0xff]
      %v2231 = vld [vmem:[%s3 + $0x4d0] sm:$0xff]
      %v2232 = vld [vmem:[%s3 + $0x4d8] sm:$0xff]
      %v2233 = vld [vmem:[%s3 + $0x4e0] sm:$0xff]
      %v2234 = vld [vmem:[%s3 + $0x4e8] sm:$0xff]
      %v2235 = vld [vmem:[%s3 + $0x4f0] sm:$0xff]
      %v2236 = vld [vmem:[%s3 + $0x4f8] sm:$0xff]
      %v2237 = vld [vmem:[%s3 + $0x500] sm:$0xff]
      %v2238 = vld [vmem:[%s3 + $0x508] sm:$0xff]
      %v2239 = vld [vmem:[%s3 + $0x510] sm:$0xff]
      %v2240 = vld [vmem:[%s3 + $0x518] sm:$0xff]
      %v2241 = vld [vmem:[%s3 + $0x520] sm:$0xff]
      %v2242 = vld [vmem:[%s3 + $0x528] sm:$0xff]
      %v2243 = vld [vmem:[%s3 + $0x530] sm:$0xff]
      %v2244 = vld [vmem:[%s3 + $0x538] sm:$0xff]
      %v2245 = vld [vmem:[%s3 + $0x540] sm:$0xff]
      %v2246 = vld [vmem:[%s3 + $0x548] sm:$0xff]
      %v2247 = vld [vmem:[%s3 + $0x550] sm:$0xff]
      %v2248 = vld [vmem:[%s3 + $0x558] sm:$0xff]
      %v2249 = vld [vmem:[%s3 + $0x560] sm:$0xff]
      %v2250 = vld [vmem:[%s3 + $0x568] sm:$0xff]
      %v2251 = vld [vmem:[%s3 + $0x570] sm:$0xff]
      %v2252 = vld [vmem:[%s3 + $0x578] sm:$0xff]
      %v2253 = vld [vmem:[%s3 + $0x580] sm:$0xff]
      %v2254 = vld [vmem:[%s3 + $0x588] sm:$0xff]
      %v2255 = vld [vmem:[%s3 + $0x590] sm:$0xff]
      %v2256 = vld [vmem:[%s3 + $0x598] sm:$0xff]
      %v2257 = vld [vmem:[%s3 + $0x5a0] sm:$0xff]
      %v2258 = vld [vmem:[%s3 + $0x5a8] sm:$0xff]
      %v2259 = vld [vmem:[%s3 + $0x5b0] sm:$0xff]
      %v2260 = vld [vmem:[%s3 + $0x5b8] sm:$0xff]
      %v2261 = vld [vmem:[%s3 + $0x5c0] sm:$0xff]
      %v2262 = vld [vmem:[%s3 + $0x5c8] sm:$0xff]
      %v2263 = vld [vmem:[%s3 + $0x5d0] sm:$0xff]
      %v2264 = vld [vmem:[%s3 + $0x5d8] sm:$0xff]
      %v2265 = vld [vmem:[%s3 + $0x5e0] sm:$0xff]
      %v2266 = vld [vmem:[%s3 + $0x5e8] sm:$0xff]
      %v2267 = vld [vmem:[%s3 + $0x5f0] sm:$0xff]
      %v2268 = vld [vmem:[%s3 + $0x5f8] sm:$0xff]
      %v2269 = vld [vmem:[%s3 + $0x600] sm:$0xff]
      %v2270 = vld [vmem:[%s3 + $0x608] sm:$0xff]
      %v2271 = vld [vmem:[%s3 + $0x610] sm:$0xff]
      %v2272 = vld [vmem:[%s3 + $0x618] sm:$0xff]
      %v2273 = vld [vmem:[%s3 + $0x620] sm:$0xff]
      %v2274 = vld [vmem:[%s3 + $0x628] sm:$0xff]
      %v2275 = vld [vmem:[%s3 + $0x630] sm:$0xff]
      %v2276 = vld [vmem:[%s3 + $0x638] sm:$0xff]
      %v2277 = vld [vmem:[%s3 + $0x640] sm:$0xff]
      %v2278 = vld [vmem:[%s3 + $0x648] sm:$0xff]
      %v2279 = vld [vmem:[%s3 + $0x650] sm:$0xff]
      %v2280 = vld [vmem:[%s3 + $0x658] sm:$0xff]
      %v2281 = vld [vmem:[%s3 + $0x660] sm:$0xff]
      %v2282 = vld [vmem:[%s3 + $0x668] sm:$0xff]
      %v2283 = vld [vmem:[%s3 + $0x670] sm:$0xff]
      %v2284 = vld [vmem:[%s3 + $0x678] sm:$0xff]
      %v2285 = vld [vmem:[%s3 + $0x680] sm:$0xff]
      %v2286 = vld [vmem:[%s3 + $0x688] sm:$0xff]
      %v2287 = vld [vmem:[%s3 + $0x690] sm:$0xff]
      %v2288 = vld [vmem:[%s3 + $0x698] sm:$0xff]
      %v2289 = vld [vmem:[%s3 + $0x6a0] sm:$0xff]
      %v2290 = vld [vmem:[%s3 + $0x6a8] sm:$0xff]
      %v2291 = vld [vmem:[%s3 + $0x6b0] sm:$0xff]
      %v2292 = vld [vmem:[%s3 + $0x6b8] sm:$0xff]
      %v2293 = vld [vmem:[%s3 + $0x6c0] sm:$0xff]
      %v2294 = vld [vmem:[%s3 + $0x6c8] sm:$0xff]
      %v2295 = vld [vmem:[%s3 + $0x6d0] sm:$0xff]
      %v2296 = vld [vmem:[%s3 + $0x6d8] sm:$0xff]
      %v2297 = vld [vmem:[%s3 + $0x6e0] sm:$0xff]
      %v2298 = vld [vmem:[%s3 + $0x6e8] sm:$0xff]
      %v2299 = vld [vmem:[%s3 + $0x6f0] sm:$0xff]
      %v2300 = vld [vmem:[%s3 + $0x6f8] sm:$0xff]
      %v2301 = vld [vmem:[%s3 + $0x700] sm:$0xff]
      %v2302 = vld [vmem:[%s3 + $0x708] sm:$0xff]
      %v2303 = vld [vmem:[%s3 + $0x710] sm:$0xff]
      %v2304 = vld [vmem:[%s3 + $0x718] sm:$0xff]
      %v2305 = vld [vmem:[%s3 + $0x720] sm:$0xff]
      %v2306 = vld [vmem:[%s3 + $0x728] sm:$0xff]
      %v2307 = vld [vmem:[%s3 + $0x730] sm:$0xff]
      %v2308 = vld [vmem:[%s3 + $0x738] sm:$0xff]
      %v2309 = vld [vmem:[%s3 + $0x740] sm:$0xff]
      %v2310 = vld [vmem:[%s3 + $0x748] sm:$0xff]
      %v2311 = vld [vmem:[%s3 + $0x750] sm:$0xff]
      %v2312 = vld [vmem:[%s3 + $0x758] sm:$0xff]
      %v2313 = vld [vmem:[%s3 + $0x760] sm:$0xff]
      %v2314 = vld [vmem:[%s3 + $0x768] sm:$0xff]
      %v2315 = vld [vmem:[%s3 + $0x770] sm:$0xff]
      %v2316 = vld [vmem:[%s3 + $0x778] sm:$0xff]
      %v2317 = vld [vmem:[%s3 + $0x780] sm:$0xff]
      %v2318 = vld [vmem:[%s3 + $0x788] sm:$0xff]
      %v2319 = vld [vmem:[%s3 + $0x790] sm:$0xff]
      %v2320 = vld [vmem:[%s3 + $0x798] sm:$0xff]
      %v2321 = vld [vmem:[%s3 + $0x7a0] sm:$0xff]
      %v2322 = vld [vmem:[%s3 + $0x7a8] sm:$0xff]
      %v2323 = vld [vmem:[%s3 + $0x7b0] sm:$0xff]
      %v2324 = vld [vmem:[%s3 + $0x7b8] sm:$0xff]
      %v2325 = vld [vmem:[%s3 + $0x7c0] sm:$0xff]
      %v2326 = vld [vmem:[%s3 + $0x7c8] sm:$0xff]
      %v2327 = vld [vmem:[%s3 + $0x7d0] sm:$0xff]
      %v2328 = vld [vmem:[%s3 + $0x7d8] sm:$0xff]
      %v2329 = vld [vmem:[%s3 + $0x7e0] sm:$0xff]
      %v2330 = vld [vmem:[%s3 + $0x7e8] sm:$0xff]
      %v2331 = vld [vmem:[%s3 + $0x7f0] sm:$0xff]
      %v2332 = vld [vmem:[%s3 + $0x7f8] sm:$0xff]
      %v2333 = vld [vmem:[%s3 + $0x800] sm:$0xff]
      %v2334 = vld [vmem:[%s3 + $0x808] sm:$0xff]
      %v2335 = vld [vmem:[%s3 + $0x810] sm:$0xff]
      %v2336 = vld [vmem:[%s3 + $0x818] sm:$0xff]
      %v2337 = vld [vmem:[%s3 + $0x820] sm:$0xff]
      %v2338 = vld [vmem:[%s3 + $0x828] sm:$0xff]
      %v2339 = vld [vmem:[%s3 + $0x830] sm:$0xff]
      %v2340 = vld [vmem:[%s3 + $0x838] sm:$0xff]
      %v2341 = vld [vmem:[%s3 + $0x840] sm:$0xff]
      %v2342 = vld [vmem:[%s3 + $0x848] sm:$0xff]
      %v2343 = vld [vmem:[%s3 + $0x850] sm:$0xff]
      %v2344 = vld [vmem:[%s3 + $0x858] sm:$0xff]
      %v2345 = vld [vmem:[%s3 + $0x860] sm:$0xff]
      %v2346 = vld [vmem:[%s3 + $0x868] sm:$0xff]
      %v2347 = vld [vmem:[%s3 + $0x870] sm:$0xff]
      %v2348 = vld [vmem:[%s3 + $0x878] sm:$0xff]
      %v2349 = vld [vmem:[%s3 + $0x880] sm:$0xff]
      %v2350 = vld [vmem:[%s3 + $0x888] sm:$0xff]
      %v2351 = vld [vmem:[%s3 + $0x890] sm:$0xff]
      %v2352 = vld [vmem:[%s3 + $0x898] sm:$0xff]
      %v2353 = vld [vmem:[%s3 + $0x8a0] sm:$0xff]
      %v2354 = vld [vmem:[%s3 + $0x8a8] sm:$0xff]
      %v2355 = vld [vmem:[%s3 + $0x8b0] sm:$0xff]
      %v2356 = vld [vmem:[%s3 + $0x8b8] sm:$0xff]
      %v2357 = vld [vmem:[%s3 + $0x8c0] sm:$0xff]
      %v2358 = vld [vmem:[%s3 + $0x8c8] sm:$0xff]
      %v2359 = vld [vmem:[%s3 + $0x8d0] sm:$0xff]
      %v2360 = vld [vmem:[%s3 + $0x8d8] sm:$0xff]
      %v2361 = vld [vmem:[%s3 + $0x8e0] sm:$0xff]
      %v2362 = vld [vmem:[%s3 + $0x8e8] sm:$0xff]
      %v2363 = vld [vmem:[%s3 + $0x8f0] sm:$0xff]
      %v2364 = vld [vmem:[%s3 + $0x8f8] sm:$0xff]
      %v2365 = vld [vmem:[%s3 + $0x900] sm:$0xff]
      %v2366 = vld [vmem:[%s3 + $0x908] sm:$0xff]
      %v2367 = vld [vmem:[%s3 + $0x910] sm:$0xff]
      %v2368 = vld [vmem:[%s3 + $0x918] sm:$0xff]
      %v2369 = vld [vmem:[%s3 + $0x920] sm:$0xff]
      %v2370 = vld [vmem:[%s3 + $0x928] sm:$0xff]
      %v2371 = vld [vmem:[%s3 + $0x930] sm:$0xff]
      %v2372 = vld [vmem:[%s3 + $0x938] sm:$0xff]
      %v2373 = vld [vmem:[%s3 + $0x940] sm:$0xff]
      %v2374 = vld [vmem:[%s3 + $0x948] sm:$0xff]
      %v2375 = vld [vmem:[%s3 + $0x950] sm:$0xff]
      %v2376 = vld [vmem:[%s3 + $0x958] sm:$0xff]
      %v2377 = vld [vmem:[%s3 + $0x960] sm:$0xff]
      %v2378 = vld [vmem:[%s3 + $0x968] sm:$0xff]
      %v2379 = vld [vmem:[%s3 + $0x970] sm:$0xff]
      %v2380 = vld [vmem:[%s3 + $0x978] sm:$0xff]
      %v2381 = vld [vmem:[%s3 + $0x980] sm:$0xff]
      %v2382 = vld [vmem:[%s3 + $0x988] sm:$0xff]
      %v2383 = vld [vmem:[%s3 + $0x990] sm:$0xff]
      %v2384 = vld [vmem:[%s3 + $0x998] sm:$0xff]
      %v2385 = vld [vmem:[%s3 + $0x9a0] sm:$0xff]
      %v2386 = vld [vmem:[%s3 + $0x9a8] sm:$0xff]
      %v2387 = vld [vmem:[%s3 + $0x9b0] sm:$0xff]
      %v2388 = vld [vmem:[%s3 + $0x9b8] sm:$0xff]
      %v2389 = vld [vmem:[%s3 + $0x9c0] sm:$0xff]
      %v2390 = vld [vmem:[%s3 + $0x9c8] sm:$0xff]
      %v2391 = vld [vmem:[%s3 + $0x9d0] sm:$0xff]
      %v2392 = vld [vmem:[%s3 + $0x9d8] sm:$0xff]
      %v2393 = vld [vmem:[%s3 + $0x9e0] sm:$0xff]
      %v2394 = vld [vmem:[%s3 + $0x9e8] sm:$0xff]
      %v2395 = vld [vmem:[%s3 + $0x9f0] sm:$0xff]
      %v2396 = vld [vmem:[%s3 + $0x9f8] sm:$0xff]
      %v2397 = vld [vmem:[%s4] sm:$0x3]
      %v2399 = vlaneseq
      %v2400 = vshrl.u32 %v2399, 7
      %v2401 = vsub.s32 0, %v2400
      %v2402 = vrot.slane %v2397, %v2401
      %v2403 = vlaneseq
      %v2404 = vshrl.u32 %v2403, 7
      %v2405 = vsub.s32 1, %v2404
      %v2406 = vrot.slane %v2397, %v2405
      %v2449 = vunpack.c.l.b16 %v2037
      %v2450 = vunpack.c.h.b16 %v2037
      %v2451 = vunpack.c.l.b16 %v2038
      %v2452 = vunpack.c.h.b16 %v2038
      %v2453 = vunpack.c.l.b16 %v2039
      %v2454 = vunpack.c.h.b16 %v2039
      %v2455 = vunpack.c.l.b16 %v2040
      %v2456 = vunpack.c.h.b16 %v2040
      %v2457 = vunpack.c.l.b16 %v2041
      %v2458 = vunpack.c.h.b16 %v2041
      %v2459 = vunpack.c.l.b16 %v2042
      %v2460 = vunpack.c.h.b16 %v2042
      %v2461 = vunpack.c.l.b16 %v2043
      %v2462 = vunpack.c.h.b16 %v2043
      %v2463 = vunpack.c.l.b16 %v2044
      %v2464 = vunpack.c.h.b16 %v2044
      %v2465 = vunpack.c.l.b16 %v2045
      %v2466 = vunpack.c.h.b16 %v2045
      %v2467 = vunpack.c.l.b16 %v2046
      %v2468 = vunpack.c.h.b16 %v2046
      %v2469 = vunpack.c.l.b16 %v2047
      %v2470 = vunpack.c.h.b16 %v2047
      %v2471 = vunpack.c.l.b16 %v2048
      %v2472 = vunpack.c.h.b16 %v2048
      %v2473 = vunpack.c.l.b16 %v2049
      %v2474 = vunpack.c.h.b16 %v2049
      %v2475 = vunpack.c.l.b16 %v2050
      %v2476 = vunpack.c.h.b16 %v2050
      %v2477 = vunpack.c.l.b16 %v2051
      %v2478 = vunpack.c.h.b16 %v2051
      %v2479 = vunpack.c.l.b16 %v2052
      %v2480 = vunpack.c.h.b16 %v2052
      %v2481 = vunpack.c.l.b16 %v2053
      %v2482 = vunpack.c.h.b16 %v2053
      %v2483 = vunpack.c.l.b16 %v2054
      %v2484 = vunpack.c.h.b16 %v2054
      %v2485 = vunpack.c.l.b16 %v2055
      %v2486 = vunpack.c.h.b16 %v2055
      %v2487 = vunpack.c.l.b16 %v2056
      %v2488 = vunpack.c.h.b16 %v2056
      %v2489 = vunpack.c.l.b16 %v2057
      %v2490 = vunpack.c.h.b16 %v2057
      %v2491 = vunpack.c.l.b16 %v2058
      %v2492 = vunpack.c.h.b16 %v2058
      %v2493 = vunpack.c.l.b16 %v2059
      %v2494 = vunpack.c.h.b16 %v2059
      %v2495 = vunpack.c.l.b16 %v2060
      %v2496 = vunpack.c.h.b16 %v2060
      %v2497 = vunpack.c.l.b16 %v2061
      %v2498 = vunpack.c.h.b16 %v2061
      %v2499 = vunpack.c.l.b16 %v2062
      %v2500 = vunpack.c.h.b16 %v2062
      %v2501 = vunpack.c.l.b16 %v2063
      %v2502 = vunpack.c.h.b16 %v2063
      %v2503 = vunpack.c.l.b16 %v2064
      %v2504 = vunpack.c.h.b16 %v2064
      %v2505 = vunpack.c.l.b16 %v2065
      %v2506 = vunpack.c.h.b16 %v2065
      %v2507 = vunpack.c.l.b16 %v2066
      %v2508 = vunpack.c.h.b16 %v2066
      %v2509 = vunpack.c.l.b16 %v2067
      %v2510 = vunpack.c.h.b16 %v2067
      %v2511 = vunpack.c.l.b16 %v2068
      %v2512 = vunpack.c.h.b16 %v2068
      %v2513 = vunpack.c.l.b16 %v2069
      %v2514 = vunpack.c.h.b16 %v2069
      %v2515 = vunpack.c.l.b16 %v2070
      %v2516 = vunpack.c.h.b16 %v2070
      %v2517 = vunpack.c.l.b16 %v2071
      %v2518 = vunpack.c.h.b16 %v2071
      %v2519 = vunpack.c.l.b16 %v2072
      %v2520 = vunpack.c.h.b16 %v2072
      %v2521 = vunpack.c.l.b16 %v2073
      %v2522 = vunpack.c.h.b16 %v2073
      %v2523 = vunpack.c.l.b16 %v2074
      %v2524 = vunpack.c.h.b16 %v2074
      %v2525 = vunpack.c.l.b16 %v2075
      %v2526 = vunpack.c.h.b16 %v2075
      %v2527 = vunpack.c.l.b16 %v2076
      %v2528 = vunpack.c.h.b16 %v2076
      %v2529 = vpack.c.b16 %v2469, %v2449
      %v2530 = vpack.c.b16 %v2470, %v2450
      %v2531 = vpack.c.b16 %v2471, %v2451
      %v2532 = vpack.c.b16 %v2472, %v2452
      %v2533 = vpack.c.b16 %v2473, %v2453
      %v2534 = vpack.c.b16 %v2474, %v2454
      %v2535 = vpack.c.b16 %v2475, %v2455
      %v2536 = vpack.c.b16 %v2476, %v2456
      %v2537 = vpack.c.b16 %v2477, %v2457
      %v2538 = vpack.c.b16 %v2478, %v2458
      %v2539 = vpack.c.b16 %v2479, %v2459
      %v2540 = vpack.c.b16 %v2480, %v2460
      %v2541 = vpack.c.b16 %v2481, %v2461
      %v2542 = vpack.c.b16 %v2482, %v2462
      %v2543 = vpack.c.b16 %v2483, %v2463
      %v2544 = vpack.c.b16 %v2484, %v2464
      %v2545 = vpack.c.b16 %v2485, %v2465
      %v2546 = vpack.c.b16 %v2486, %v2466
      %v2547 = vpack.c.b16 %v2487, %v2467
      %v2548 = vpack.c.b16 %v2488, %v2468
      %v2549 = vpack.c.b16 %v2509, %v2489
      %v2550 = vpack.c.b16 %v2510, %v2490
      %v2551 = vpack.c.b16 %v2511, %v2491
      %v2552 = vpack.c.b16 %v2512, %v2492
      %v2553 = vpack.c.b16 %v2513, %v2493
      %v2554 = vpack.c.b16 %v2514, %v2494
      %v2555 = vpack.c.b16 %v2515, %v2495
      %v2556 = vpack.c.b16 %v2516, %v2496
      %v2557 = vpack.c.b16 %v2517, %v2497
      %v2558 = vpack.c.b16 %v2518, %v2498
      %v2559 = vpack.c.b16 %v2519, %v2499
      %v2560 = vpack.c.b16 %v2520, %v2500
      %v2561 = vpack.c.b16 %v2521, %v2501
      %v2562 = vpack.c.b16 %v2522, %v2502
      %v2563 = vpack.c.b16 %v2523, %v2503
      %v2564 = vpack.c.b16 %v2524, %v2504
      %v2565 = vpack.c.b16 %v2525, %v2505
      %v2566 = vpack.c.b16 %v2526, %v2506
      %v2567 = vpack.c.b16 %v2527, %v2507
      %v2568 = vpack.c.b16 %v2528, %v2508
      %v2929 = vunpack.c.l.b16 %v2077
      %v2930 = vunpack.c.h.b16 %v2077
      %v2931 = vunpack.c.l.b16 %v2078
      %v2932 = vunpack.c.h.b16 %v2078
      %v2933 = vunpack.c.l.b16 %v2079
      %v2934 = vunpack.c.h.b16 %v2079
      %v2935 = vunpack.c.l.b16 %v2080
      %v2936 = vunpack.c.h.b16 %v2080
      %v2937 = vunpack.c.l.b16 %v2081
      %v2938 = vunpack.c.h.b16 %v2081
      %v2939 = vunpack.c.l.b16 %v2082
      %v2940 = vunpack.c.h.b16 %v2082
      %v2941 = vunpack.c.l.b16 %v2083
      %v2942 = vunpack.c.h.b16 %v2083
      %v2943 = vunpack.c.l.b16 %v2084
      %v2944 = vunpack.c.h.b16 %v2084
      %v2945 = vunpack.c.l.b16 %v2085
      %v2946 = vunpack.c.h.b16 %v2085
      %v2947 = vunpack.c.l.b16 %v2086
      %v2948 = vunpack.c.h.b16 %v2086
      %v2949 = vunpack.c.l.b16 %v2087
      %v2950 = vunpack.c.h.b16 %v2087
      %v2951 = vunpack.c.l.b16 %v2088
      %v2952 = vunpack.c.h.b16 %v2088
      %v2953 = vunpack.c.l.b16 %v2089
      %v2954 = vunpack.c.h.b16 %v2089
      %v2955 = vunpack.c.l.b16 %v2090
      %v2956 = vunpack.c.h.b16 %v2090
      %v2957 = vunpack.c.l.b16 %v2091
      %v2958 = vunpack.c.h.b16 %v2091
      %v2959 = vunpack.c.l.b16 %v2092
      %v2960 = vunpack.c.h.b16 %v2092
      %v2961 = vunpack.c.l.b16 %v2093
      %v2962 = vunpack.c.h.b16 %v2093
      %v2963 = vunpack.c.l.b16 %v2094
      %v2964 = vunpack.c.h.b16 %v2094
      %v2965 = vunpack.c.l.b16 %v2095
      %v2966 = vunpack.c.h.b16 %v2095
      %v2967 = vunpack.c.l.b16 %v2096
      %v2968 = vunpack.c.h.b16 %v2096
      %v2969 = vunpack.c.l.b16 %v2097
      %v2970 = vunpack.c.h.b16 %v2097
      %v2971 = vunpack.c.l.b16 %v2098
      %v2972 = vunpack.c.h.b16 %v2098
      %v2973 = vunpack.c.l.b16 %v2099
      %v2974 = vunpack.c.h.b16 %v2099
      %v2975 = vunpack.c.l.b16 %v2100
      %v2976 = vunpack.c.h.b16 %v2100
      %v2977 = vunpack.c.l.b16 %v2101
      %v2978 = vunpack.c.h.b16 %v2101
      %v2979 = vunpack.c.l.b16 %v2102
      %v2980 = vunpack.c.h.b16 %v2102
      %v2981 = vunpack.c.l.b16 %v2103
      %v2982 = vunpack.c.h.b16 %v2103
      %v2983 = vunpack.c.l.b16 %v2104
      %v2984 = vunpack.c.h.b16 %v2104
      %v2985 = vunpack.c.l.b16 %v2105
      %v2986 = vunpack.c.h.b16 %v2105
      %v2987 = vunpack.c.l.b16 %v2106
      %v2988 = vunpack.c.h.b16 %v2106
      %v2989 = vunpack.c.l.b16 %v2107
      %v2990 = vunpack.c.h.b16 %v2107
      %v2991 = vunpack.c.l.b16 %v2108
      %v2992 = vunpack.c.h.b16 %v2108
      %v2993 = vunpack.c.l.b16 %v2109
      %v2994 = vunpack.c.h.b16 %v2109
      %v2995 = vunpack.c.l.b16 %v2110
      %v2996 = vunpack.c.h.b16 %v2110
      %v2997 = vunpack.c.l.b16 %v2111
      %v2998 = vunpack.c.h.b16 %v2111
      %v2999 = vunpack.c.l.b16 %v2112
      %v3000 = vunpack.c.h.b16 %v2112
      %v3001 = vunpack.c.l.b16 %v2113
      %v3002 = vunpack.c.h.b16 %v2113
      %v3003 = vunpack.c.l.b16 %v2114
      %v3004 = vunpack.c.h.b16 %v2114
      %v3005 = vunpack.c.l.b16 %v2115
      %v3006 = vunpack.c.h.b16 %v2115
      %v3007 = vunpack.c.l.b16 %v2116
      %v3008 = vunpack.c.h.b16 %v2116
      %v3009 = vunpack.c.l.b16 %v2117
      %v3010 = vunpack.c.h.b16 %v2117
      %v3011 = vunpack.c.l.b16 %v2118
      %v3012 = vunpack.c.h.b16 %v2118
      %v3013 = vunpack.c.l.b16 %v2119
      %v3014 = vunpack.c.h.b16 %v2119
      %v3015 = vunpack.c.l.b16 %v2120
      %v3016 = vunpack.c.h.b16 %v2120
      %v3017 = vunpack.c.l.b16 %v2121
      %v3018 = vunpack.c.h.b16 %v2121
      %v3019 = vunpack.c.l.b16 %v2122
      %v3020 = vunpack.c.h.b16 %v2122
      %v3021 = vunpack.c.l.b16 %v2123
      %v3022 = vunpack.c.h.b16 %v2123
      %v3023 = vunpack.c.l.b16 %v2124
      %v3024 = vunpack.c.h.b16 %v2124
      %v3025 = vunpack.c.l.b16 %v2125
      %v3026 = vunpack.c.h.b16 %v2125
      %v3027 = vunpack.c.l.b16 %v2126
      %v3028 = vunpack.c.h.b16 %v2126
      %v3029 = vunpack.c.l.b16 %v2127
      %v3030 = vunpack.c.h.b16 %v2127
      %v3031 = vunpack.c.l.b16 %v2128
      %v3032 = vunpack.c.h.b16 %v2128
      %v3033 = vunpack.c.l.b16 %v2129
      %v3034 = vunpack.c.h.b16 %v2129
      %v3035 = vunpack.c.l.b16 %v2130
      %v3036 = vunpack.c.h.b16 %v2130
      %v3037 = vunpack.c.l.b16 %v2131
      %v3038 = vunpack.c.h.b16 %v2131
      %v3039 = vunpack.c.l.b16 %v2132
      %v3040 = vunpack.c.h.b16 %v2132
      %v3041 = vunpack.c.l.b16 %v2133
      %v3042 = vunpack.c.h.b16 %v2133
      %v3043 = vunpack.c.l.b16 %v2134
      %v3044 = vunpack.c.h.b16 %v2134
      %v3045 = vunpack.c.l.b16 %v2135
      %v3046 = vunpack.c.h.b16 %v2135
      %v3047 = vunpack.c.l.b16 %v2136
      %v3048 = vunpack.c.h.b16 %v2136
      %v3049 = vunpack.c.l.b16 %v2137
      %v3050 = vunpack.c.h.b16 %v2137
      %v3051 = vunpack.c.l.b16 %v2138
      %v3052 = vunpack.c.h.b16 %v2138
      %v3053 = vunpack.c.l.b16 %v2139
      %v3054 = vunpack.c.h.b16 %v2139
      %v3055 = vunpack.c.l.b16 %v2140
      %v3056 = vunpack.c.h.b16 %v2140
      %v3057 = vunpack.c.l.b16 %v2141
      %v3058 = vunpack.c.h.b16 %v2141
      %v3059 = vunpack.c.l.b16 %v2142
      %v3060 = vunpack.c.h.b16 %v2142
      %v3061 = vunpack.c.l.b16 %v2143
      %v3062 = vunpack.c.h.b16 %v2143
      %v3063 = vunpack.c.l.b16 %v2144
      %v3064 = vunpack.c.h.b16 %v2144
      %v3065 = vunpack.c.l.b16 %v2145
      %v3066 = vunpack.c.h.b16 %v2145
      %v3067 = vunpack.c.l.b16 %v2146
      %v3068 = vunpack.c.h.b16 %v2146
      %v3069 = vunpack.c.l.b16 %v2147
      %v3070 = vunpack.c.h.b16 %v2147
      %v3071 = vunpack.c.l.b16 %v2148
      %v3072 = vunpack.c.h.b16 %v2148
      %v3073 = vunpack.c.l.b16 %v2149
      %v3074 = vunpack.c.h.b16 %v2149
      %v3075 = vunpack.c.l.b16 %v2150
      %v3076 = vunpack.c.h.b16 %v2150
      %v3077 = vunpack.c.l.b16 %v2151
      %v3078 = vunpack.c.h.b16 %v2151
      %v3079 = vunpack.c.l.b16 %v2152
      %v3080 = vunpack.c.h.b16 %v2152
      %v3081 = vunpack.c.l.b16 %v2153
      %v3082 = vunpack.c.h.b16 %v2153
      %v3083 = vunpack.c.l.b16 %v2154
      %v3084 = vunpack.c.h.b16 %v2154
      %v3085 = vunpack.c.l.b16 %v2155
      %v3086 = vunpack.c.h.b16 %v2155
      %v3087 = vunpack.c.l.b16 %v2156
      %v3088 = vunpack.c.h.b16 %v2156
      %v3089 = vunpack.c.l.b16 %v2157
      %v3090 = vunpack.c.h.b16 %v2157
      %v3091 = vunpack.c.l.b16 %v2158
      %v3092 = vunpack.c.h.b16 %v2158
      %v3093 = vunpack.c.l.b16 %v2159
      %v3094 = vunpack.c.h.b16 %v2159
      %v3095 = vunpack.c.l.b16 %v2160
      %v3096 = vunpack.c.h.b16 %v2160
      %v3097 = vunpack.c.l.b16 %v2161
      %v3098 = vunpack.c.h.b16 %v2161
      %v3099 = vunpack.c.l.b16 %v2162
      %v3100 = vunpack.c.h.b16 %v2162
      %v3101 = vunpack.c.l.b16 %v2163
      %v3102 = vunpack.c.h.b16 %v2163
      %v3103 = vunpack.c.l.b16 %v2164
      %v3104 = vunpack.c.h.b16 %v2164
      %v3105 = vunpack.c.l.b16 %v2165
      %v3106 = vunpack.c.h.b16 %v2165
      %v3107 = vunpack.c.l.b16 %v2166
      %v3108 = vunpack.c.h.b16 %v2166
      %v3109 = vunpack.c.l.b16 %v2167
      %v3110 = vunpack.c.h.b16 %v2167
      %v3111 = vunpack.c.l.b16 %v2168
      %v3112 = vunpack.c.h.b16 %v2168
      %v3113 = vunpack.c.l.b16 %v2169
      %v3114 = vunpack.c.h.b16 %v2169
      %v3115 = vunpack.c.l.b16 %v2170
      %v3116 = vunpack.c.h.b16 %v2170
      %v3117 = vunpack.c.l.b16 %v2171
      %v3118 = vunpack.c.h.b16 %v2171
      %v3119 = vunpack.c.l.b16 %v2172
      %v3120 = vunpack.c.h.b16 %v2172
      %v3121 = vunpack.c.l.b16 %v2173
      %v3122 = vunpack.c.h.b16 %v2173
      %v3123 = vunpack.c.l.b16 %v2174
      %v3124 = vunpack.c.h.b16 %v2174
      %v3125 = vunpack.c.l.b16 %v2175
      %v3126 = vunpack.c.h.b16 %v2175
      %v3127 = vunpack.c.l.b16 %v2176
      %v3128 = vunpack.c.h.b16 %v2176
      %v3129 = vunpack.c.l.b16 %v2177
      %v3130 = vunpack.c.h.b16 %v2177
      %v3131 = vunpack.c.l.b16 %v2178
      %v3132 = vunpack.c.h.b16 %v2178
      %v3133 = vunpack.c.l.b16 %v2179
      %v3134 = vunpack.c.h.b16 %v2179
      %v3135 = vunpack.c.l.b16 %v2180
      %v3136 = vunpack.c.h.b16 %v2180
      %v3137 = vunpack.c.l.b16 %v2181
      %v3138 = vunpack.c.h.b16 %v2181
      %v3139 = vunpack.c.l.b16 %v2182
      %v3140 = vunpack.c.h.b16 %v2182
      %v3141 = vunpack.c.l.b16 %v2183
      %v3142 = vunpack.c.h.b16 %v2183
      %v3143 = vunpack.c.l.b16 %v2184
      %v3144 = vunpack.c.h.b16 %v2184
      %v3145 = vunpack.c.l.b16 %v2185
      %v3146 = vunpack.c.h.b16 %v2185
      %v3147 = vunpack.c.l.b16 %v2186
      %v3148 = vunpack.c.h.b16 %v2186
      %v3149 = vunpack.c.l.b16 %v2187
      %v3150 = vunpack.c.h.b16 %v2187
      %v3151 = vunpack.c.l.b16 %v2188
      %v3152 = vunpack.c.h.b16 %v2188
      %v3153 = vunpack.c.l.b16 %v2189
      %v3154 = vunpack.c.h.b16 %v2189
      %v3155 = vunpack.c.l.b16 %v2190
      %v3156 = vunpack.c.h.b16 %v2190
      %v3157 = vunpack.c.l.b16 %v2191
      %v3158 = vunpack.c.h.b16 %v2191
      %v3159 = vunpack.c.l.b16 %v2192
      %v3160 = vunpack.c.h.b16 %v2192
      %v3161 = vunpack.c.l.b16 %v2193
      %v3162 = vunpack.c.h.b16 %v2193
      %v3163 = vunpack.c.l.b16 %v2194
      %v3164 = vunpack.c.h.b16 %v2194
      %v3165 = vunpack.c.l.b16 %v2195
      %v3166 = vunpack.c.h.b16 %v2195
      %v3167 = vunpack.c.l.b16 %v2196
      %v3168 = vunpack.c.h.b16 %v2196
      %v3169 = vunpack.c.l.b16 %v2197
      %v3170 = vunpack.c.h.b16 %v2197
      %v3171 = vunpack.c.l.b16 %v2198
      %v3172 = vunpack.c.h.b16 %v2198
      %v3173 = vunpack.c.l.b16 %v2199
      %v3174 = vunpack.c.h.b16 %v2199
      %v3175 = vunpack.c.l.b16 %v2200
      %v3176 = vunpack.c.h.b16 %v2200
      %v3177 = vunpack.c.l.b16 %v2201
      %v3178 = vunpack.c.h.b16 %v2201
      %v3179 = vunpack.c.l.b16 %v2202
      %v3180 = vunpack.c.h.b16 %v2202
      %v3181 = vunpack.c.l.b16 %v2203
      %v3182 = vunpack.c.h.b16 %v2203
      %v3183 = vunpack.c.l.b16 %v2204
      %v3184 = vunpack.c.h.b16 %v2204
      %v3185 = vunpack.c.l.b16 %v2205
      %v3186 = vunpack.c.h.b16 %v2205
      %v3187 = vunpack.c.l.b16 %v2206
      %v3188 = vunpack.c.h.b16 %v2206
      %v3189 = vunpack.c.l.b16 %v2207
      %v3190 = vunpack.c.h.b16 %v2207
      %v3191 = vunpack.c.l.b16 %v2208
      %v3192 = vunpack.c.h.b16 %v2208
      %v3193 = vunpack.c.l.b16 %v2209
      %v3194 = vunpack.c.h.b16 %v2209
      %v3195 = vunpack.c.l.b16 %v2210
      %v3196 = vunpack.c.h.b16 %v2210
      %v3197 = vunpack.c.l.b16 %v2211
      %v3198 = vunpack.c.h.b16 %v2211
      %v3199 = vunpack.c.l.b16 %v2212
      %v3200 = vunpack.c.h.b16 %v2212
      %v3201 = vunpack.c.l.b16 %v2213
      %v3202 = vunpack.c.h.b16 %v2213
      %v3203 = vunpack.c.l.b16 %v2214
      %v3204 = vunpack.c.h.b16 %v2214
      %v3205 = vunpack.c.l.b16 %v2215
      %v3206 = vunpack.c.h.b16 %v2215
      %v3207 = vunpack.c.l.b16 %v2216
      %v3208 = vunpack.c.h.b16 %v2216
      %v3209 = vunpack.c.l.b16 %v2217
      %v3210 = vunpack.c.h.b16 %v2217
      %v3211 = vunpack.c.l.b16 %v2218
      %v3212 = vunpack.c.h.b16 %v2218
      %v3213 = vunpack.c.l.b16 %v2219
      %v3214 = vunpack.c.h.b16 %v2219
      %v3215 = vunpack.c.l.b16 %v2220
      %v3216 = vunpack.c.h.b16 %v2220
      %v3217 = vunpack.c.l.b16 %v2221
      %v3218 = vunpack.c.h.b16 %v2221
      %v3219 = vunpack.c.l.b16 %v2222
      %v3220 = vunpack.c.h.b16 %v2222
      %v3221 = vunpack.c.l.b16 %v2223
      %v3222 = vunpack.c.h.b16 %v2223
      %v3223 = vunpack.c.l.b16 %v2224
      %v3224 = vunpack.c.h.b16 %v2224
      %v3225 = vunpack.c.l.b16 %v2225
      %v3226 = vunpack.c.h.b16 %v2225
      %v3227 = vunpack.c.l.b16 %v2226
      %v3228 = vunpack.c.h.b16 %v2226
      %v3229 = vunpack.c.l.b16 %v2227
      %v3230 = vunpack.c.h.b16 %v2227
      %v3231 = vunpack.c.l.b16 %v2228
      %v3232 = vunpack.c.h.b16 %v2228
      %v3233 = vunpack.c.l.b16 %v2229
      %v3234 = vunpack.c.h.b16 %v2229
      %v3235 = vunpack.c.l.b16 %v2230
      %v3236 = vunpack.c.h.b16 %v2230
      %v3237 = vunpack.c.l.b16 %v2231
      %v3238 = vunpack.c.h.b16 %v2231
      %v3239 = vunpack.c.l.b16 %v2232
      %v3240 = vunpack.c.h.b16 %v2232
      %v3241 = vunpack.c.l.b16 %v2233
      %v3242 = vunpack.c.h.b16 %v2233
      %v3243 = vunpack.c.l.b16 %v2234
      %v3244 = vunpack.c.h.b16 %v2234
      %v3245 = vunpack.c.l.b16 %v2235
      %v3246 = vunpack.c.h.b16 %v2235
      %v3247 = vunpack.c.l.b16 %v2236
      %v3248 = vunpack.c.h.b16 %v2236
      %v3249 = vunpack.c.l.b16 %v2237
      %v3250 = vunpack.c.h.b16 %v2237
      %v3251 = vunpack.c.l.b16 %v2238
      %v3252 = vunpack.c.h.b16 %v2238
      %v3253 = vunpack.c.l.b16 %v2239
      %v3254 = vunpack.c.h.b16 %v2239
      %v3255 = vunpack.c.l.b16 %v2240
      %v3256 = vunpack.c.h.b16 %v2240
      %v3257 = vunpack.c.l.b16 %v2241
      %v3258 = vunpack.c.h.b16 %v2241
      %v3259 = vunpack.c.l.b16 %v2242
      %v3260 = vunpack.c.h.b16 %v2242
      %v3261 = vunpack.c.l.b16 %v2243
      %v3262 = vunpack.c.h.b16 %v2243
      %v3263 = vunpack.c.l.b16 %v2244
      %v3264 = vunpack.c.h.b16 %v2244
      %v3265 = vunpack.c.l.b16 %v2245
      %v3266 = vunpack.c.h.b16 %v2245
      %v3267 = vunpack.c.l.b16 %v2246
      %v3268 = vunpack.c.h.b16 %v2246
      %v3269 = vunpack.c.l.b16 %v2247
      %v3270 = vunpack.c.h.b16 %v2247
      %v3271 = vunpack.c.l.b16 %v2248
      %v3272 = vunpack.c.h.b16 %v2248
      %v3273 = vunpack.c.l.b16 %v2249
      %v3274 = vunpack.c.h.b16 %v2249
      %v3275 = vunpack.c.l.b16 %v2250
      %v3276 = vunpack.c.h.b16 %v2250
      %v3277 = vunpack.c.l.b16 %v2251
      %v3278 = vunpack.c.h.b16 %v2251
      %v3279 = vunpack.c.l.b16 %v2252
      %v3280 = vunpack.c.h.b16 %v2252
      %v3281 = vunpack.c.l.b16 %v2253
      %v3282 = vunpack.c.h.b16 %v2253
      %v3283 = vunpack.c.l.b16 %v2254
      %v3284 = vunpack.c.h.b16 %v2254
      %v3285 = vunpack.c.l.b16 %v2255
      %v3286 = vunpack.c.h.b16 %v2255
      %v3287 = vunpack.c.l.b16 %v2256
      %v3288 = vunpack.c.h.b16 %v2256
      %v3289 = vunpack.c.l.b16 %v2257
      %v3290 = vunpack.c.h.b16 %v2257
      %v3291 = vunpack.c.l.b16 %v2258
      %v3292 = vunpack.c.h.b16 %v2258
      %v3293 = vunpack.c.l.b16 %v2259
      %v3294 = vunpack.c.h.b16 %v2259
      %v3295 = vunpack.c.l.b16 %v2260
      %v3296 = vunpack.c.h.b16 %v2260
      %v3297 = vunpack.c.l.b16 %v2261
      %v3298 = vunpack.c.h.b16 %v2261
      %v3299 = vunpack.c.l.b16 %v2262
      %v3300 = vunpack.c.h.b16 %v2262
      %v3301 = vunpack.c.l.b16 %v2263
      %v3302 = vunpack.c.h.b16 %v2263
      %v3303 = vunpack.c.l.b16 %v2264
      %v3304 = vunpack.c.h.b16 %v2264
      %v3305 = vunpack.c.l.b16 %v2265
      %v3306 = vunpack.c.h.b16 %v2265
      %v3307 = vunpack.c.l.b16 %v2266
      %v3308 = vunpack.c.h.b16 %v2266
      %v3309 = vunpack.c.l.b16 %v2267
      %v3310 = vunpack.c.h.b16 %v2267
      %v3311 = vunpack.c.l.b16 %v2268
      %v3312 = vunpack.c.h.b16 %v2268
      %v3313 = vunpack.c.l.b16 %v2269
      %v3314 = vunpack.c.h.b16 %v2269
      %v3315 = vunpack.c.l.b16 %v2270
      %v3316 = vunpack.c.h.b16 %v2270
      %v3317 = vunpack.c.l.b16 %v2271
      %v3318 = vunpack.c.h.b16 %v2271
      %v3319 = vunpack.c.l.b16 %v2272
      %v3320 = vunpack.c.h.b16 %v2272
      %v3321 = vunpack.c.l.b16 %v2273
      %v3322 = vunpack.c.h.b16 %v2273
      %v3323 = vunpack.c.l.b16 %v2274
      %v3324 = vunpack.c.h.b16 %v2274
      %v3325 = vunpack.c.l.b16 %v2275
      %v3326 = vunpack.c.h.b16 %v2275
      %v3327 = vunpack.c.l.b16 %v2276
      %v3328 = vunpack.c.h.b16 %v2276
      %v3329 = vunpack.c.l.b16 %v2277
      %v3330 = vunpack.c.h.b16 %v2277
      %v3331 = vunpack.c.l.b16 %v2278
      %v3332 = vunpack.c.h.b16 %v2278
      %v3333 = vunpack.c.l.b16 %v2279
      %v3334 = vunpack.c.h.b16 %v2279
      %v3335 = vunpack.c.l.b16 %v2280
      %v3336 = vunpack.c.h.b16 %v2280
      %v3337 = vunpack.c.l.b16 %v2281
      %v3338 = vunpack.c.h.b16 %v2281
      %v3339 = vunpack.c.l.b16 %v2282
      %v3340 = vunpack.c.h.b16 %v2282
      %v3341 = vunpack.c.l.b16 %v2283
      %v3342 = vunpack.c.h.b16 %v2283
      %v3343 = vunpack.c.l.b16 %v2284
      %v3344 = vunpack.c.h.b16 %v2284
      %v3345 = vunpack.c.l.b16 %v2285
      %v3346 = vunpack.c.h.b16 %v2285
      %v3347 = vunpack.c.l.b16 %v2286
      %v3348 = vunpack.c.h.b16 %v2286
      %v3349 = vunpack.c.l.b16 %v2287
      %v3350 = vunpack.c.h.b16 %v2287
      %v3351 = vunpack.c.l.b16 %v2288
      %v3352 = vunpack.c.h.b16 %v2288
      %v3353 = vunpack.c.l.b16 %v2289
      %v3354 = vunpack.c.h.b16 %v2289
      %v3355 = vunpack.c.l.b16 %v2290
      %v3356 = vunpack.c.h.b16 %v2290
      %v3357 = vunpack.c.l.b16 %v2291
      %v3358 = vunpack.c.h.b16 %v2291
      %v3359 = vunpack.c.l.b16 %v2292
      %v3360 = vunpack.c.h.b16 %v2292
      %v3361 = vunpack.c.l.b16 %v2293
      %v3362 = vunpack.c.h.b16 %v2293
      %v3363 = vunpack.c.l.b16 %v2294
      %v3364 = vunpack.c.h.b16 %v2294
      %v3365 = vunpack.c.l.b16 %v2295
      %v3366 = vunpack.c.h.b16 %v2295
      %v3367 = vunpack.c.l.b16 %v2296
      %v3368 = vunpack.c.h.b16 %v2296
      %v3369 = vunpack.c.l.b16 %v2297
      %v3370 = vunpack.c.h.b16 %v2297
      %v3371 = vunpack.c.l.b16 %v2298
      %v3372 = vunpack.c.h.b16 %v2298
      %v3373 = vunpack.c.l.b16 %v2299
      %v3374 = vunpack.c.h.b16 %v2299
      %v3375 = vunpack.c.l.b16 %v2300
      %v3376 = vunpack.c.h.b16 %v2300
      %v3377 = vunpack.c.l.b16 %v2301
      %v3378 = vunpack.c.h.b16 %v2301
      %v3379 = vunpack.c.l.b16 %v2302
      %v3380 = vunpack.c.h.b16 %v2302
      %v3381 = vunpack.c.l.b16 %v2303
      %v3382 = vunpack.c.h.b16 %v2303
      %v3383 = vunpack.c.l.b16 %v2304
      %v3384 = vunpack.c.h.b16 %v2304
      %v3385 = vunpack.c.l.b16 %v2305
      %v3386 = vunpack.c.h.b16 %v2305
      %v3387 = vunpack.c.l.b16 %v2306
      %v3388 = vunpack.c.h.b16 %v2306
      %v3389 = vunpack.c.l.b16 %v2307
      %v3390 = vunpack.c.h.b16 %v2307
      %v3391 = vunpack.c.l.b16 %v2308
      %v3392 = vunpack.c.h.b16 %v2308
      %v3393 = vunpack.c.l.b16 %v2309
      %v3394 = vunpack.c.h.b16 %v2309
      %v3395 = vunpack.c.l.b16 %v2310
      %v3396 = vunpack.c.h.b16 %v2310
      %v3397 = vunpack.c.l.b16 %v2311
      %v3398 = vunpack.c.h.b16 %v2311
      %v3399 = vunpack.c.l.b16 %v2312
      %v3400 = vunpack.c.h.b16 %v2312
      %v3401 = vunpack.c.l.b16 %v2313
      %v3402 = vunpack.c.h.b16 %v2313
      %v3403 = vunpack.c.l.b16 %v2314
      %v3404 = vunpack.c.h.b16 %v2314
      %v3405 = vunpack.c.l.b16 %v2315
      %v3406 = vunpack.c.h.b16 %v2315
      %v3407 = vunpack.c.l.b16 %v2316
      %v3408 = vunpack.c.h.b16 %v2316
      %v3409 = vunpack.c.l.b16 %v2317
      %v3410 = vunpack.c.h.b16 %v2317
      %v3411 = vunpack.c.l.b16 %v2318
      %v3412 = vunpack.c.h.b16 %v2318
      %v3413 = vunpack.c.l.b16 %v2319
      %v3414 = vunpack.c.h.b16 %v2319
      %v3415 = vunpack.c.l.b16 %v2320
      %v3416 = vunpack.c.h.b16 %v2320
      %v3417 = vunpack.c.l.b16 %v2321
      %v3418 = vunpack.c.h.b16 %v2321
      %v3419 = vunpack.c.l.b16 %v2322
      %v3420 = vunpack.c.h.b16 %v2322
      %v3421 = vunpack.c.l.b16 %v2323
      %v3422 = vunpack.c.h.b16 %v2323
      %v3423 = vunpack.c.l.b16 %v2324
      %v3424 = vunpack.c.h.b16 %v2324
      %v3425 = vunpack.c.l.b16 %v2325
      %v3426 = vunpack.c.h.b16 %v2325
      %v3427 = vunpack.c.l.b16 %v2326
      %v3428 = vunpack.c.h.b16 %v2326
      %v3429 = vunpack.c.l.b16 %v2327
      %v3430 = vunpack.c.h.b16 %v2327
      %v3431 = vunpack.c.l.b16 %v2328
      %v3432 = vunpack.c.h.b16 %v2328
      %v3433 = vunpack.c.l.b16 %v2329
      %v3434 = vunpack.c.h.b16 %v2329
      %v3435 = vunpack.c.l.b16 %v2330
      %v3436 = vunpack.c.h.b16 %v2330
      %v3437 = vunpack.c.l.b16 %v2331
      %v3438 = vunpack.c.h.b16 %v2331
      %v3439 = vunpack.c.l.b16 %v2332
      %v3440 = vunpack.c.h.b16 %v2332
      %v3441 = vunpack.c.l.b16 %v2333
      %v3442 = vunpack.c.h.b16 %v2333
      %v3443 = vunpack.c.l.b16 %v2334
      %v3444 = vunpack.c.h.b16 %v2334
      %v3445 = vunpack.c.l.b16 %v2335
      %v3446 = vunpack.c.h.b16 %v2335
      %v3447 = vunpack.c.l.b16 %v2336
      %v3448 = vunpack.c.h.b16 %v2336
      %v3449 = vunpack.c.l.b16 %v2337
      %v3450 = vunpack.c.h.b16 %v2337
      %v3451 = vunpack.c.l.b16 %v2338
      %v3452 = vunpack.c.h.b16 %v2338
      %v3453 = vunpack.c.l.b16 %v2339
      %v3454 = vunpack.c.h.b16 %v2339
      %v3455 = vunpack.c.l.b16 %v2340
      %v3456 = vunpack.c.h.b16 %v2340
      %v3457 = vunpack.c.l.b16 %v2341
      %v3458 = vunpack.c.h.b16 %v2341
      %v3459 = vunpack.c.l.b16 %v2342
      %v3460 = vunpack.c.h.b16 %v2342
      %v3461 = vunpack.c.l.b16 %v2343
      %v3462 = vunpack.c.h.b16 %v2343
      %v3463 = vunpack.c.l.b16 %v2344
      %v3464 = vunpack.c.h.b16 %v2344
      %v3465 = vunpack.c.l.b16 %v2345
      %v3466 = vunpack.c.h.b16 %v2345
      %v3467 = vunpack.c.l.b16 %v2346
      %v3468 = vunpack.c.h.b16 %v2346
      %v3469 = vunpack.c.l.b16 %v2347
      %v3470 = vunpack.c.h.b16 %v2347
      %v3471 = vunpack.c.l.b16 %v2348
      %v3472 = vunpack.c.h.b16 %v2348
      %v3473 = vunpack.c.l.b16 %v2349
      %v3474 = vunpack.c.h.b16 %v2349
      %v3475 = vunpack.c.l.b16 %v2350
      %v3476 = vunpack.c.h.b16 %v2350
      %v3477 = vunpack.c.l.b16 %v2351
      %v3478 = vunpack.c.h.b16 %v2351
      %v3479 = vunpack.c.l.b16 %v2352
      %v3480 = vunpack.c.h.b16 %v2352
      %v3481 = vunpack.c.l.b16 %v2353
      %v3482 = vunpack.c.h.b16 %v2353
      %v3483 = vunpack.c.l.b16 %v2354
      %v3484 = vunpack.c.h.b16 %v2354
      %v3485 = vunpack.c.l.b16 %v2355
      %v3486 = vunpack.c.h.b16 %v2355
      %v3487 = vunpack.c.l.b16 %v2356
      %v3488 = vunpack.c.h.b16 %v2356
      %v3489 = vunpack.c.l.b16 %v2357
      %v3490 = vunpack.c.h.b16 %v2357
      %v3491 = vunpack.c.l.b16 %v2358
      %v3492 = vunpack.c.h.b16 %v2358
      %v3493 = vunpack.c.l.b16 %v2359
      %v3494 = vunpack.c.h.b16 %v2359
      %v3495 = vunpack.c.l.b16 %v2360
      %v3496 = vunpack.c.h.b16 %v2360
      %v3497 = vunpack.c.l.b16 %v2361
      %v3498 = vunpack.c.h.b16 %v2361
      %v3499 = vunpack.c.l.b16 %v2362
      %v3500 = vunpack.c.h.b16 %v2362
      %v3501 = vunpack.c.l.b16 %v2363
      %v3502 = vunpack.c.h.b16 %v2363
      %v3503 = vunpack.c.l.b16 %v2364
      %v3504 = vunpack.c.h.b16 %v2364
      %v3505 = vunpack.c.l.b16 %v2365
      %v3506 = vunpack.c.h.b16 %v2365
      %v3507 = vunpack.c.l.b16 %v2366
      %v3508 = vunpack.c.h.b16 %v2366
      %v3509 = vunpack.c.l.b16 %v2367
      %v3510 = vunpack.c.h.b16 %v2367
      %v3511 = vunpack.c.l.b16 %v2368
      %v3512 = vunpack.c.h.b16 %v2368
      %v3513 = vunpack.c.l.b16 %v2369
      %v3514 = vunpack.c.h.b16 %v2369
      %v3515 = vunpack.c.l.b16 %v2370
      %v3516 = vunpack.c.h.b16 %v2370
      %v3517 = vunpack.c.l.b16 %v2371
      %v3518 = vunpack.c.h.b16 %v2371
      %v3519 = vunpack.c.l.b16 %v2372
      %v3520 = vunpack.c.h.b16 %v2372
      %v3521 = vunpack.c.l.b16 %v2373
      %v3522 = vunpack.c.h.b16 %v2373
      %v3523 = vunpack.c.l.b16 %v2374
      %v3524 = vunpack.c.h.b16 %v2374
      %v3525 = vunpack.c.l.b16 %v2375
      %v3526 = vunpack.c.h.b16 %v2375
      %v3527 = vunpack.c.l.b16 %v2376
      %v3528 = vunpack.c.h.b16 %v2376
      %v3529 = vunpack.c.l.b16 %v2377
      %v3530 = vunpack.c.h.b16 %v2377
      %v3531 = vunpack.c.l.b16 %v2378
      %v3532 = vunpack.c.h.b16 %v2378
      %v3533 = vunpack.c.l.b16 %v2379
      %v3534 = vunpack.c.h.b16 %v2379
      %v3535 = vunpack.c.l.b16 %v2380
      %v3536 = vunpack.c.h.b16 %v2380
      %v3537 = vunpack.c.l.b16 %v2381
      %v3538 = vunpack.c.h.b16 %v2381
      %v3539 = vunpack.c.l.b16 %v2382
      %v3540 = vunpack.c.h.b16 %v2382
      %v3541 = vunpack.c.l.b16 %v2383
      %v3542 = vunpack.c.h.b16 %v2383
      %v3543 = vunpack.c.l.b16 %v2384
      %v3544 = vunpack.c.h.b16 %v2384
      %v3545 = vunpack.c.l.b16 %v2385
      %v3546 = vunpack.c.h.b16 %v2385
      %v3547 = vunpack.c.l.b16 %v2386
      %v3548 = vunpack.c.h.b16 %v2386
      %v3549 = vunpack.c.l.b16 %v2387
      %v3550 = vunpack.c.h.b16 %v2387
      %v3551 = vunpack.c.l.b16 %v2388
      %v3552 = vunpack.c.h.b16 %v2388
      %v3553 = vunpack.c.l.b16 %v2389
      %v3554 = vunpack.c.h.b16 %v2389
      %v3555 = vunpack.c.l.b16 %v2390
      %v3556 = vunpack.c.h.b16 %v2390
      %v3557 = vunpack.c.l.b16 %v2391
      %v3558 = vunpack.c.h.b16 %v2391
      %v3559 = vunpack.c.l.b16 %v2392
      %v3560 = vunpack.c.h.b16 %v2392
      %v3561 = vunpack.c.l.b16 %v2393
      %v3562 = vunpack.c.h.b16 %v2393
      %v3563 = vunpack.c.l.b16 %v2394
      %v3564 = vunpack.c.h.b16 %v2394
      %v3565 = vunpack.c.l.b16 %v2395
      %v3566 = vunpack.c.h.b16 %v2395
      %v3567 = vunpack.c.l.b16 %v2396
      %v3568 = vunpack.c.h.b16 %v2396
      %v3569 = vpack.c.b16 %v2931, %v2929
      %v3570 = vpack.c.b16 %v2932, %v2930
      %v3571 = vpack.c.b16 %v2935, %v2933
      %v3572 = vpack.c.b16 %v2936, %v2934
      %v3573 = vpack.c.b16 %v2939, %v2937
      %v3574 = vpack.c.b16 %v2940, %v2938
      %v3575 = vpack.c.b16 %v2943, %v2941
      %v3576 = vpack.c.b16 %v2944, %v2942
      %v3577 = vpack.c.b16 %v2947, %v2945
      %v3578 = vpack.c.b16 %v2948, %v2946
      %v3579 = vpack.c.b16 %v2951, %v2949
      %v3580 = vpack.c.b16 %v2952, %v2950
      %v3581 = vpack.c.b16 %v2955, %v2953
      %v3582 = vpack.c.b16 %v2956, %v2954
      %v3583 = vpack.c.b16 %v2959, %v2957
      %v3584 = vpack.c.b16 %v2960, %v2958
      %v3585 = vpack.c.b16 %v2963, %v2961
      %v3586 = vpack.c.b16 %v2964, %v2962
      %v3587 = vpack.c.b16 %v2967, %v2965
      %v3588 = vpack.c.b16 %v2968, %v2966
      %v3589 = vpack.c.b16 %v2971, %v2969
      %v3590 = vpack.c.b16 %v2972, %v2970
      %v3591 = vpack.c.b16 %v2975, %v2973
      %v3592 = vpack.c.b16 %v2976, %v2974
      %v3593 = vpack.c.b16 %v2979, %v2977
      %v3594 = vpack.c.b16 %v2980, %v2978
      %v3595 = vpack.c.b16 %v2983, %v2981
      %v3596 = vpack.c.b16 %v2984, %v2982
      %v3597 = vpack.c.b16 %v2987, %v2985
      %v3598 = vpack.c.b16 %v2988, %v2986
      %v3599 = vpack.c.b16 %v2991, %v2989
      %v3600 = vpack.c.b16 %v2992, %v2990
      %v3601 = vpack.c.b16 %v2995, %v2993
      %v3602 = vpack.c.b16 %v2996, %v2994
      %v3603 = vpack.c.b16 %v2999, %v2997
      %v3604 = vpack.c.b16 %v3000, %v2998
      %v3605 = vpack.c.b16 %v3003, %v3001
      %v3606 = vpack.c.b16 %v3004, %v3002
      %v3607 = vpack.c.b16 %v3007, %v3005
      %v3608 = vpack.c.b16 %v3008, %v3006
      %v3609 = vpack.c.b16 %v3011, %v3009
      %v3610 = vpack.c.b16 %v3012, %v3010
      %v3611 = vpack.c.b16 %v3015, %v3013
      %v3612 = vpack.c.b16 %v3016, %v3014
      %v3613 = vpack.c.b16 %v3019, %v3017
      %v3614 = vpack.c.b16 %v3020, %v3018
      %v3615 = vpack.c.b16 %v3023, %v3021
      %v3616 = vpack.c.b16 %v3024, %v3022
      %v3617 = vpack.c.b16 %v3027, %v3025
      %v3618 = vpack.c.b16 %v3028, %v3026
      %v3619 = vpack.c.b16 %v3031, %v3029
      %v3620 = vpack.c.b16 %v3032, %v3030
      %v3621 = vpack.c.b16 %v3035, %v3033
      %v3622 = vpack.c.b16 %v3036, %v3034
      %v3623 = vpack.c.b16 %v3039, %v3037
      %v3624 = vpack.c.b16 %v3040, %v3038
      %v3625 = vpack.c.b16 %v3043, %v3041
      %v3626 = vpack.c.b16 %v3044, %v3042
      %v3627 = vpack.c.b16 %v3047, %v3045
      %v3628 = vpack.c.b16 %v3048, %v3046
      %v3629 = vpack.c.b16 %v3051, %v3049
      %v3630 = vpack.c.b16 %v3052, %v3050
      %v3631 = vpack.c.b16 %v3055, %v3053
      %v3632 = vpack.c.b16 %v3056, %v3054
      %v3633 = vpack.c.b16 %v3059, %v3057
      %v3634 = vpack.c.b16 %v3060, %v3058
      %v3635 = vpack.c.b16 %v3063, %v3061
      %v3636 = vpack.c.b16 %v3064, %v3062
      %v3637 = vpack.c.b16 %v3067, %v3065
      %v3638 = vpack.c.b16 %v3068, %v3066
      %v3639 = vpack.c.b16 %v3071, %v3069
      %v3640 = vpack.c.b16 %v3072, %v3070
      %v3641 = vpack.c.b16 %v3075, %v3073
      %v3642 = vpack.c.b16 %v3076, %v3074
      %v3643 = vpack.c.b16 %v3079, %v3077
      %v3644 = vpack.c.b16 %v3080, %v3078
      %v3645 = vpack.c.b16 %v3083, %v3081
      %v3646 = vpack.c.b16 %v3084, %v3082
      %v3647 = vpack.c.b16 %v3087, %v3085
      %v3648 = vpack.c.b16 %v3088, %v3086
      %v3649 = vpack.c.b16 %v3091, %v3089
      %v3650 = vpack.c.b16 %v3092, %v3090
      %v3651 = vpack.c.b16 %v3095, %v3093
      %v3652 = vpack.c.b16 %v3096, %v3094
      %v3653 = vpack.c.b16 %v3099, %v3097
      %v3654 = vpack.c.b16 %v3100, %v3098
      %v3655 = vpack.c.b16 %v3103, %v3101
      %v3656 = vpack.c.b16 %v3104, %v3102
      %v3657 = vpack.c.b16 %v3107, %v3105
      %v3658 = vpack.c.b16 %v3108, %v3106
      %v3659 = vpack.c.b16 %v3111, %v3109
      %v3660 = vpack.c.b16 %v3112, %v3110
      %v3661 = vpack.c.b16 %v3115, %v3113
      %v3662 = vpack.c.b16 %v3116, %v3114
      %v3663 = vpack.c.b16 %v3119, %v3117
      %v3664 = vpack.c.b16 %v3120, %v3118
      %v3665 = vpack.c.b16 %v3123, %v3121
      %v3666 = vpack.c.b16 %v3124, %v3122
      %v3667 = vpack.c.b16 %v3127, %v3125
      %v3668 = vpack.c.b16 %v3128, %v3126
      %v3669 = vpack.c.b16 %v3131, %v3129
      %v3670 = vpack.c.b16 %v3132, %v3130
      %v3671 = vpack.c.b16 %v3135, %v3133
      %v3672 = vpack.c.b16 %v3136, %v3134
      %v3673 = vpack.c.b16 %v3139, %v3137
      %v3674 = vpack.c.b16 %v3140, %v3138
      %v3675 = vpack.c.b16 %v3143, %v3141
      %v3676 = vpack.c.b16 %v3144, %v3142
      %v3677 = vpack.c.b16 %v3147, %v3145
      %v3678 = vpack.c.b16 %v3148, %v3146
      %v3679 = vpack.c.b16 %v3151, %v3149
      %v3680 = vpack.c.b16 %v3152, %v3150
      %v3681 = vpack.c.b16 %v3155, %v3153
      %v3682 = vpack.c.b16 %v3156, %v3154
      %v3683 = vpack.c.b16 %v3159, %v3157
      %v3684 = vpack.c.b16 %v3160, %v3158
      %v3685 = vpack.c.b16 %v3163, %v3161
      %v3686 = vpack.c.b16 %v3164, %v3162
      %v3687 = vpack.c.b16 %v3167, %v3165
      %v3688 = vpack.c.b16 %v3168, %v3166
      %v3689 = vpack.c.b16 %v3171, %v3169
      %v3690 = vpack.c.b16 %v3172, %v3170
      %v3691 = vpack.c.b16 %v3175, %v3173
      %v3692 = vpack.c.b16 %v3176, %v3174
      %v3693 = vpack.c.b16 %v3179, %v3177
      %v3694 = vpack.c.b16 %v3180, %v3178
      %v3695 = vpack.c.b16 %v3183, %v3181
      %v3696 = vpack.c.b16 %v3184, %v3182
      %v3697 = vpack.c.b16 %v3187, %v3185
      %v3698 = vpack.c.b16 %v3188, %v3186
      %v3699 = vpack.c.b16 %v3191, %v3189
      %v3700 = vpack.c.b16 %v3192, %v3190
      %v3701 = vpack.c.b16 %v3195, %v3193
      %v3702 = vpack.c.b16 %v3196, %v3194
      %v3703 = vpack.c.b16 %v3199, %v3197
      %v3704 = vpack.c.b16 %v3200, %v3198
      %v3705 = vpack.c.b16 %v3203, %v3201
      %v3706 = vpack.c.b16 %v3204, %v3202
      %v3707 = vpack.c.b16 %v3207, %v3205
      %v3708 = vpack.c.b16 %v3208, %v3206
      %v3709 = vpack.c.b16 %v3211, %v3209
      %v3710 = vpack.c.b16 %v3212, %v3210
      %v3711 = vpack.c.b16 %v3215, %v3213
      %v3712 = vpack.c.b16 %v3216, %v3214
      %v3713 = vpack.c.b16 %v3219, %v3217
      %v3714 = vpack.c.b16 %v3220, %v3218
      %v3715 = vpack.c.b16 %v3223, %v3221
      %v3716 = vpack.c.b16 %v3224, %v3222
      %v3717 = vpack.c.b16 %v3227, %v3225
      %v3718 = vpack.c.b16 %v3228, %v3226
      %v3719 = vpack.c.b16 %v3231, %v3229
      %v3720 = vpack.c.b16 %v3232, %v3230
      %v3721 = vpack.c.b16 %v3235, %v3233
      %v3722 = vpack.c.b16 %v3236, %v3234
      %v3723 = vpack.c.b16 %v3239, %v3237
      %v3724 = vpack.c.b16 %v3240, %v3238
      %v3725 = vpack.c.b16 %v3243, %v3241
      %v3726 = vpack.c.b16 %v3244, %v3242
      %v3727 = vpack.c.b16 %v3247, %v3245
      %v3728 = vpack.c.b16 %v3248, %v3246
      %v3729 = vpack.c.b16 %v3251, %v3249
      %v3730 = vpack.c.b16 %v3252, %v3250
      %v3731 = vpack.c.b16 %v3255, %v3253
      %v3732 = vpack.c.b16 %v3256, %v3254
      %v3733 = vpack.c.b16 %v3259, %v3257
      %v3734 = vpack.c.b16 %v3260, %v3258
      %v3735 = vpack.c.b16 %v3263, %v3261
      %v3736 = vpack.c.b16 %v3264, %v3262
      %v3737 = vpack.c.b16 %v3267, %v3265
      %v3738 = vpack.c.b16 %v3268, %v3266
      %v3739 = vpack.c.b16 %v3271, %v3269
      %v3740 = vpack.c.b16 %v3272, %v3270
      %v3741 = vpack.c.b16 %v3275, %v3273
      %v3742 = vpack.c.b16 %v3276, %v3274
      %v3743 = vpack.c.b16 %v3279, %v3277
      %v3744 = vpack.c.b16 %v3280, %v3278
      %v3745 = vpack.c.b16 %v3283, %v3281
      %v3746 = vpack.c.b16 %v3284, %v3282
      %v3747 = vpack.c.b16 %v3287, %v3285
      %v3748 = vpack.c.b16 %v3288, %v3286
      %v3749 = vpack.c.b16 %v3291, %v3289
      %v3750 = vpack.c.b16 %v3292, %v3290
      %v3751 = vpack.c.b16 %v3295, %v3293
      %v3752 = vpack.c.b16 %v3296, %v3294
      %v3753 = vpack.c.b16 %v3299, %v3297
      %v3754 = vpack.c.b16 %v3300, %v3298
      %v3755 = vpack.c.b16 %v3303, %v3301
      %v3756 = vpack.c.b16 %v3304, %v3302
      %v3757 = vpack.c.b16 %v3307, %v3305
      %v3758 = vpack.c.b16 %v3308, %v3306
      %v3759 = vpack.c.b16 %v3311, %v3309
      %v3760 = vpack.c.b16 %v3312, %v3310
      %v3761 = vpack.c.b16 %v3315, %v3313
      %v3762 = vpack.c.b16 %v3316, %v3314
      %v3763 = vpack.c.b16 %v3319, %v3317
      %v3764 = vpack.c.b16 %v3320, %v3318
      %v3765 = vpack.c.b16 %v3323, %v3321
      %v3766 = vpack.c.b16 %v3324, %v3322
      %v3767 = vpack.c.b16 %v3327, %v3325
      %v3768 = vpack.c.b16 %v3328, %v3326
      %v3769 = vpack.c.b16 %v3331, %v3329
      %v3770 = vpack.c.b16 %v3332, %v3330
      %v3771 = vpack.c.b16 %v3335, %v3333
      %v3772 = vpack.c.b16 %v3336, %v3334
      %v3773 = vpack.c.b16 %v3339, %v3337
      %v3774 = vpack.c.b16 %v3340, %v3338
      %v3775 = vpack.c.b16 %v3343, %v3341
      %v3776 = vpack.c.b16 %v3344, %v3342
      %v3777 = vpack.c.b16 %v3347, %v3345
      %v3778 = vpack.c.b16 %v3348, %v3346
      %v3779 = vpack.c.b16 %v3351, %v3349
      %v3780 = vpack.c.b16 %v3352, %v3350
      %v3781 = vpack.c.b16 %v3355, %v3353
      %v3782 = vpack.c.b16 %v3356, %v3354
      %v3783 = vpack.c.b16 %v3359, %v3357
      %v3784 = vpack.c.b16 %v3360, %v3358
      %v3785 = vpack.c.b16 %v3363, %v3361
      %v3786 = vpack.c.b16 %v3364, %v3362
      %v3787 = vpack.c.b16 %v3367, %v3365
      %v3788 = vpack.c.b16 %v3368, %v3366
      %v3789 = vpack.c.b16 %v3371, %v3369
      %v3790 = vpack.c.b16 %v3372, %v3370
      %v3791 = vpack.c.b16 %v3375, %v3373
      %v3792 = vpack.c.b16 %v3376, %v3374
      %v3793 = vpack.c.b16 %v3379, %v3377
      %v3794 = vpack.c.b16 %v3380, %v3378
      %v3795 = vpack.c.b16 %v3383, %v3381
      %v3796 = vpack.c.b16 %v3384, %v3382
      %v3797 = vpack.c.b16 %v3387, %v3385
      %v3798 = vpack.c.b16 %v3388, %v3386
      %v3799 = vpack.c.b16 %v3391, %v3389
      %v3800 = vpack.c.b16 %v3392, %v3390
      %v3801 = vpack.c.b16 %v3395, %v3393
      %v3802 = vpack.c.b16 %v3396, %v3394
      %v3803 = vpack.c.b16 %v3399, %v3397
      %v3804 = vpack.c.b16 %v3400, %v3398
      %v3805 = vpack.c.b16 %v3403, %v3401
      %v3806 = vpack.c.b16 %v3404, %v3402
      %v3807 = vpack.c.b16 %v3407, %v3405
      %v3808 = vpack.c.b16 %v3408, %v3406
      %v3809 = vpack.c.b16 %v3411, %v3409
      %v3810 = vpack.c.b16 %v3412, %v3410
      %v3811 = vpack.c.b16 %v3415, %v3413
      %v3812 = vpack.c.b16 %v3416, %v3414
      %v3813 = vpack.c.b16 %v3419, %v3417
      %v3814 = vpack.c.b16 %v3420, %v3418
      %v3815 = vpack.c.b16 %v3423, %v3421
      %v3816 = vpack.c.b16 %v3424, %v3422
      %v3817 = vpack.c.b16 %v3427, %v3425
      %v3818 = vpack.c.b16 %v3428, %v3426
      %v3819 = vpack.c.b16 %v3431, %v3429
      %v3820 = vpack.c.b16 %v3432, %v3430
      %v3821 = vpack.c.b16 %v3435, %v3433
      %v3822 = vpack.c.b16 %v3436, %v3434
      %v3823 = vpack.c.b16 %v3439, %v3437
      %v3824 = vpack.c.b16 %v3440, %v3438
      %v3825 = vpack.c.b16 %v3443, %v3441
      %v3826 = vpack.c.b16 %v3444, %v3442
      %v3827 = vpack.c.b16 %v3447, %v3445
      %v3828 = vpack.c.b16 %v3448, %v3446
      %v3829 = vpack.c.b16 %v3451, %v3449
      %v3830 = vpack.c.b16 %v3452, %v3450
      %v3831 = vpack.c.b16 %v3455, %v3453
      %v3832 = vpack.c.b16 %v3456, %v3454
      %v3833 = vpack.c.b16 %v3459, %v3457
      %v3834 = vpack.c.b16 %v3460, %v3458
      %v3835 = vpack.c.b16 %v3463, %v3461
      %v3836 = vpack.c.b16 %v3464, %v3462
      %v3837 = vpack.c.b16 %v3467, %v3465
      %v3838 = vpack.c.b16 %v3468, %v3466
      %v3839 = vpack.c.b16 %v3471, %v3469
      %v3840 = vpack.c.b16 %v3472, %v3470
      %v3841 = vpack.c.b16 %v3475, %v3473
      %v3842 = vpack.c.b16 %v3476, %v3474
      %v3843 = vpack.c.b16 %v3479, %v3477
      %v3844 = vpack.c.b16 %v3480, %v3478
      %v3845 = vpack.c.b16 %v3483, %v3481
      %v3846 = vpack.c.b16 %v3484, %v3482
      %v3847 = vpack.c.b16 %v3487, %v3485
      %v3848 = vpack.c.b16 %v3488, %v3486
      %v3849 = vpack.c.b16 %v3491, %v3489
      %v3850 = vpack.c.b16 %v3492, %v3490
      %v3851 = vpack.c.b16 %v3495, %v3493
      %v3852 = vpack.c.b16 %v3496, %v3494
      %v3853 = vpack.c.b16 %v3499, %v3497
      %v3854 = vpack.c.b16 %v3500, %v3498
      %v3855 = vpack.c.b16 %v3503, %v3501
      %v3856 = vpack.c.b16 %v3504, %v3502
      %v3857 = vpack.c.b16 %v3507, %v3505
      %v3858 = vpack.c.b16 %v3508, %v3506
      %v3859 = vpack.c.b16 %v3511, %v3509
      %v3860 = vpack.c.b16 %v3512, %v3510
      %v3861 = vpack.c.b16 %v3515, %v3513
      %v3862 = vpack.c.b16 %v3516, %v3514
      %v3863 = vpack.c.b16 %v3519, %v3517
      %v3864 = vpack.c.b16 %v3520, %v3518
      %v3865 = vpack.c.b16 %v3523, %v3521
      %v3866 = vpack.c.b16 %v3524, %v3522
      %v3867 = vpack.c.b16 %v3527, %v3525
      %v3868 = vpack.c.b16 %v3528, %v3526
      %v3869 = vpack.c.b16 %v3531, %v3529
      %v3870 = vpack.c.b16 %v3532, %v3530
      %v3871 = vpack.c.b16 %v3535, %v3533
      %v3872 = vpack.c.b16 %v3536, %v3534
      %v3873 = vpack.c.b16 %v3539, %v3537
      %v3874 = vpack.c.b16 %v3540, %v3538
      %v3875 = vpack.c.b16 %v3543, %v3541
      %v3876 = vpack.c.b16 %v3544, %v3542
      %v3877 = vpack.c.b16 %v3547, %v3545
      %v3878 = vpack.c.b16 %v3548, %v3546
      %v3879 = vpack.c.b16 %v3551, %v3549
      %v3880 = vpack.c.b16 %v3552, %v3550
      %v3881 = vpack.c.b16 %v3555, %v3553
      %v3882 = vpack.c.b16 %v3556, %v3554
      %v3883 = vpack.c.b16 %v3559, %v3557
      %v3884 = vpack.c.b16 %v3560, %v3558
      %v3885 = vpack.c.b16 %v3563, %v3561
      %v3886 = vpack.c.b16 %v3564, %v3562
      %v3887 = vpack.c.b16 %v3567, %v3565
      %v3888 = vpack.c.b16 %v3568, %v3566
      %4209 = vmatprep.subr.bf16.mxu0 %v3584
      %4210 = vmatpush1.bf16.msra.mxu0 %v3583
      %4211 = vmatprep.subr.bf16.mxu0 %v3582
      %4212 = vmatpush1.bf16.msra.mxu0 %v3581
      %4213 = vmatprep.subr.bf16.mxu0 %v3580
      %4214 = vmatpush1.bf16.msra.mxu0 %v3579
      %4215 = vmatprep.subr.bf16.mxu0 %v3578
      %4216 = vmatpush1.bf16.msra.mxu0 %v3577
      %4217 = vmatprep.subr.bf16.mxu0 %v3576
      %4218 = vmatpush1.bf16.msra.mxu0 %v3575
      %4219 = vmatprep.subr.bf16.mxu0 %v3574
      %4220 = vmatpush1.bf16.msra.mxu0 %v3573
      %4221 = vmatprep.subr.bf16.mxu0 %v3572
      %4222 = vmatpush1.bf16.msra.mxu0 %v3571
      %4223 = vmatprep.subr.bf16.mxu0 %v3570
      %4224 = vmatpush1.bf16.msra.mxu0 %v3569
      %4225 = vmatprep.subr.bf16.mxu0 %v3600
      %4226 = vmatpush2.bf16.msra.mxu0 %v3599
      %4227 = vmatprep.subr.bf16.mxu0 %v3598
      %4228 = vmatpush2.bf16.msra.mxu0 %v3597
      %4229 = vmatprep.subr.bf16.mxu0 %v3596
      %4230 = vmatpush2.bf16.msra.mxu0 %v3595
      %4231 = vmatprep.subr.bf16.mxu0 %v3594
      %4232 = vmatpush2.bf16.msra.mxu0 %v3593
      %4233 = vmatprep.subr.bf16.mxu0 %v3592
      %4234 = vmatpush2.bf16.msra.mxu0 %v3591
      %4235 = vmatprep.subr.bf16.mxu0 %v3590
      %4236 = vmatpush2.bf16.msra.mxu0 %v3589
      %4237 = vmatprep.subr.bf16.mxu0 %v3588
      %4238 = vmatpush2.bf16.msra.mxu0 %v3587
      %4239 = vmatprep.subr.bf16.mxu0 %v3586
      %4240 = vmatpush2.bf16.msra.mxu0 %v3585
      %4241 = vmatprep.mubr.bf16.mxu0 %v2530
      %4242 = vmatmul.mubr.bf16.gmra.mxu0 %v2529
      %v4243 = vpop.f32.mrf.mxu0
      %v4244 = vadd.f32 %v2402, %v4243
      %v4245 = vpop.f32.mrf.mxu0
      %v4246 = vadd.f32 %v2406, %v4245
      %v4247 = vpop.f32.mrf.mxu0
      %v4248 = vadd.f32 %v2402, %v4247
      %v4249 = vpop.f32.mrf.mxu0
      %v4250 = vadd.f32 %v2406, %v4249
      %4251 = vmatprep.mubr.bf16.mxu0 %v2550
      %4252 = vmatmul.mubr.bf16.gmra.mxu0 %v2549
      %v4253 = vpop.f32.mrf.mxu0
      %v4254 = vadd.f32 %v2402, %v4253
      %v4255 = vpop.f32.mrf.mxu0
      %v4256 = vadd.f32 %v2406, %v4255
      %v4257 = vpop.f32.mrf.mxu0
      %v4258 = vadd.f32 %v2402, %v4257
      %v4259 = vpop.f32.mrf.mxu0
      %v4260 = vadd.f32 %v2406, %v4259
      %4261 = vdwg.mxu0
      %4262 = vmatprep.subr.bf16.mxu0 %v3616
      %4263 = vmatpush1.bf16.msra.mxu0 %v3615
      %4264 = vmatprep.subr.bf16.mxu0 %v3614
      %4265 = vmatpush1.bf16.msra.mxu0 %v3613
      %4266 = vmatprep.subr.bf16.mxu0 %v3612
      %4267 = vmatpush1.bf16.msra.mxu0 %v3611
      %4268 = vmatprep.subr.bf16.mxu0 %v3610
      %4269 = vmatpush1.bf16.msra.mxu0 %v3609
      %4270 = vmatprep.subr.bf16.mxu0 %v3608
      %4271 = vmatpush1.bf16.msra.mxu0 %v3607
      %4272 = vmatprep.subr.bf16.mxu0 %v3606
      %4273 = vmatpush1.bf16.msra.mxu0 %v3605
      %4274 = vmatprep.subr.bf16.mxu0 %v3604
      %4275 = vmatpush1.bf16.msra.mxu0 %v3603
      %4276 = vmatprep.subr.bf16.mxu0 %v3602
      %4277 = vmatpush1.bf16.msra.mxu0 %v3601
      %4278 = vmatprep.subr.bf16.mxu0 %v3632
      %4279 = vmatpush2.bf16.msra.mxu0 %v3631
      %4280 = vmatprep.subr.bf16.mxu0 %v3630
      %4281 = vmatpush2.bf16.msra.mxu0 %v3629
      %4282 = vmatprep.subr.bf16.mxu0 %v3628
      %4283 = vmatpush2.bf16.msra.mxu0 %v3627
      %4284 = vmatprep.subr.bf16.mxu0 %v3626
      %4285 = vmatpush2.bf16.msra.mxu0 %v3625
      %4286 = vmatprep.subr.bf16.mxu0 %v3624
      %4287 = vmatpush2.bf16.msra.mxu0 %v3623
      %4288 = vmatprep.subr.bf16.mxu0 %v3622
      %4289 = vmatpush2.bf16.msra.mxu0 %v3621
      %4290 = vmatprep.subr.bf16.mxu0 %v3620
      %4291 = vmatpush2.bf16.msra.mxu0 %v3619
      %4292 = vmatprep.subr.bf16.mxu0 %v3618
      %4293 = vmatpush2.bf16.msra.mxu0 %v3617
      %4294 = vmatprep.mubr.bf16.mxu0 %v2532
      %4295 = vmatmul.mubr.bf16.gmra.mxu0 %v2531
      %v4296 = vpop.f32.mrf.mxu0
      %v4297 = vadd.f32 %v4244, %v4296
      %v4298 = vpop.f32.mrf.mxu0
      %v4299 = vadd.f32 %v4246, %v4298
      %v4300 = vpop.f32.mrf.mxu0
      %v4301 = vadd.f32 %v4248, %v4300
      %v4302 = vpop.f32.mrf.mxu0
      %v4303 = vadd.f32 %v4250, %v4302
      %4304 = vmatprep.mubr.bf16.mxu0 %v2552
      %4305 = vmatmul.mubr.bf16.gmra.mxu0 %v2551
      %v4306 = vpop.f32.mrf.mxu0
      %v4307 = vadd.f32 %v4254, %v4306
      %v4308 = vpop.f32.mrf.mxu0
      %v4309 = vadd.f32 %v4256, %v4308
      %v4310 = vpop.f32.mrf.mxu0
      %v4311 = vadd.f32 %v4258, %v4310
      %v4312 = vpop.f32.mrf.mxu0
      %v4313 = vadd.f32 %v4260, %v4312
      %4314 = vdwg.mxu0
      %4315 = vmatprep.subr.bf16.mxu0 %v3648
      %4316 = vmatpush1.bf16.msra.mxu0 %v3647
      %4317 = vmatprep.subr.bf16.mxu0 %v3646
      %4318 = vmatpush1.bf16.msra.mxu0 %v3645
      %4319 = vmatprep.subr.bf16.mxu0 %v3644
      %4320 = vmatpush1.bf16.msra.mxu0 %v3643
      %4321 = vmatprep.subr.bf16.mxu0 %v3642
      %4322 = vmatpush1.bf16.msra.mxu0 %v3641
      %4323 = vmatprep.subr.bf16.mxu0 %v3640
      %4324 = vmatpush1.bf16.msra.mxu0 %v3639
      %4325 = vmatprep.subr.bf16.mxu0 %v3638
      %4326 = vmatpush1.bf16.msra.mxu0 %v3637
      %4327 = vmatprep.subr.bf16.mxu0 %v3636
      %4328 = vmatpush1.bf16.msra.mxu0 %v3635
      %4329 = vmatprep.subr.bf16.mxu0 %v3634
      %4330 = vmatpush1.bf16.msra.mxu0 %v3633
      %4331 = vmatprep.subr.bf16.mxu0 %v3664
      %4332 = vmatpush2.bf16.msra.mxu0 %v3663
      %4333 = vmatprep.subr.bf16.mxu0 %v3662
      %4334 = vmatpush2.bf16.msra.mxu0 %v3661
      %4335 = vmatprep.subr.bf16.mxu0 %v3660
      %4336 = vmatpush2.bf16.msra.mxu0 %v3659
      %4337 = vmatprep.subr.bf16.mxu0 %v3658
      %4338 = vmatpush2.bf16.msra.mxu0 %v3657
      %4339 = vmatprep.subr.bf16.mxu0 %v3656
      %4340 = vmatpush2.bf16.msra.mxu0 %v3655
      %4341 = vmatprep.subr.bf16.mxu0 %v3654
      %4342 = vmatpush2.bf16.msra.mxu0 %v3653
      %4343 = vmatprep.subr.bf16.mxu0 %v3652
      %4344 = vmatpush2.bf16.msra.mxu0 %v3651
      %4345 = vmatprep.subr.bf16.mxu0 %v3650
      %4346 = vmatpush2.bf16.msra.mxu0 %v3649
      %4347 = vmatprep.mubr.bf16.mxu0 %v2534
      %4348 = vmatmul.mubr.bf16.gmra.mxu0 %v2533
      %v4349 = vpop.f32.mrf.mxu0
      %v4350 = vadd.f32 %v4297, %v4349
      %v4351 = vpop.f32.mrf.mxu0
      %v4352 = vadd.f32 %v4299, %v4351
      %v4353 = vpop.f32.mrf.mxu0
      %v4354 = vadd.f32 %v4301, %v4353
      %v4355 = vpop.f32.mrf.mxu0
      %v4356 = vadd.f32 %v4303, %v4355
      %4357 = vmatprep.mubr.bf16.mxu0 %v2554
      %4358 = vmatmul.mubr.bf16.gmra.mxu0 %v2553
      %v4359 = vpop.f32.mrf.mxu0
      %v4360 = vadd.f32 %v4307, %v4359
      %v4361 = vpop.f32.mrf.mxu0
      %v4362 = vadd.f32 %v4309, %v4361
      %v4363 = vpop.f32.mrf.mxu0
      %v4364 = vadd.f32 %v4311, %v4363
      %v4365 = vpop.f32.mrf.mxu0
      %v4366 = vadd.f32 %v4313, %v4365
      %4367 = vdwg.mxu0
      %4368 = vmatprep.subr.bf16.mxu0 %v3680
      %4369 = vmatpush1.bf16.msra.mxu0 %v3679
      %4370 = vmatprep.subr.bf16.mxu0 %v3678
      %4371 = vmatpush1.bf16.msra.mxu0 %v3677
      %4372 = vmatprep.subr.bf16.mxu0 %v3676
      %4373 = vmatpush1.bf16.msra.mxu0 %v3675
      %4374 = vmatprep.subr.bf16.mxu0 %v3674
      %4375 = vmatpush1.bf16.msra.mxu0 %v3673
      %4376 = vmatprep.subr.bf16.mxu0 %v3672
      %4377 = vmatpush1.bf16.msra.mxu0 %v3671
      %4378 = vmatprep.subr.bf16.mxu0 %v3670
      %4379 = vmatpush1.bf16.msra.mxu0 %v3669
      %4380 = vmatprep.subr.bf16.mxu0 %v3668
      %4381 = vmatpush1.bf16.msra.mxu0 %v3667
      %4382 = vmatprep.subr.bf16.mxu0 %v3666
      %4383 = vmatpush1.bf16.msra.mxu0 %v3665
      %4384 = vmatprep.subr.bf16.mxu0 %v3696
      %4385 = vmatpush2.bf16.msra.mxu0 %v3695
      %4386 = vmatprep.subr.bf16.mxu0 %v3694
      %4387 = vmatpush2.bf16.msra.mxu0 %v3693
      %4388 = vmatprep.subr.bf16.mxu0 %v3692
      %4389 = vmatpush2.bf16.msra.mxu0 %v3691
      %4390 = vmatprep.subr.bf16.mxu0 %v3690
      %4391 = vmatpush2.bf16.msra.mxu0 %v3689
      %4392 = vmatprep.subr.bf16.mxu0 %v3688
      %4393 = vmatpush2.bf16.msra.mxu0 %v3687
      %4394 = vmatprep.subr.bf16.mxu0 %v3686
      %4395 = vmatpush2.bf16.msra.mxu0 %v3685
      %4396 = vmatprep.subr.bf16.mxu0 %v3684
      %4397 = vmatpush2.bf16.msra.mxu0 %v3683
      %4398 = vmatprep.subr.bf16.mxu0 %v3682
      %4399 = vmatpush2.bf16.msra.mxu0 %v3681
      %4400 = vmatprep.mubr.bf16.mxu0 %v2536
      %4401 = vmatmul.mubr.bf16.gmra.mxu0 %v2535
      %v4402 = vpop.f32.mrf.mxu0
      %v4403 = vadd.f32 %v4350, %v4402
      %v4404 = vpop.f32.mrf.mxu0
      %v4405 = vadd.f32 %v4352, %v4404
      %v4406 = vpop.f32.mrf.mxu0
      %v4407 = vadd.f32 %v4354, %v4406
      %v4408 = vpop.f32.mrf.mxu0
      %v4409 = vadd.f32 %v4356, %v4408
      %4410 = vmatprep.mubr.bf16.mxu0 %v2556
      %4411 = vmatmul.mubr.bf16.gmra.mxu0 %v2555
      %v4412 = vpop.f32.mrf.mxu0
      %v4413 = vadd.f32 %v4360, %v4412
      %v4414 = vpop.f32.mrf.mxu0
      %v4415 = vadd.f32 %v4362, %v4414
      %v4416 = vpop.f32.mrf.mxu0
      %v4417 = vadd.f32 %v4364, %v4416
      %v4418 = vpop.f32.mrf.mxu0
      %v4419 = vadd.f32 %v4366, %v4418
      %4420 = vdwg.mxu0
      %4421 = vmatprep.subr.bf16.mxu0 %v3712
      %4422 = vmatpush1.bf16.msra.mxu0 %v3711
      %4423 = vmatprep.subr.bf16.mxu0 %v3710
      %4424 = vmatpush1.bf16.msra.mxu0 %v3709
      %4425 = vmatprep.subr.bf16.mxu0 %v3708
      %4426 = vmatpush1.bf16.msra.mxu0 %v3707
      %4427 = vmatprep.subr.bf16.mxu0 %v3706
      %4428 = vmatpush1.bf16.msra.mxu0 %v3705
      %4429 = vmatprep.subr.bf16.mxu0 %v3704
      %4430 = vmatpush1.bf16.msra.mxu0 %v3703
      %4431 = vmatprep.subr.bf16.mxu0 %v3702
      %4432 = vmatpush1.bf16.msra.mxu0 %v3701
      %4433 = vmatprep.subr.bf16.mxu0 %v3700
      %4434 = vmatpush1.bf16.msra.mxu0 %v3699
      %4435 = vmatprep.subr.bf16.mxu0 %v3698
      %4436 = vmatpush1.bf16.msra.mxu0 %v3697
      %4437 = vmatprep.subr.bf16.mxu0 %v3728
      %4438 = vmatpush2.bf16.msra.mxu0 %v3727
      %4439 = vmatprep.subr.bf16.mxu0 %v3726
      %4440 = vmatpush2.bf16.msra.mxu0 %v3725
      %4441 = vmatprep.subr.bf16.mxu0 %v3724
      %4442 = vmatpush2.bf16.msra.mxu0 %v3723
      %4443 = vmatprep.subr.bf16.mxu0 %v3722
      %4444 = vmatpush2.bf16.msra.mxu0 %v3721
      %4445 = vmatprep.subr.bf16.mxu0 %v3720
      %4446 = vmatpush2.bf16.msra.mxu0 %v3719
      %4447 = vmatprep.subr.bf16.mxu0 %v3718
      %4448 = vmatpush2.bf16.msra.mxu0 %v3717
      %4449 = vmatprep.subr.bf16.mxu0 %v3716
      %4450 = vmatpush2.bf16.msra.mxu0 %v3715
      %4451 = vmatprep.subr.bf16.mxu0 %v3714
      %4452 = vmatpush2.bf16.msra.mxu0 %v3713
      %4453 = vmatprep.mubr.bf16.mxu0 %v2538
      %4454 = vmatmul.mubr.bf16.gmra.mxu0 %v2537
      %v4455 = vpop.f32.mrf.mxu0
      %v4456 = vadd.f32 %v4403, %v4455
      %v4457 = vpop.f32.mrf.mxu0
      %v4458 = vadd.f32 %v4405, %v4457
      %v4459 = vpop.f32.mrf.mxu0
      %v4460 = vadd.f32 %v4407, %v4459
      %v4461 = vpop.f32.mrf.mxu0
      %v4462 = vadd.f32 %v4409, %v4461
      %4463 = vmatprep.mubr.bf16.mxu0 %v2558
      %4464 = vmatmul.mubr.bf16.gmra.mxu0 %v2557
      %v4465 = vpop.f32.mrf.mxu0
      %v4466 = vadd.f32 %v4413, %v4465
      %v4467 = vpop.f32.mrf.mxu0
      %v4468 = vadd.f32 %v4415, %v4467
      %v4469 = vpop.f32.mrf.mxu0
      %v4470 = vadd.f32 %v4417, %v4469
      %v4471 = vpop.f32.mrf.mxu0
      %v4472 = vadd.f32 %v4419, %v4471
      %4473 = vdwg.mxu0
      %4474 = vmatprep.subr.bf16.mxu0 %v3744
      %4475 = vmatpush1.bf16.msra.mxu0 %v3743
      %4476 = vmatprep.subr.bf16.mxu0 %v3742
      %4477 = vmatpush1.bf16.msra.mxu0 %v3741
      %4478 = vmatprep.subr.bf16.mxu0 %v3740
      %4479 = vmatpush1.bf16.msra.mxu0 %v3739
      %4480 = vmatprep.subr.bf16.mxu0 %v3738
      %4481 = vmatpush1.bf16.msra.mxu0 %v3737
      %4482 = vmatprep.subr.bf16.mxu0 %v3736
      %4483 = vmatpush1.bf16.msra.mxu0 %v3735
      %4484 = vmatprep.subr.bf16.mxu0 %v3734
      %4485 = vmatpush1.bf16.msra.mxu0 %v3733
      %4486 = vmatprep.subr.bf16.mxu0 %v3732
      %4487 = vmatpush1.bf16.msra.mxu0 %v3731
      %4488 = vmatprep.subr.bf16.mxu0 %v3730
      %4489 = vmatpush1.bf16.msra.mxu0 %v3729
      %4490 = vmatprep.subr.bf16.mxu0 %v3760
      %4491 = vmatpush2.bf16.msra.mxu0 %v3759
      %4492 = vmatprep.subr.bf16.mxu0 %v3758
      %4493 = vmatpush2.bf16.msra.mxu0 %v3757
      %4494 = vmatprep.subr.bf16.mxu0 %v3756
      %4495 = vmatpush2.bf16.msra.mxu0 %v3755
      %4496 = vmatprep.subr.bf16.mxu0 %v3754
      %4497 = vmatpush2.bf16.msra.mxu0 %v3753
      %4498 = vmatprep.subr.bf16.mxu0 %v3752
      %4499 = vmatpush2.bf16.msra.mxu0 %v3751
      %4500 = vmatprep.subr.bf16.mxu0 %v3750
      %4501 = vmatpush2.bf16.msra.mxu0 %v3749
      %4502 = vmatprep.subr.bf16.mxu0 %v3748
      %4503 = vmatpush2.bf16.msra.mxu0 %v3747
      %4504 = vmatprep.subr.bf16.mxu0 %v3746
      %4505 = vmatpush2.bf16.msra.mxu0 %v3745
      %4506 = vmatprep.mubr.bf16.mxu0 %v2540
      %4507 = vmatmul.mubr.bf16.gmra.mxu0 %v2539
      %v4508 = vpop.f32.mrf.mxu0
      %v4509 = vadd.f32 %v4456, %v4508
      %v4510 = vpop.f32.mrf.mxu0
      %v4511 = vadd.f32 %v4458, %v4510
      %v4512 = vpop.f32.mrf.mxu0
      %v4513 = vadd.f32 %v4460, %v4512
      %v4514 = vpop.f32.mrf.mxu0
      %v4515 = vadd.f32 %v4462, %v4514
      %4516 = vmatprep.mubr.bf16.mxu0 %v2560
      %4517 = vmatmul.mubr.bf16.gmra.mxu0 %v2559
      %v4518 = vpop.f32.mrf.mxu0
      %v4519 = vadd.f32 %v4466, %v4518
      %v4520 = vpop.f32.mrf.mxu0
      %v4521 = vadd.f32 %v4468, %v4520
      %v4522 = vpop.f32.mrf.mxu0
      %v4523 = vadd.f32 %v4470, %v4522
      %v4524 = vpop.f32.mrf.mxu0
      %v4525 = vadd.f32 %v4472, %v4524
      %4526 = vdwg.mxu0
      %4527 = vmatprep.subr.bf16.mxu0 %v3776
      %4528 = vmatpush1.bf16.msra.mxu0 %v3775
      %4529 = vmatprep.subr.bf16.mxu0 %v3774
      %4530 = vmatpush1.bf16.msra.mxu0 %v3773
      %4531 = vmatprep.subr.bf16.mxu0 %v3772
      %4532 = vmatpush1.bf16.msra.mxu0 %v3771
      %4533 = vmatprep.subr.bf16.mxu0 %v3770
      %4534 = vmatpush1.bf16.msra.mxu0 %v3769
      %4535 = vmatprep.subr.bf16.mxu0 %v3768
      %4536 = vmatpush1.bf16.msra.mxu0 %v3767
      %4537 = vmatprep.subr.bf16.mxu0 %v3766
      %4538 = vmatpush1.bf16.msra.mxu0 %v3765
      %4539 = vmatprep.subr.bf16.mxu0 %v3764
      %4540 = vmatpush1.bf16.msra.mxu0 %v3763
      %4541 = vmatprep.subr.bf16.mxu0 %v3762
      %4542 = vmatpush1.bf16.msra.mxu0 %v3761
      %4543 = vmatprep.subr.bf16.mxu0 %v3792
      %4544 = vmatpush2.bf16.msra.mxu0 %v3791
      %4545 = vmatprep.subr.bf16.mxu0 %v3790
      %4546 = vmatpush2.bf16.msra.mxu0 %v3789
      %4547 = vmatprep.subr.bf16.mxu0 %v3788
      %4548 = vmatpush2.bf16.msra.mxu0 %v3787
      %4549 = vmatprep.subr.bf16.mxu0 %v3786
      %4550 = vmatpush2.bf16.msra.mxu0 %v3785
      %4551 = vmatprep.subr.bf16.mxu0 %v3784
      %4552 = vmatpush2.bf16.msra.mxu0 %v3783
      %4553 = vmatprep.subr.bf16.mxu0 %v3782
      %4554 = vmatpush2.bf16.msra.mxu0 %v3781
      %4555 = vmatprep.subr.bf16.mxu0 %v3780
      %4556 = vmatpush2.bf16.msra.mxu0 %v3779
      %4557 = vmatprep.subr.bf16.mxu0 %v3778
      %4558 = vmatpush2.bf16.msra.mxu0 %v3777
      %4559 = vmatprep.mubr.bf16.mxu0 %v2542
      %4560 = vmatmul.mubr.bf16.gmra.mxu0 %v2541
      %v4561 = vpop.f32.mrf.mxu0
      %v4562 = vadd.f32 %v4509, %v4561
      %v4563 = vpop.f32.mrf.mxu0
      %v4564 = vadd.f32 %v4511, %v4563
      %v4565 = vpop.f32.mrf.mxu0
      %v4566 = vadd.f32 %v4513, %v4565
      %v4567 = vpop.f32.mrf.mxu0
      %v4568 = vadd.f32 %v4515, %v4567
      %4569 = vmatprep.mubr.bf16.mxu0 %v2562
      %4570 = vmatmul.mubr.bf16.gmra.mxu0 %v2561
      %v4571 = vpop.f32.mrf.mxu0
      %v4572 = vadd.f32 %v4519, %v4571
      %v4573 = vpop.f32.mrf.mxu0
      %v4574 = vadd.f32 %v4521, %v4573
      %v4575 = vpop.f32.mrf.mxu0
      %v4576 = vadd.f32 %v4523, %v4575
      %v4577 = vpop.f32.mrf.mxu0
      %v4578 = vadd.f32 %v4525, %v4577
      %4579 = vdwg.mxu0
      %4580 = vmatprep.subr.bf16.mxu0 %v3808
      %4581 = vmatpush1.bf16.msra.mxu0 %v3807
      %4582 = vmatprep.subr.bf16.mxu0 %v3806
      %4583 = vmatpush1.bf16.msra.mxu0 %v3805
      %4584 = vmatprep.subr.bf16.mxu0 %v3804
      %4585 = vmatpush1.bf16.msra.mxu0 %v3803
      %4586 = vmatprep.subr.bf16.mxu0 %v3802
      %4587 = vmatpush1.bf16.msra.mxu0 %v3801
      %4588 = vmatprep.subr.bf16.mxu0 %v3800
      %4589 = vmatpush1.bf16.msra.mxu0 %v3799
      %4590 = vmatprep.subr.bf16.mxu0 %v3798
      %4591 = vmatpush1.bf16.msra.mxu0 %v3797
      %4592 = vmatprep.subr.bf16.mxu0 %v3796
      %4593 = vmatpush1.bf16.msra.mxu0 %v3795
      %4594 = vmatprep.subr.bf16.mxu0 %v3794
      %4595 = vmatpush1.bf16.msra.mxu0 %v3793
      %4596 = vmatprep.subr.bf16.mxu0 %v3824
      %4597 = vmatpush2.bf16.msra.mxu0 %v3823
      %4598 = vmatprep.subr.bf16.mxu0 %v3822
      %4599 = vmatpush2.bf16.msra.mxu0 %v3821
      %4600 = vmatprep.subr.bf16.mxu0 %v3820
      %4601 = vmatpush2.bf16.msra.mxu0 %v3819
      %4602 = vmatprep.subr.bf16.mxu0 %v3818
      %4603 = vmatpush2.bf16.msra.mxu0 %v3817
      %4604 = vmatprep.subr.bf16.mxu0 %v3816
      %4605 = vmatpush2.bf16.msra.mxu0 %v3815
      %4606 = vmatprep.subr.bf16.mxu0 %v3814
      %4607 = vmatpush2.bf16.msra.mxu0 %v3813
      %4608 = vmatprep.subr.bf16.mxu0 %v3812
      %4609 = vmatpush2.bf16.msra.mxu0 %v3811
      %4610 = vmatprep.subr.bf16.mxu0 %v3810
      %4611 = vmatpush2.bf16.msra.mxu0 %v3809
      %4612 = vmatprep.mubr.bf16.mxu0 %v2544
      %4613 = vmatmul.mubr.bf16.gmra.mxu0 %v2543
      %v4614 = vpop.f32.mrf.mxu0
      %v4615 = vadd.f32 %v4562, %v4614
      %v4616 = vpop.f32.mrf.mxu0
      %v4617 = vadd.f32 %v4564, %v4616
      %v4618 = vpop.f32.mrf.mxu0
      %v4619 = vadd.f32 %v4566, %v4618
      %v4620 = vpop.f32.mrf.mxu0
      %v4621 = vadd.f32 %v4568, %v4620
      %4622 = vmatprep.mubr.bf16.mxu0 %v2564
      %4623 = vmatmul.mubr.bf16.gmra.mxu0 %v2563
      %v4624 = vpop.f32.mrf.mxu0
      %v4625 = vadd.f32 %v4572, %v4624
      %v4626 = vpop.f32.mrf.mxu0
      %v4627 = vadd.f32 %v4574, %v4626
      %v4628 = vpop.f32.mrf.mxu0
      %v4629 = vadd.f32 %v4576, %v4628
      %v4630 = vpop.f32.mrf.mxu0
      %v4631 = vadd.f32 %v4578, %v4630
      %4632 = vdwg.mxu0
      %4633 = vmatprep.subr.bf16.mxu0 %v3840
      %4634 = vmatpush1.bf16.msra.mxu0 %v3839
      %4635 = vmatprep.subr.bf16.mxu0 %v3838
      %4636 = vmatpush1.bf16.msra.mxu0 %v3837
      %4637 = vmatprep.subr.bf16.mxu0 %v3836
      %4638 = vmatpush1.bf16.msra.mxu0 %v3835
      %4639 = vmatprep.subr.bf16.mxu0 %v3834
      %4640 = vmatpush1.bf16.msra.mxu0 %v3833
      %4641 = vmatprep.subr.bf16.mxu0 %v3832
      %4642 = vmatpush1.bf16.msra.mxu0 %v3831
      %4643 = vmatprep.subr.bf16.mxu0 %v3830
      %4644 = vmatpush1.bf16.msra.mxu0 %v3829
      %4645 = vmatprep.subr.bf16.mxu0 %v3828
      %4646 = vmatpush1.bf16.msra.mxu0 %v3827
      %4647 = vmatprep.subr.bf16.mxu0 %v3826
      %4648 = vmatpush1.bf16.msra.mxu0 %v3825
      %4649 = vmatprep.subr.bf16.mxu0 %v3856
      %4650 = vmatpush2.bf16.msra.mxu0 %v3855
      %4651 = vmatprep.subr.bf16.mxu0 %v3854
      %4652 = vmatpush2.bf16.msra.mxu0 %v3853
      %4653 = vmatprep.subr.bf16.mxu0 %v3852
      %4654 = vmatpush2.bf16.msra.mxu0 %v3851
      %4655 = vmatprep.subr.bf16.mxu0 %v3850
      %4656 = vmatpush2.bf16.msra.mxu0 %v3849
      %4657 = vmatprep.subr.bf16.mxu0 %v3848
      %4658 = vmatpush2.bf16.msra.mxu0 %v3847
      %4659 = vmatprep.subr.bf16.mxu0 %v3846
      %4660 = vmatpush2.bf16.msra.mxu0 %v3845
      %4661 = vmatprep.subr.bf16.mxu0 %v3844
      %4662 = vmatpush2.bf16.msra.mxu0 %v3843
      %4663 = vmatprep.subr.bf16.mxu0 %v3842
      %4664 = vmatpush2.bf16.msra.mxu0 %v3841
      %4665 = vmatprep.mubr.bf16.mxu0 %v2546
      %4666 = vmatmul.mubr.bf16.gmra.mxu0 %v2545
      %v4667 = vpop.f32.mrf.mxu0
      %v4668 = vadd.f32 %v4615, %v4667
      %v4669 = vpop.f32.mrf.mxu0
      %v4670 = vadd.f32 %v4617, %v4669
      %v4671 = vpop.f32.mrf.mxu0
      %v4672 = vadd.f32 %v4619, %v4671
      %v4673 = vpop.f32.mrf.mxu0
      %v4674 = vadd.f32 %v4621, %v4673
      %4675 = vmatprep.mubr.bf16.mxu0 %v2566
      %4676 = vmatmul.mubr.bf16.gmra.mxu0 %v2565
      %v4677 = vpop.f32.mrf.mxu0
      %v4678 = vadd.f32 %v4625, %v4677
      %v4679 = vpop.f32.mrf.mxu0
      %v4680 = vadd.f32 %v4627, %v4679
      %v4681 = vpop.f32.mrf.mxu0
      %v4682 = vadd.f32 %v4629, %v4681
      %v4683 = vpop.f32.mrf.mxu0
      %v4684 = vadd.f32 %v4631, %v4683
      %4685 = vdwg.mxu0
      %4686 = vmatprep.subr.bf16.mxu0 %v3872
      %4687 = vmatpush1.bf16.msra.mxu0 %v3871
      %4688 = vmatprep.subr.bf16.mxu0 %v3870
      %4689 = vmatpush1.bf16.msra.mxu0 %v3869
      %4690 = vmatprep.subr.bf16.mxu0 %v3868
      %4691 = vmatpush1.bf16.msra.mxu0 %v3867
      %4692 = vmatprep.subr.bf16.mxu0 %v3866
      %4693 = vmatpush1.bf16.msra.mxu0 %v3865
      %4694 = vmatprep.subr.bf16.mxu0 %v3864
      %4695 = vmatpush1.bf16.msra.mxu0 %v3863
      %4696 = vmatprep.subr.bf16.mxu0 %v3862
      %4697 = vmatpush1.bf16.msra.mxu0 %v3861
      %4698 = vmatprep.subr.bf16.mxu0 %v3860
      %4699 = vmatpush1.bf16.msra.mxu0 %v3859
      %4700 = vmatprep.subr.bf16.mxu0 %v3858
      %4701 = vmatpush1.bf16.msra.mxu0 %v3857
      %4702 = vmatprep.subr.bf16.mxu0 %v3888
      %4703 = vmatpush2.bf16.msra.mxu0 %v3887
      %4704 = vmatprep.subr.bf16.mxu0 %v3886
      %4705 = vmatpush2.bf16.msra.mxu0 %v3885
      %4706 = vmatprep.subr.bf16.mxu0 %v3884
      %4707 = vmatpush2.bf16.msra.mxu0 %v3883
      %4708 = vmatprep.subr.bf16.mxu0 %v3882
      %4709 = vmatpush2.bf16.msra.mxu0 %v3881
      %4710 = vmatprep.subr.bf16.mxu0 %v3880
      %4711 = vmatpush2.bf16.msra.mxu0 %v3879
      %4712 = vmatprep.subr.bf16.mxu0 %v3878
      %4713 = vmatpush2.bf16.msra.mxu0 %v3877
      %4714 = vmatprep.subr.bf16.mxu0 %v3876
      %4715 = vmatpush2.bf16.msra.mxu0 %v3875
      %4716 = vmatprep.subr.bf16.mxu0 %v3874
      %4717 = vmatpush2.bf16.msra.mxu0 %v3873
      %4718 = vmatprep.mubr.bf16.mxu0 %v2548
      %4719 = vmatmul.mubr.bf16.gmra.mxu0 %v2547
      %v4720 = vpop.f32.mrf.mxu0
      %v4721 = vadd.f32 %v4668, %v4720
      %v4722 = vpop.f32.mrf.mxu0
      %v4723 = vadd.f32 %v4670, %v4722
      %v4724 = vpop.f32.mrf.mxu0
      %v4725 = vadd.f32 %v4672, %v4724
      %v4726 = vpop.f32.mrf.mxu0
      %v4727 = vadd.f32 %v4674, %v4726
      %4728 = vmatprep.mubr.bf16.mxu0 %v2568
      %4729 = vmatmul.mubr.bf16.gmra.mxu0 %v2567
      %v4730 = vpop.f32.mrf.mxu0
      %v4731 = vadd.f32 %v4678, %v4730
      %v4732 = vpop.f32.mrf.mxu0
      %v4733 = vadd.f32 %v4680, %v4732
      %v4734 = vpop.f32.mrf.mxu0
      %v4735 = vadd.f32 %v4682, %v4734
      %v4736 = vpop.f32.mrf.mxu0
      %v4737 = vadd.f32 %v4684, %v4736
      %4738 = vdwg.mxu0
      %v4739 = vmax.f32 %v4721, 0.0
      %v4740 = vmax.f32 %v4723, 0.0
      %v4741 = vmax.f32 %v4725, 0.0
      %v4742 = vmax.f32 %v4727, 0.0
      %v4743 = vmax.f32 %v4731, 0.0
      %v4744 = vmax.f32 %v4733, 0.0
      %v4745 = vmax.f32 %v4735, 0.0
      %v4746 = vmax.f32 %v4737, 0.0
      %v4747 = vpack.c.bf16 %v4741, %v4739
      %v4748 = vpack.c.bf16 %v4742, %v4740
      %v4749 = vpack.c.bf16 %v4745, %v4743
      %v4750 = vpack.c.bf16 %v4746, %v4744
      %4751 = vst [vmem:[#allocation6] sm:$0x11] 0
      %4752 = vst [vmem:[#allocation6 + $0x20] sm:$0x22] 0
      %v4757 = vunpack.c.l.b16 %v4747
      %v4758 = vunpack.c.l.b16 %v4748
      %v4759 = vunpack.c.h.b16 %v4747
      %v4760 = vunpack.c.h.b16 %v4748
      %v4761 = vunpack.c.l.b16 %v4749
      %v4762 = vunpack.c.l.b16 %v4750
      %v4763 = vunpack.c.h.b16 %v4749
      %v4764 = vunpack.c.h.b16 %v4750
      %v4765 = vpack.c.b16 %v4758, %v4757
      %v4766 = vpack.c.b16 %v4760, %v4759
      %v4767 = vpack.c.b16 %v4762, %v4761
      %v4768 = vpack.c.b16 %v4764, %v4763
      %v4769 = vrot.slane %v4765, 7
      %v4770 = vrot.slane %v4769, 4
      %v4771 = vrot.slane %v4766, 7
      %v4772 = vsel %vm628, %v4770, %v4771
      %v4773 = vrot.slane %v4771, 4
      %v4774 = vrot.slane %v4767, 7
      %v4775 = vsel %vm628, %v4773, %v4774
      %v4776 = vrot.slane %v4774, 4
      %v4777 = vrot.slane %v4768, 7
      %v4778 = vsel %vm628, %v4776, %v4777
      %v4779 = vrot.slane %v4777, 4
      %4785 = vst [vmem:[#allocation6] sm:$0xee] %v4769
      %4786 = vst [vmem:[#allocation6 + $0x8] sm:$0xff] %v4772
      %4787 = vst [vmem:[#allocation6 + $0x10] sm:$0xff] %v4775
      %4788 = vst [vmem:[#allocation6 + $0x18] sm:$0xff] %v4778
      %4789 = vst [vmem:[#allocation6 + $0x20] sm:$0x11] %v4779
      %v4790 = vld [vmem:[#allocation6] sm:$0xff]
      %v4791 = vld [vmem:[#allocation6 + $0x8] sm:$0xff]
      %v4792 = vld [vmem:[#allocation6 + $0x10] sm:$0xff]
      %v4793 = vld [vmem:[#allocation6 + $0x18] sm:$0xff]
      %4794 = vst [vmem:[#allocation7] sm:$0xff] %v4790
      %4795 = vst [vmem:[#allocation7 + $0x28] sm:$0xff] %v4791
      %4796 = vst [vmem:[#allocation7 + $0x50] sm:$0xff] %v4792
      %4797 = vst [vmem:[#allocation7 + $0x78] sm:$0xff] %v4793
      %v4798 = vld [vmem:[#allocation6] sm:$0xff]
      %v4799 = vld [vmem:[#allocation6 + $0x8] sm:$0xff]
      %v4800 = vld [vmem:[#allocation6 + $0x10] sm:$0xff]
      %v4801 = vld [vmem:[#allocation6 + $0x18] sm:$0xff]
      %v4802 = vld [vmem:[#allocation6 + $0x20] sm:$0x11]
      %v4804 = vshrl.u32 %v4798, 16
      %v4806 = vrot.slane %v4804, 4
      %v4807 = vshll.u32 %v4798, 16
      %v4809 = vrot.slane %v4807, 5
      %v4810 = vor.u32 %v4806, %v4809
      %v4811 = vrot.slane %v4810, 4
      %v4813 = vshll.u32 %v4799, 16
      %v4815 = vrot.slane %v4813, 5
      %v4816 = vsel %vm335, %v4811, %v4815
      %v4817 = vshrl.u32 %v4799, 16
      %v4819 = vrot.slane %v4817, 4
      %v4820 = vor.u32 %v4819, %v4815
      %v4821 = vrot.slane %v4820, 4
      %v4823 = vshll.u32 %v4800, 16
      %v4825 = vrot.slane %v4823, 5
      %v4826 = vsel %vm335, %v4821, %v4825
      %v4827 = vshrl.u32 %v4800, 16
      %v4829 = vrot.slane %v4827, 4
      %v4830 = vor.u32 %v4829, %v4825
      %v4831 = vrot.slane %v4830, 4
      %v4833 = vshll.u32 %v4801, 16
      %v4835 = vrot.slane %v4833, 5
      %v4836 = vsel %vm335, %v4831, %v4835
      %v4837 = vshrl.u32 %v4801, 16
      %v4839 = vrot.slane %v4837, 4
      %v4840 = vor.u32 %v4839, %v4835
      %v4841 = vrot.slane %v4840, 4
      %v4843 = vshll.u32 %v4802, 16
      %v4845 = vrot.slane %v4843, 5
      %v4846 = vsel %vm335, %v4841, %v4845
      %4851 = vst [vmem:[#allocation7 + $0x8] sm:$0xff] %v4816
      %4852 = vst [vmem:[#allocation7 + $0x30] sm:$0xff] %v4826
      %4853 = vst [vmem:[#allocation7 + $0x58] sm:$0xff] %v4836
      %4854 = vst [vmem:[#allocation7 + $0x80] sm:$0xff] %v4846
      %v4855 = vld [vmem:[#allocation6] sm:$0xee]
      %v4856 = vld [vmem:[#allocation6 + $0x8] sm:$0xff]
      %v4857 = vld [vmem:[#allocation6 + $0x10] sm:$0xff]
      %v4858 = vld [vmem:[#allocation6 + $0x18] sm:$0xff]
      %v4859 = vld [vmem:[#allocation6 + $0x20] sm:$0x11]
      %v4865 = vrot.slane %v4855, 5
      %v4866 = vrot.slane %v4865, 4
      %v4867 = vrot.slane %v4856, 5
      %v4868 = vsel %vm409, %v4866, %v4867
      %v4869 = vrot.slane %v4867, 4
      %v4870 = vrot.slane %v4857, 5
      %v4871 = vsel %vm409, %v4869, %v4870
      %v4872 = vrot.slane %v4870, 4
      %v4873 = vrot.slane %v4858, 5
      %v4874 = vsel %vm409, %v4872, %v4873
      %v4875 = vrot.slane %v4873, 4
      %v4876 = vrot.slane %v4859, 5
      %v4877 = vsel %vm409, %v4875, %v4876
      %4882 = vst [vmem:[#allocation7 + $0x10] sm:$0xff] %v4868
      %4883 = vst [vmem:[#allocation7 + $0x38] sm:$0xff] %v4871
      %4884 = vst [vmem:[#allocation7 + $0x60] sm:$0xff] %v4874
      %4885 = vst [vmem:[#allocation7 + $0x88] sm:$0xff] %v4877
      %v4886 = vld [vmem:[#allocation6] sm:$0xee]
      %v4887 = vld [vmem:[#allocation6 + $0x8] sm:$0xff]
      %v4888 = vld [vmem:[#allocation6 + $0x10] sm:$0xff]
      %v4889 = vld [vmem:[#allocation6 + $0x18] sm:$0xff]
      %v4890 = vld [vmem:[#allocation6 + $0x20] sm:$0x33]
      %v4892 = vshrl.u32 %v4886, 16
      %v4894 = vrot.slane %v4892, 5
      %v4895 = vshll.u32 %v4886, 16
      %v4897 = vrot.slane %v4895, 6
      %v4898 = vor.u32 %v4894, %v4897
      %v4899 = vrot.slane %v4898, 4
      %v4901 = vshrl.u32 %v4887, 16
      %v4903 = vrot.slane %v4901, 5
      %v4904 = vshll.u32 %v4887, 16
      %v4906 = vrot.slane %v4904, 6
      %v4907 = vor.u32 %v4903, %v4906
      %v4908 = vsel %vm447, %v4899, %v4907
      %v4909 = vrot.slane %v4907, 4
      %v4911 = vshrl.u32 %v4888, 16
      %v4913 = vrot.slane %v4911, 5
      %v4914 = vshll.u32 %v4888, 16
      %v4916 = vrot.slane %v4914, 6
      %v4917 = vor.u32 %v4913, %v4916
      %v4918 = vsel %vm447, %v4909, %v4917
      %v4919 = vrot.slane %v4917, 4
      %v4921 = vshrl.u32 %v4889, 16
      %v4923 = vrot.slane %v4921, 5
      %v4924 = vshll.u32 %v4889, 16
      %v4926 = vrot.slane %v4924, 6
      %v4927 = vor.u32 %v4923, %v4926
      %v4928 = vsel %vm447, %v4919, %v4927
      %v4929 = vrot.slane %v4927, 4
      %v4931 = vshrl.u32 %v4890, 16
      %v4933 = vrot.slane %v4931, 5
      %v4934 = vshll.u32 %v4890, 16
      %v4936 = vrot.slane %v4934, 6
      %v4937 = vor.u32 %v4933, %v4936
      %v4938 = vsel %vm447, %v4929, %v4937
      %4943 = vst [vmem:[#allocation7 + $0x18] sm:$0xff] %v4908
      %4944 = vst [vmem:[#allocation7 + $0x40] sm:$0xff] %v4918
      %4945 = vst [vmem:[#allocation7 + $0x68] sm:$0xff] %v4928
      %4946 = vst [vmem:[#allocation7 + $0x90] sm:$0xff] %v4938
      %v4947 = vld [vmem:[#allocation6] sm:$0xcc]
      %v4948 = vld [vmem:[#allocation6 + $0x8] sm:$0xff]
      %v4949 = vld [vmem:[#allocation6 + $0x10] sm:$0xff]
      %v4950 = vld [vmem:[#allocation6 + $0x18] sm:$0xff]
      %v4951 = vld [vmem:[#allocation6 + $0x20] sm:$0x33]
      %v4957 = vrot.slane %v4947, 6
      %v4958 = vrot.slane %v4957, 4
      %v4959 = vrot.slane %v4948, 6
      %v4960 = vsel %vm297, %v4958, %v4959
      %v4961 = vrot.slane %v4959, 4
      %v4962 = vrot.slane %v4949, 6
      %v4963 = vsel %vm297, %v4961, %v4962
      %v4964 = vrot.slane %v4962, 4
      %v4965 = vrot.slane %v4950, 6
      %v4966 = vsel %vm297, %v4964, %v4965
      %v4967 = vrot.slane %v4965, 4
      %v4968 = vrot.slane %v4951, 6
      %v4969 = vsel %vm297, %v4967, %v4968
      %4974 = vst [vmem:[#allocation7 + $0x20] sm:$0xff] %v4960
      %4975 = vst [vmem:[#allocation7 + $0x48] sm:$0xff] %v4963
      %4976 = vst [vmem:[#allocation7 + $0x70] sm:$0xff] %v4966
      %4977 = vst [vmem:[#allocation7 + $0x98] sm:$0xff] %v4969
      %4978 = vst [vmem:[#allocation7 + $0x28] sm:$0x11] 0
      %4979 = vst [vmem:[#allocation7 + $0x50] sm:$0x11] 0
      %4980 = vst [vmem:[#allocation7 + $0x78] sm:$0x11] 0
      %v4981 = vld [vmem:[#allocation7 + $0x30] sm:$0x11]
      %v4982 = vsel %vm1988, 0, %v4981
      %4983 = vst [vmem:[#allocation7 + $0x30] sm:$0x11] %v4982
      %v4984 = vld [vmem:[#allocation7 + $0x58] sm:$0x11]
      %v4985 = vsel %vm1988, 0, %v4984
      %4986 = vst [vmem:[#allocation7 + $0x58] sm:$0x11] %v4985
      %v4987 = vld [vmem:[#allocation7 + $0x80] sm:$0x11]
      %v4988 = vsel %vm1988, 0, %v4987
      %4989 = vst [vmem:[#allocation7 + $0x80] sm:$0x11] %v4988
      %v4990 = vld [vmem:[#allocation7 + $0x18] sm:$0x88]
      %v4991 = vsel %vm2012, 0, %v4990
      %4992 = vst [vmem:[#allocation7 + $0x18] sm:$0x88] %v4991
      %v4993 = vld [vmem:[#allocation7 + $0x40] sm:$0x88]
      %v4994 = vsel %vm2012, 0, %v4993
      %4995 = vst [vmem:[#allocation7 + $0x40] sm:$0x88] %v4994
      %v4996 = vld [vmem:[#allocation7 + $0x68] sm:$0x88]
      %v4997 = vsel %vm2012, 0, %v4996
      %4998 = vst [vmem:[#allocation7 + $0x68] sm:$0x88] %v4997
      %4999 = vst [vmem:[#allocation7 + $0x20] sm:$0x88] 0
      %5000 = vst [vmem:[#allocation7 + $0x48] sm:$0x88] 0
      %5001 = vst [vmem:[#allocation7 + $0x70] sm:$0x88] 0
      %v5002 = vld [vmem:[#allocation7] sm:$0xff]
      %v5003 = vld [vmem:[#allocation7 + $0x8] sm:$0xff]
      %v5004 = vld [vmem:[#allocation7 + $0x10] sm:$0xff]
      %v5005 = vld [vmem:[#allocation7 + $0x18] sm:$0xff]
      %v5006 = vld [vmem:[#allocation7 + $0x20] sm:$0xff]
      %v5007 = vld [vmem:[#allocation7 + $0x28] sm:$0xff]
      %v5008 = vld [vmem:[#allocation7 + $0x30] sm:$0xff]
      %v5009 = vld [vmem:[#allocation7 + $0x38] sm:$0xff]
      %v5010 = vld [vmem:[#allocation7 + $0x40] sm:$0xff]
      %v5011 = vld [vmem:[#allocation7 + $0x48] sm:$0xff]
      %v5012 = vld [vmem:[#allocation7 + $0x50] sm:$0xff]
      %v5013 = vld [vmem:[#allocation7 + $0x58] sm:$0xff]
      %v5014 = vld [vmem:[#allocation7 + $0x60] sm:$0xff]
      %v5015 = vld [vmem:[#allocation7 + $0x68] sm:$0xff]
      %v5016 = vld [vmem:[#allocation7 + $0x70] sm:$0xff]
      %v5017 = vld [vmem:[#allocation7 + $0x78] sm:$0xff]
      %v5018 = vld [vmem:[#allocation7 + $0x80] sm:$0xff]
      %v5019 = vld [vmem:[#allocation7 + $0x88] sm:$0xff]
      %v5020 = vld [vmem:[#allocation7 + $0x90] sm:$0xff]
      %v5021 = vld [vmem:[#allocation7 + $0x98] sm:$0xff]
      %v5022 = vld [vmem:[%s5] sm:$0xf]
      %v5023 = vld [vmem:[%s5 + $0x4] sm:$0xf]
      %v5024 = vld [vmem:[%s5 + $0x8] sm:$0xf]
      %v5025 = vld [vmem:[%s5 + $0xc] sm:$0xf]
      %v5026 = vld [vmem:[%s5 + $0x10] sm:$0xf]
      %v5027 = vld [vmem:[%s5 + $0x14] sm:$0xf]
      %v5028 = vld [vmem:[%s5 + $0x18] sm:$0xf]
      %v5029 = vld [vmem:[%s5 + $0x1c] sm:$0xf]
      %v5030 = vld [vmem:[%s5 + $0x20] sm:$0xf]
      %v5031 = vld [vmem:[%s5 + $0x24] sm:$0xf]
      %v5032 = vld [vmem:[%s5 + $0x28] sm:$0xf]
      %v5033 = vld [vmem:[%s5 + $0x2c] sm:$0xf]
      %v5034 = vld [vmem:[%s5 + $0x30] sm:$0xf]
      %v5035 = vld [vmem:[%s5 + $0x34] sm:$0xf]
      %v5036 = vld [vmem:[%s5 + $0x38] sm:$0xf]
      %v5037 = vld [vmem:[%s5 + $0x3c] sm:$0xf]
      %v5038 = vld [vmem:[%s5 + $0x40] sm:$0xf]
      %v5039 = vld [vmem:[%s5 + $0x44] sm:$0xf]
      %v5040 = vld [vmem:[%s5 + $0x48] sm:$0xf]
      %v5041 = vld [vmem:[%s5 + $0x4c] sm:$0xf]
      %v5042 = vld [vmem:[%s5 + $0x50] sm:$0xf]
      %v5043 = vld [vmem:[%s5 + $0x54] sm:$0xf]
      %v5044 = vld [vmem:[%s5 + $0x58] sm:$0xf]
      %v5045 = vld [vmem:[%s5 + $0x5c] sm:$0xf]
      %v5046 = vld [vmem:[%s5 + $0x60] sm:$0xf]
      %v5047 = vld [vmem:[%s5 + $0x64] sm:$0xf]
      %v5048 = vld [vmem:[%s5 + $0x68] sm:$0xf]
      %v5049 = vld [vmem:[%s5 + $0x6c] sm:$0xf]
      %v5050 = vld [vmem:[%s5 + $0x70] sm:$0xf]
      %v5051 = vld [vmem:[%s5 + $0x74] sm:$0xf]
      %v5052 = vld [vmem:[%s5 + $0x78] sm:$0xf]
      %v5053 = vld [vmem:[%s5 + $0x7c] sm:$0xf]
      %v5054 = vld [vmem:[%s5 + $0x80] sm:$0xf]
      %v5055 = vld [vmem:[%s5 + $0x84] sm:$0xf]
      %v5056 = vld [vmem:[%s5 + $0x88] sm:$0xf]
      %v5057 = vld [vmem:[%s5 + $0x8c] sm:$0xf]
      %v5058 = vld [vmem:[%s5 + $0x90] sm:$0xf]
      %v5059 = vld [vmem:[%s5 + $0x94] sm:$0xf]
      %v5060 = vld [vmem:[%s5 + $0x98] sm:$0xf]
      %v5061 = vld [vmem:[%s5 + $0x9c] sm:$0xf]
      %v5062 = vld [vmem:[%s5 + $0xa0] sm:$0xf]
      %v5063 = vld [vmem:[%s5 + $0xa4] sm:$0xf]
      %v5064 = vld [vmem:[%s5 + $0xa8] sm:$0xf]
      %v5065 = vld [vmem:[%s5 + $0xac] sm:$0xf]
      %v5066 = vld [vmem:[%s5 + $0xb0] sm:$0xf]
      %v5067 = vld [vmem:[%s5 + $0xb4] sm:$0xf]
      %v5068 = vld [vmem:[%s5 + $0xb8] sm:$0xf]
      %v5069 = vld [vmem:[%s5 + $0xbc] sm:$0xf]
      %v5070 = vld [vmem:[%s5 + $0xc0] sm:$0xf]
      %v5071 = vld [vmem:[%s5 + $0xc4] sm:$0xf]
      %v5072 = vld [vmem:[%s5 + $0xc8] sm:$0xf]
      %v5073 = vld [vmem:[%s5 + $0xcc] sm:$0xf]
      %v5074 = vld [vmem:[%s5 + $0xd0] sm:$0xf]
      %v5075 = vld [vmem:[%s5 + $0xd4] sm:$0xf]
      %v5076 = vld [vmem:[%s5 + $0xd8] sm:$0xf]
      %v5077 = vld [vmem:[%s5 + $0xdc] sm:$0xf]
      %v5078 = vld [vmem:[%s5 + $0xe0] sm:$0xf]
      %v5079 = vld [vmem:[%s5 + $0xe4] sm:$0xf]
      %v5080 = vld [vmem:[%s5 + $0xe8] sm:$0xf]
      %v5081 = vld [vmem:[%s5 + $0xec] sm:$0xf]
      %v5082 = vld [vmem:[%s5 + $0xf0] sm:$0xf]
      %v5083 = vld [vmem:[%s5 + $0xf4] sm:$0xf]
      %v5084 = vld [vmem:[%s5 + $0xf8] sm:$0xf]
      %v5085 = vld [vmem:[%s5 + $0xfc] sm:$0xf]
      %v5086 = vld [vmem:[%s5 + $0x100] sm:$0xf]
      %v5087 = vld [vmem:[%s5 + $0x104] sm:$0xf]
      %v5088 = vld [vmem:[%s5 + $0x108] sm:$0xf]
      %v5089 = vld [vmem:[%s5 + $0x10c] sm:$0xf]
      %v5090 = vld [vmem:[%s5 + $0x110] sm:$0xf]
      %v5091 = vld [vmem:[%s5 + $0x114] sm:$0xf]
      %v5092 = vld [vmem:[%s5 + $0x118] sm:$0xf]
      %v5093 = vld [vmem:[%s5 + $0x11c] sm:$0xf]
      %v5094 = vld [vmem:[%s5 + $0x120] sm:$0xf]
      %v5095 = vld [vmem:[%s5 + $0x124] sm:$0xf]
      %v5096 = vld [vmem:[%s5 + $0x128] sm:$0xf]
      %v5097 = vld [vmem:[%s5 + $0x12c] sm:$0xf]
      %v5098 = vld [vmem:[%s5 + $0x130] sm:$0xf]
      %v5099 = vld [vmem:[%s5 + $0x134] sm:$0xf]
      %v5100 = vld [vmem:[%s5 + $0x138] sm:$0xf]
      %v5101 = vld [vmem:[%s5 + $0x13c] sm:$0xf]
      %v5102 = vld [vmem:[%s5 + $0x140] sm:$0xf]
      %v5103 = vld [vmem:[%s5 + $0x144] sm:$0xf]
      %v5104 = vld [vmem:[%s5 + $0x148] sm:$0xf]
      %v5105 = vld [vmem:[%s5 + $0x14c] sm:$0xf]
      %v5106 = vld [vmem:[%s5 + $0x150] sm:$0xf]
      %v5107 = vld [vmem:[%s5 + $0x154] sm:$0xf]
      %v5108 = vld [vmem:[%s5 + $0x158] sm:$0xf]
      %v5109 = vld [vmem:[%s5 + $0x15c] sm:$0xf]
      %v5110 = vld [vmem:[%s5 + $0x160] sm:$0xf]
      %v5111 = vld [vmem:[%s5 + $0x164] sm:$0xf]
      %v5112 = vld [vmem:[%s5 + $0x168] sm:$0xf]
      %v5113 = vld [vmem:[%s5 + $0x16c] sm:$0xf]
      %v5114 = vld [vmem:[%s5 + $0x170] sm:$0xf]
      %v5115 = vld [vmem:[%s5 + $0x174] sm:$0xf]
      %v5116 = vld [vmem:[%s5 + $0x178] sm:$0xf]
      %v5117 = vld [vmem:[%s5 + $0x17c] sm:$0xf]
      %v5118 = vld [vmem:[%s5 + $0x180] sm:$0xf]
      %v5119 = vld [vmem:[%s5 + $0x184] sm:$0xf]
      %v5120 = vld [vmem:[%s5 + $0x188] sm:$0xf]
      %v5121 = vld [vmem:[%s5 + $0x18c] sm:$0xf]
      %v5122 = vld [vmem:[%s5 + $0x190] sm:$0xf]
      %v5123 = vld [vmem:[%s5 + $0x194] sm:$0xf]
      %v5124 = vld [vmem:[%s5 + $0x198] sm:$0xf]
      %v5125 = vld [vmem:[%s5 + $0x19c] sm:$0xf]
      %v5126 = vld [vmem:[%s5 + $0x1a0] sm:$0xf]
      %v5127 = vld [vmem:[%s5 + $0x1a4] sm:$0xf]
      %v5128 = vld [vmem:[%s5 + $0x1a8] sm:$0xf]
      %v5129 = vld [vmem:[%s5 + $0x1ac] sm:$0xf]
      %v5130 = vld [vmem:[%s5 + $0x1b0] sm:$0xf]
      %v5131 = vld [vmem:[%s5 + $0x1b4] sm:$0xf]
      %v5132 = vld [vmem:[%s5 + $0x1b8] sm:$0xf]
      %v5133 = vld [vmem:[%s5 + $0x1bc] sm:$0xf]
      %v5134 = vld [vmem:[%s5 + $0x1c0] sm:$0xf]
      %v5135 = vld [vmem:[%s5 + $0x1c4] sm:$0xf]
      %v5136 = vld [vmem:[%s5 + $0x1c8] sm:$0xf]
      %v5137 = vld [vmem:[%s5 + $0x1cc] sm:$0xf]
      %v5138 = vld [vmem:[%s5 + $0x1d0] sm:$0xf]
      %v5139 = vld [vmem:[%s5 + $0x1d4] sm:$0xf]
      %v5140 = vld [vmem:[%s5 + $0x1d8] sm:$0xf]
      %v5141 = vld [vmem:[%s5 + $0x1dc] sm:$0xf]
      %v5142 = vld [vmem:[%s5 + $0x1e0] sm:$0xf]
      %v5143 = vld [vmem:[%s5 + $0x1e4] sm:$0xf]
      %v5144 = vld [vmem:[%s5 + $0x1e8] sm:$0xf]
      %v5145 = vld [vmem:[%s5 + $0x1ec] sm:$0xf]
      %v5146 = vld [vmem:[%s5 + $0x1f0] sm:$0xf]
      %v5147 = vld [vmem:[%s5 + $0x1f4] sm:$0xf]
      %v5148 = vld [vmem:[%s5 + $0x1f8] sm:$0xf]
      %v5149 = vld [vmem:[%s5 + $0x1fc] sm:$0xf]
      %v5150 = vld [vmem:[%s5 + $0x200] sm:$0xf]
      %v5151 = vld [vmem:[%s5 + $0x204] sm:$0xf]
      %v5152 = vld [vmem:[%s5 + $0x208] sm:$0xf]
      %v5153 = vld [vmem:[%s5 + $0x20c] sm:$0xf]
      %v5154 = vld [vmem:[%s5 + $0x210] sm:$0xf]
      %v5155 = vld [vmem:[%s5 + $0x214] sm:$0xf]
      %v5156 = vld [vmem:[%s5 + $0x218] sm:$0xf]
      %v5157 = vld [vmem:[%s5 + $0x21c] sm:$0xf]
      %v5158 = vld [vmem:[%s5 + $0x220] sm:$0xf]
      %v5159 = vld [vmem:[%s5 + $0x224] sm:$0xf]
      %v5160 = vld [vmem:[%s5 + $0x228] sm:$0xf]
      %v5161 = vld [vmem:[%s5 + $0x22c] sm:$0xf]
      %v5162 = vld [vmem:[%s5 + $0x230] sm:$0xf]
      %v5163 = vld [vmem:[%s5 + $0x234] sm:$0xf]
      %v5164 = vld [vmem:[%s5 + $0x238] sm:$0xf]
      %v5165 = vld [vmem:[%s5 + $0x23c] sm:$0xf]
      %v5166 = vld [vmem:[%s5 + $0x240] sm:$0xf]
      %v5167 = vld [vmem:[%s5 + $0x244] sm:$0xf]
      %v5168 = vld [vmem:[%s5 + $0x248] sm:$0xf]
      %v5169 = vld [vmem:[%s5 + $0x24c] sm:$0xf]
      %v5170 = vld [vmem:[%s5 + $0x250] sm:$0xf]
      %v5171 = vld [vmem:[%s5 + $0x254] sm:$0xf]
      %v5172 = vld [vmem:[%s5 + $0x258] sm:$0xf]
      %v5173 = vld [vmem:[%s5 + $0x25c] sm:$0xf]
      %v5174 = vld [vmem:[%s5 + $0x260] sm:$0xf]
      %v5175 = vld [vmem:[%s5 + $0x264] sm:$0xf]
      %v5176 = vld [vmem:[%s5 + $0x268] sm:$0xf]
      %v5177 = vld [vmem:[%s5 + $0x26c] sm:$0xf]
      %v5178 = vld [vmem:[%s5 + $0x270] sm:$0xf]
      %v5179 = vld [vmem:[%s5 + $0x274] sm:$0xf]
      %v5180 = vld [vmem:[%s5 + $0x278] sm:$0xf]
      %v5181 = vld [vmem:[%s5 + $0x27c] sm:$0xf]
      %v5182 = vld [vmem:[%s6] sm:$0x1]
      %v5184 = vlaneseq
      %v5185 = vshrl.u32 %v5184, 7
      %v5186 = vsub.s32 0, %v5185
      %v5187 = vrot.slane %v5182, %v5186
      %v5209 = vunpack.c.l.b16 %v5002
      %v5210 = vunpack.c.h.b16 %v5002
      %v5211 = vunpack.c.l.b16 %v5003
      %v5212 = vunpack.c.h.b16 %v5003
      %v5213 = vunpack.c.l.b16 %v5004
      %v5214 = vunpack.c.h.b16 %v5004
      %v5215 = vunpack.c.l.b16 %v5005
      %v5216 = vunpack.c.h.b16 %v5005
      %v5217 = vunpack.c.l.b16 %v5006
      %v5218 = vunpack.c.h.b16 %v5006
      %v5219 = vunpack.c.l.b16 %v5007
      %v5220 = vunpack.c.h.b16 %v5007
      %v5221 = vunpack.c.l.b16 %v5008
      %v5222 = vunpack.c.h.b16 %v5008
      %v5223 = vunpack.c.l.b16 %v5009
      %v5224 = vunpack.c.h.b16 %v5009
      %v5225 = vunpack.c.l.b16 %v5010
      %v5226 = vunpack.c.h.b16 %v5010
      %v5227 = vunpack.c.l.b16 %v5011
      %v5228 = vunpack.c.h.b16 %v5011
      %v5229 = vunpack.c.l.b16 %v5012
      %v5230 = vunpack.c.h.b16 %v5012
      %v5231 = vunpack.c.l.b16 %v5013
      %v5232 = vunpack.c.h.b16 %v5013
      %v5233 = vunpack.c.l.b16 %v5014
      %v5234 = vunpack.c.h.b16 %v5014
      %v5235 = vunpack.c.l.b16 %v5015
      %v5236 = vunpack.c.h.b16 %v5015
      %v5237 = vunpack.c.l.b16 %v5016
      %v5238 = vunpack.c.h.b16 %v5016
      %v5239 = vunpack.c.l.b16 %v5017
      %v5240 = vunpack.c.h.b16 %v5017
      %v5241 = vunpack.c.l.b16 %v5018
      %v5242 = vunpack.c.h.b16 %v5018
      %v5243 = vunpack.c.l.b16 %v5019
      %v5244 = vunpack.c.h.b16 %v5019
      %v5245 = vunpack.c.l.b16 %v5020
      %v5246 = vunpack.c.h.b16 %v5020
      %v5247 = vunpack.c.l.b16 %v5021
      %v5248 = vunpack.c.h.b16 %v5021
      %v5249 = vpack.c.b16 %v5219, %v5209
      %v5250 = vpack.c.b16 %v5220, %v5210
      %v5251 = vpack.c.b16 %v5221, %v5211
      %v5252 = vpack.c.b16 %v5222, %v5212
      %v5253 = vpack.c.b16 %v5223, %v5213
      %v5254 = vpack.c.b16 %v5224, %v5214
      %v5255 = vpack.c.b16 %v5225, %v5215
      %v5256 = vpack.c.b16 %v5226, %v5216
      %v5257 = vpack.c.b16 %v5227, %v5217
      %v5258 = vpack.c.b16 %v5228, %v5218
      %v5259 = vpack.c.b16 %v5239, %v5229
      %v5260 = vpack.c.b16 %v5240, %v5230
      %v5261 = vpack.c.b16 %v5241, %v5231
      %v5262 = vpack.c.b16 %v5242, %v5232
      %v5263 = vpack.c.b16 %v5243, %v5233
      %v5264 = vpack.c.b16 %v5244, %v5234
      %v5265 = vpack.c.b16 %v5245, %v5235
      %v5266 = vpack.c.b16 %v5246, %v5236
      %v5267 = vpack.c.b16 %v5247, %v5237
      %v5268 = vpack.c.b16 %v5248, %v5238
      %v5449 = vunpack.c.l.b16 %v5022
      %v5450 = vunpack.c.l.b16 %v5023
      %v5451 = vunpack.c.l.b16 %v5024
      %v5452 = vunpack.c.l.b16 %v5025
      %v5453 = vunpack.c.l.b16 %v5026
      %v5454 = vunpack.c.l.b16 %v5027
      %v5455 = vunpack.c.l.b16 %v5028
      %v5456 = vunpack.c.l.b16 %v5029
      %v5457 = vunpack.c.l.b16 %v5030
      %v5458 = vunpack.c.l.b16 %v5031
      %v5459 = vunpack.c.l.b16 %v5032
      %v5460 = vunpack.c.l.b16 %v5033
      %v5461 = vunpack.c.l.b16 %v5034
      %v5462 = vunpack.c.l.b16 %v5035
      %v5463 = vunpack.c.l.b16 %v5036
      %v5464 = vunpack.c.l.b16 %v5037
      %v5465 = vunpack.c.l.b16 %v5038
      %v5466 = vunpack.c.l.b16 %v5039
      %v5467 = vunpack.c.l.b16 %v5040
      %v5468 = vunpack.c.l.b16 %v5041
      %v5469 = vunpack.c.l.b16 %v5042
      %v5470 = vunpack.c.l.b16 %v5043
      %v5471 = vunpack.c.l.b16 %v5044
      %v5472 = vunpack.c.l.b16 %v5045
      %v5473 = vunpack.c.l.b16 %v5046
      %v5474 = vunpack.c.l.b16 %v5047
      %v5475 = vunpack.c.l.b16 %v5048
      %v5476 = vunpack.c.l.b16 %v5049
      %v5477 = vunpack.c.l.b16 %v5050
      %v5478 = vunpack.c.l.b16 %v5051
      %v5479 = vunpack.c.l.b16 %v5052
      %v5480 = vunpack.c.l.b16 %v5053
      %v5481 = vunpack.c.l.b16 %v5054
      %v5482 = vunpack.c.l.b16 %v5055
      %v5483 = vunpack.c.l.b16 %v5056
      %v5484 = vunpack.c.l.b16 %v5057
      %v5485 = vunpack.c.l.b16 %v5058
      %v5486 = vunpack.c.l.b16 %v5059
      %v5487 = vunpack.c.l.b16 %v5060
      %v5488 = vunpack.c.l.b16 %v5061
      %v5489 = vunpack.c.l.b16 %v5062
      %v5490 = vunpack.c.l.b16 %v5063
      %v5491 = vunpack.c.l.b16 %v5064
      %v5492 = vunpack.c.l.b16 %v5065
      %v5493 = vunpack.c.l.b16 %v5066
      %v5494 = vunpack.c.l.b16 %v5067
      %v5495 = vunpack.c.l.b16 %v5068
      %v5496 = vunpack.c.l.b16 %v5069
      %v5497 = vunpack.c.l.b16 %v5070
      %v5498 = vunpack.c.l.b16 %v5071
      %v5499 = vunpack.c.l.b16 %v5072
      %v5500 = vunpack.c.l.b16 %v5073
      %v5501 = vunpack.c.l.b16 %v5074
      %v5502 = vunpack.c.l.b16 %v5075
      %v5503 = vunpack.c.l.b16 %v5076
      %v5504 = vunpack.c.l.b16 %v5077
      %v5505 = vunpack.c.l.b16 %v5078
      %v5506 = vunpack.c.l.b16 %v5079
      %v5507 = vunpack.c.l.b16 %v5080
      %v5508 = vunpack.c.l.b16 %v5081
      %v5509 = vunpack.c.l.b16 %v5082
      %v5510 = vunpack.c.l.b16 %v5083
      %v5511 = vunpack.c.l.b16 %v5084
      %v5512 = vunpack.c.l.b16 %v5085
      %v5513 = vunpack.c.l.b16 %v5086
      %v5514 = vunpack.c.l.b16 %v5087
      %v5515 = vunpack.c.l.b16 %v5088
      %v5516 = vunpack.c.l.b16 %v5089
      %v5517 = vunpack.c.l.b16 %v5090
      %v5518 = vunpack.c.l.b16 %v5091
      %v5519 = vunpack.c.l.b16 %v5092
      %v5520 = vunpack.c.l.b16 %v5093
      %v5521 = vunpack.c.l.b16 %v5094
      %v5522 = vunpack.c.l.b16 %v5095
      %v5523 = vunpack.c.l.b16 %v5096
      %v5524 = vunpack.c.l.b16 %v5097
      %v5525 = vunpack.c.l.b16 %v5098
      %v5526 = vunpack.c.l.b16 %v5099
      %v5527 = vunpack.c.l.b16 %v5100
      %v5528 = vunpack.c.l.b16 %v5101
      %v5529 = vunpack.c.l.b16 %v5102
      %v5530 = vunpack.c.l.b16 %v5103
      %v5531 = vunpack.c.l.b16 %v5104
      %v5532 = vunpack.c.l.b16 %v5105
      %v5533 = vunpack.c.l.b16 %v5106
      %v5534 = vunpack.c.l.b16 %v5107
      %v5535 = vunpack.c.l.b16 %v5108
      %v5536 = vunpack.c.l.b16 %v5109
      %v5537 = vunpack.c.l.b16 %v5110
      %v5538 = vunpack.c.l.b16 %v5111
      %v5539 = vunpack.c.l.b16 %v5112
      %v5540 = vunpack.c.l.b16 %v5113
      %v5541 = vunpack.c.l.b16 %v5114
      %v5542 = vunpack.c.l.b16 %v5115
      %v5543 = vunpack.c.l.b16 %v5116
      %v5544 = vunpack.c.l.b16 %v5117
      %v5545 = vunpack.c.l.b16 %v5118
      %v5546 = vunpack.c.l.b16 %v5119
      %v5547 = vunpack.c.l.b16 %v5120
      %v5548 = vunpack.c.l.b16 %v5121
      %v5549 = vunpack.c.l.b16 %v5122
      %v5550 = vunpack.c.l.b16 %v5123
      %v5551 = vunpack.c.l.b16 %v5124
      %v5552 = vunpack.c.l.b16 %v5125
      %v5553 = vunpack.c.l.b16 %v5126
      %v5554 = vunpack.c.l.b16 %v5127
      %v5555 = vunpack.c.l.b16 %v5128
      %v5556 = vunpack.c.l.b16 %v5129
      %v5557 = vunpack.c.l.b16 %v5130
      %v5558 = vunpack.c.l.b16 %v5131
      %v5559 = vunpack.c.l.b16 %v5132
      %v5560 = vunpack.c.l.b16 %v5133
      %v5561 = vunpack.c.l.b16 %v5134
      %v5562 = vunpack.c.l.b16 %v5135
      %v5563 = vunpack.c.l.b16 %v5136
      %v5564 = vunpack.c.l.b16 %v5137
      %v5565 = vunpack.c.l.b16 %v5138
      %v5566 = vunpack.c.l.b16 %v5139
      %v5567 = vunpack.c.l.b16 %v5140
      %v5568 = vunpack.c.l.b16 %v5141
      %v5569 = vunpack.c.l.b16 %v5142
      %v5570 = vunpack.c.l.b16 %v5143
      %v5571 = vunpack.c.l.b16 %v5144
      %v5572 = vunpack.c.l.b16 %v5145
      %v5573 = vunpack.c.l.b16 %v5146
      %v5574 = vunpack.c.l.b16 %v5147
      %v5575 = vunpack.c.l.b16 %v5148
      %v5576 = vunpack.c.l.b16 %v5149
      %v5577 = vunpack.c.l.b16 %v5150
      %v5578 = vunpack.c.l.b16 %v5151
      %v5579 = vunpack.c.l.b16 %v5152
      %v5580 = vunpack.c.l.b16 %v5153
      %v5581 = vunpack.c.l.b16 %v5154
      %v5582 = vunpack.c.l.b16 %v5155
      %v5583 = vunpack.c.l.b16 %v5156
      %v5584 = vunpack.c.l.b16 %v5157
      %v5585 = vunpack.c.l.b16 %v5158
      %v5586 = vunpack.c.l.b16 %v5159
      %v5587 = vunpack.c.l.b16 %v5160
      %v5588 = vunpack.c.l.b16 %v5161
      %v5589 = vunpack.c.l.b16 %v5162
      %v5590 = vunpack.c.l.b16 %v5163
      %v5591 = vunpack.c.l.b16 %v5164
      %v5592 = vunpack.c.l.b16 %v5165
      %v5593 = vunpack.c.l.b16 %v5166
      %v5594 = vunpack.c.l.b16 %v5167
      %v5595 = vunpack.c.l.b16 %v5168
      %v5596 = vunpack.c.l.b16 %v5169
      %v5597 = vunpack.c.l.b16 %v5170
      %v5598 = vunpack.c.l.b16 %v5171
      %v5599 = vunpack.c.l.b16 %v5172
      %v5600 = vunpack.c.l.b16 %v5173
      %v5601 = vunpack.c.l.b16 %v5174
      %v5602 = vunpack.c.l.b16 %v5175
      %v5603 = vunpack.c.l.b16 %v5176
      %v5604 = vunpack.c.l.b16 %v5177
      %v5605 = vunpack.c.l.b16 %v5178
      %v5606 = vunpack.c.l.b16 %v5179
      %v5607 = vunpack.c.l.b16 %v5180
      %v5608 = vunpack.c.l.b16 %v5181
      %v5609 = vpack.c.b16 %v5450, %v5449
      %v5610 = vpack.c.b16 %v5452, %v5451
      %v5611 = vpack.c.b16 %v5454, %v5453
      %v5612 = vpack.c.b16 %v5456, %v5455
      %v5613 = vpack.c.b16 %v5458, %v5457
      %v5614 = vpack.c.b16 %v5460, %v5459
      %v5615 = vpack.c.b16 %v5462, %v5461
      %v5616 = vpack.c.b16 %v5464, %v5463
      %v5617 = vpack.c.b16 %v5466, %v5465
      %v5618 = vpack.c.b16 %v5468, %v5467
      %v5619 = vpack.c.b16 %v5470, %v5469
      %v5620 = vpack.c.b16 %v5472, %v5471
      %v5621 = vpack.c.b16 %v5474, %v5473
      %v5622 = vpack.c.b16 %v5476, %v5475
      %v5623 = vpack.c.b16 %v5478, %v5477
      %v5624 = vpack.c.b16 %v5480, %v5479
      %v5625 = vpack.c.b16 %v5482, %v5481
      %v5626 = vpack.c.b16 %v5484, %v5483
      %v5627 = vpack.c.b16 %v5486, %v5485
      %v5628 = vpack.c.b16 %v5488, %v5487
      %v5629 = vpack.c.b16 %v5490, %v5489
      %v5630 = vpack.c.b16 %v5492, %v5491
      %v5631 = vpack.c.b16 %v5494, %v5493
      %v5632 = vpack.c.b16 %v5496, %v5495
      %v5633 = vpack.c.b16 %v5498, %v5497
      %v5634 = vpack.c.b16 %v5500, %v5499
      %v5635 = vpack.c.b16 %v5502, %v5501
      %v5636 = vpack.c.b16 %v5504, %v5503
      %v5637 = vpack.c.b16 %v5506, %v5505
      %v5638 = vpack.c.b16 %v5508, %v5507
      %v5639 = vpack.c.b16 %v5510, %v5509
      %v5640 = vpack.c.b16 %v5512, %v5511
      %v5641 = vpack.c.b16 %v5514, %v5513
      %v5642 = vpack.c.b16 %v5516, %v5515
      %v5643 = vpack.c.b16 %v5518, %v5517
      %v5644 = vpack.c.b16 %v5520, %v5519
      %v5645 = vpack.c.b16 %v5522, %v5521
      %v5646 = vpack.c.b16 %v5524, %v5523
      %v5647 = vpack.c.b16 %v5526, %v5525
      %v5648 = vpack.c.b16 %v5528, %v5527
      %v5649 = vpack.c.b16 %v5530, %v5529
      %v5650 = vpack.c.b16 %v5532, %v5531
      %v5651 = vpack.c.b16 %v5534, %v5533
      %v5652 = vpack.c.b16 %v5536, %v5535
      %v5653 = vpack.c.b16 %v5538, %v5537
      %v5654 = vpack.c.b16 %v5540, %v5539
      %v5655 = vpack.c.b16 %v5542, %v5541
      %v5656 = vpack.c.b16 %v5544, %v5543
      %v5657 = vpack.c.b16 %v5546, %v5545
      %v5658 = vpack.c.b16 %v5548, %v5547
      %v5659 = vpack.c.b16 %v5550, %v5549
      %v5660 = vpack.c.b16 %v5552, %v5551
      %v5661 = vpack.c.b16 %v5554, %v5553
      %v5662 = vpack.c.b16 %v5556, %v5555
      %v5663 = vpack.c.b16 %v5558, %v5557
      %v5664 = vpack.c.b16 %v5560, %v5559
      %v5665 = vpack.c.b16 %v5562, %v5561
      %v5666 = vpack.c.b16 %v5564, %v5563
      %v5667 = vpack.c.b16 %v5566, %v5565
      %v5668 = vpack.c.b16 %v5568, %v5567
      %v5669 = vpack.c.b16 %v5570, %v5569
      %v5670 = vpack.c.b16 %v5572, %v5571
      %v5671 = vpack.c.b16 %v5574, %v5573
      %v5672 = vpack.c.b16 %v5576, %v5575
      %v5673 = vpack.c.b16 %v5578, %v5577
      %v5674 = vpack.c.b16 %v5580, %v5579
      %v5675 = vpack.c.b16 %v5582, %v5581
      %v5676 = vpack.c.b16 %v5584, %v5583
      %v5677 = vpack.c.b16 %v5586, %v5585
      %v5678 = vpack.c.b16 %v5588, %v5587
      %v5679 = vpack.c.b16 %v5590, %v5589
      %v5680 = vpack.c.b16 %v5592, %v5591
      %v5681 = vpack.c.b16 %v5594, %v5593
      %v5682 = vpack.c.b16 %v5596, %v5595
      %v5683 = vpack.c.b16 %v5598, %v5597
      %v5684 = vpack.c.b16 %v5600, %v5599
      %v5685 = vpack.c.b16 %v5602, %v5601
      %v5686 = vpack.c.b16 %v5604, %v5603
      %v5687 = vpack.c.b16 %v5606, %v5605
      %v5688 = vpack.c.b16 %v5608, %v5607
      %5769 = vmatprep.subr.bf16.mxu0 0
      %5770 = vmatpush1.bf16.msra.mxu0 %v5616
      %5771 = vmatprep.subr.bf16.mxu0 0
      %5772 = vmatpush1.bf16.msra.mxu0 %v5615
      %5773 = vmatprep.subr.bf16.mxu0 0
      %5774 = vmatpush1.bf16.msra.mxu0 %v5614
      %5775 = vmatprep.subr.bf16.mxu0 0
      %5776 = vmatpush1.bf16.msra.mxu0 %v5613
      %5777 = vmatprep.subr.bf16.mxu0 0
      %5778 = vmatpush1.bf16.msra.mxu0 %v5612
      %5779 = vmatprep.subr.bf16.mxu0 0
      %5780 = vmatpush1.bf16.msra.mxu0 %v5611
      %5781 = vmatprep.subr.bf16.mxu0 0
      %5782 = vmatpush1.bf16.msra.mxu0 %v5610
      %5783 = vmatprep.subr.bf16.mxu0 0
      %5784 = vmatpush1.bf16.msra.mxu0 %v5609
      %5785 = vmatprep.subr.bf16.mxu0 0
      %5786 = vmatpush2.bf16.msra.mxu0 %v5624
      %5787 = vmatprep.subr.bf16.mxu0 0
      %5788 = vmatpush2.bf16.msra.mxu0 %v5623
      %5789 = vmatprep.subr.bf16.mxu0 0
      %5790 = vmatpush2.bf16.msra.mxu0 %v5622
      %5791 = vmatprep.subr.bf16.mxu0 0
      %5792 = vmatpush2.bf16.msra.mxu0 %v5621
      %5793 = vmatprep.subr.bf16.mxu0 0
      %5794 = vmatpush2.bf16.msra.mxu0 %v5620
      %5795 = vmatprep.subr.bf16.mxu0 0
      %5796 = vmatpush2.bf16.msra.mxu0 %v5619
      %5797 = vmatprep.subr.bf16.mxu0 0
      %5798 = vmatpush2.bf16.msra.mxu0 %v5618
      %5799 = vmatprep.subr.bf16.mxu0 0
      %5800 = vmatpush2.bf16.msra.mxu0 %v5617
      %5801 = vmatprep.mubr.bf16.mxu0 %v5250
      %5802 = vmatmul.mubr.bf16.gmra.mxu0 %v5249
      %v5803 = vpop.f32.mrf.mxu0
      %v5804 = vadd.f32 %v5187, %v5803
      %v5805 = vpop.f32.mrf.mxu0
      %v5806 = vpop.f32.mrf.mxu0
      %v5807 = vadd.f32 %v5187, %v5806
      %v5808 = vpop.f32.mrf.mxu0
      %5809 = vmatprep.mubr.bf16.mxu0 %v5260
      %5810 = vmatmul.mubr.bf16.gmra.mxu0 %v5259
      %v5811 = vpop.f32.mrf.mxu0
      %v5812 = vadd.f32 %v5187, %v5811
      %v5813 = vpop.f32.mrf.mxu0
      %v5814 = vpop.f32.mrf.mxu0
      %v5815 = vadd.f32 %v5187, %v5814
      %v5816 = vpop.f32.mrf.mxu0
      %5817 = vdwg.mxu0
      %5818 = vmatprep.subr.bf16.mxu0 0
      %5819 = vmatpush1.bf16.msra.mxu0 %v5632
      %5820 = vmatprep.subr.bf16.mxu0 0
      %5821 = vmatpush1.bf16.msra.mxu0 %v5631
      %5822 = vmatprep.subr.bf16.mxu0 0
      %5823 = vmatpush1.bf16.msra.mxu0 %v5630
      %5824 = vmatprep.subr.bf16.mxu0 0
      %5825 = vmatpush1.bf16.msra.mxu0 %v5629
      %5826 = vmatprep.subr.bf16.mxu0 0
      %5827 = vmatpush1.bf16.msra.mxu0 %v5628
      %5828 = vmatprep.subr.bf16.mxu0 0
      %5829 = vmatpush1.bf16.msra.mxu0 %v5627
      %5830 = vmatprep.subr.bf16.mxu0 0
      %5831 = vmatpush1.bf16.msra.mxu0 %v5626
      %5832 = vmatprep.subr.bf16.mxu0 0
      %5833 = vmatpush1.bf16.msra.mxu0 %v5625
      %5834 = vmatprep.subr.bf16.mxu0 0
      %5835 = vmatpush2.bf16.msra.mxu0 %v5640
      %5836 = vmatprep.subr.bf16.mxu0 0
      %5837 = vmatpush2.bf16.msra.mxu0 %v5639
      %5838 = vmatprep.subr.bf16.mxu0 0
      %5839 = vmatpush2.bf16.msra.mxu0 %v5638
      %5840 = vmatprep.subr.bf16.mxu0 0
      %5841 = vmatpush2.bf16.msra.mxu0 %v5637
      %5842 = vmatprep.subr.bf16.mxu0 0
      %5843 = vmatpush2.bf16.msra.mxu0 %v5636
      %5844 = vmatprep.subr.bf16.mxu0 0
      %5845 = vmatpush2.bf16.msra.mxu0 %v5635
      %5846 = vmatprep.subr.bf16.mxu0 0
      %5847 = vmatpush2.bf16.msra.mxu0 %v5634
      %5848 = vmatprep.subr.bf16.mxu0 0
      %5849 = vmatpush2.bf16.msra.mxu0 %v5633
      %5850 = vmatprep.mubr.bf16.mxu0 %v5252
      %5851 = vmatmul.mubr.bf16.gmra.mxu0 %v5251
      %v5852 = vpop.f32.mrf.mxu0
      %v5853 = vadd.f32 %v5804, %v5852
      %v5854 = vpop.f32.mrf.mxu0
      %v5855 = vpop.f32.mrf.mxu0
      %v5856 = vadd.f32 %v5807, %v5855
      %v5857 = vpop.f32.mrf.mxu0
      %5858 = vmatprep.mubr.bf16.mxu0 %v5262
      %5859 = vmatmul.mubr.bf16.gmra.mxu0 %v5261
      %v5860 = vpop.f32.mrf.mxu0
      %v5861 = vadd.f32 %v5812, %v5860
      %v5862 = vpop.f32.mrf.mxu0
      %v5863 = vpop.f32.mrf.mxu0
      %v5864 = vadd.f32 %v5815, %v5863
      %v5865 = vpop.f32.mrf.mxu0
      %5866 = vdwg.mxu0
      %5867 = vmatprep.subr.bf16.mxu0 0
      %5868 = vmatpush1.bf16.msra.mxu0 %v5648
      %5869 = vmatprep.subr.bf16.mxu0 0
      %5870 = vmatpush1.bf16.msra.mxu0 %v5647
      %5871 = vmatprep.subr.bf16.mxu0 0
      %5872 = vmatpush1.bf16.msra.mxu0 %v5646
      %5873 = vmatprep.subr.bf16.mxu0 0
      %5874 = vmatpush1.bf16.msra.mxu0 %v5645
      %5875 = vmatprep.subr.bf16.mxu0 0
      %5876 = vmatpush1.bf16.msra.mxu0 %v5644
      %5877 = vmatprep.subr.bf16.mxu0 0
      %5878 = vmatpush1.bf16.msra.mxu0 %v5643
      %5879 = vmatprep.subr.bf16.mxu0 0
      %5880 = vmatpush1.bf16.msra.mxu0 %v5642
      %5881 = vmatprep.subr.bf16.mxu0 0
      %5882 = vmatpush1.bf16.msra.mxu0 %v5641
      %5883 = vmatprep.subr.bf16.mxu0 0
      %5884 = vmatpush2.bf16.msra.mxu0 %v5656
      %5885 = vmatprep.subr.bf16.mxu0 0
      %5886 = vmatpush2.bf16.msra.mxu0 %v5655
      %5887 = vmatprep.subr.bf16.mxu0 0
      %5888 = vmatpush2.bf16.msra.mxu0 %v5654
      %5889 = vmatprep.subr.bf16.mxu0 0
      %5890 = vmatpush2.bf16.msra.mxu0 %v5653
      %5891 = vmatprep.subr.bf16.mxu0 0
      %5892 = vmatpush2.bf16.msra.mxu0 %v5652
      %5893 = vmatprep.subr.bf16.mxu0 0
      %5894 = vmatpush2.bf16.msra.mxu0 %v5651
      %5895 = vmatprep.subr.bf16.mxu0 0
      %5896 = vmatpush2.bf16.msra.mxu0 %v5650
      %5897 = vmatprep.subr.bf16.mxu0 0
      %5898 = vmatpush2.bf16.msra.mxu0 %v5649
      %5899 = vmatprep.mubr.bf16.mxu0 %v5254
      %5900 = vmatmul.mubr.bf16.gmra.mxu0 %v5253
      %v5901 = vpop.f32.mrf.mxu0
      %v5902 = vadd.f32 %v5853, %v5901
      %v5903 = vpop.f32.mrf.mxu0
      %v5904 = vpop.f32.mrf.mxu0
      %v5905 = vadd.f32 %v5856, %v5904
      %v5906 = vpop.f32.mrf.mxu0
      %5907 = vmatprep.mubr.bf16.mxu0 %v5264
      %5908 = vmatmul.mubr.bf16.gmra.mxu0 %v5263
      %v5909 = vpop.f32.mrf.mxu0
      %v5910 = vadd.f32 %v5861, %v5909
      %v5911 = vpop.f32.mrf.mxu0
      %v5912 = vpop.f32.mrf.mxu0
      %v5913 = vadd.f32 %v5864, %v5912
      %v5914 = vpop.f32.mrf.mxu0
      %5915 = vdwg.mxu0
      %5916 = vmatprep.subr.bf16.mxu0 0
      %5917 = vmatpush1.bf16.msra.mxu0 %v5664
      %5918 = vmatprep.subr.bf16.mxu0 0
      %5919 = vmatpush1.bf16.msra.mxu0 %v5663
      %5920 = vmatprep.subr.bf16.mxu0 0
      %5921 = vmatpush1.bf16.msra.mxu0 %v5662
      %5922 = vmatprep.subr.bf16.mxu0 0
      %5923 = vmatpush1.bf16.msra.mxu0 %v5661
      %5924 = vmatprep.subr.bf16.mxu0 0
      %5925 = vmatpush1.bf16.msra.mxu0 %v5660
      %5926 = vmatprep.subr.bf16.mxu0 0
      %5927 = vmatpush1.bf16.msra.mxu0 %v5659
      %5928 = vmatprep.subr.bf16.mxu0 0
      %5929 = vmatpush1.bf16.msra.mxu0 %v5658
      %5930 = vmatprep.subr.bf16.mxu0 0
      %5931 = vmatpush1.bf16.msra.mxu0 %v5657
      %5932 = vmatprep.subr.bf16.mxu0 0
      %5933 = vmatpush2.bf16.msra.mxu0 %v5672
      %5934 = vmatprep.subr.bf16.mxu0 0
      %5935 = vmatpush2.bf16.msra.mxu0 %v5671
      %5936 = vmatprep.subr.bf16.mxu0 0
      %5937 = vmatpush2.bf16.msra.mxu0 %v5670
      %5938 = vmatprep.subr.bf16.mxu0 0
      %5939 = vmatpush2.bf16.msra.mxu0 %v5669
      %5940 = vmatprep.subr.bf16.mxu0 0
      %5941 = vmatpush2.bf16.msra.mxu0 %v5668
      %5942 = vmatprep.subr.bf16.mxu0 0
      %5943 = vmatpush2.bf16.msra.mxu0 %v5667
      %5944 = vmatprep.subr.bf16.mxu0 0
      %5945 = vmatpush2.bf16.msra.mxu0 %v5666
      %5946 = vmatprep.subr.bf16.mxu0 0
      %5947 = vmatpush2.bf16.msra.mxu0 %v5665
      %5948 = vmatprep.mubr.bf16.mxu0 %v5256
      %5949 = vmatmul.mubr.bf16.gmra.mxu0 %v5255
      %v5950 = vpop.f32.mrf.mxu0
      %v5951 = vadd.f32 %v5902, %v5950
      %v5952 = vpop.f32.mrf.mxu0
      %v5953 = vpop.f32.mrf.mxu0
      %v5954 = vadd.f32 %v5905, %v5953
      %v5955 = vpop.f32.mrf.mxu0
      %5956 = vmatprep.mubr.bf16.mxu0 %v5266
      %5957 = vmatmul.mubr.bf16.gmra.mxu0 %v5265
      %v5958 = vpop.f32.mrf.mxu0
      %v5959 = vadd.f32 %v5910, %v5958
      %v5960 = vpop.f32.mrf.mxu0
      %v5961 = vpop.f32.mrf.mxu0
      %v5962 = vadd.f32 %v5913, %v5961
      %v5963 = vpop.f32.mrf.mxu0
      %5964 = vdwg.mxu0
      %5965 = vmatprep.subr.bf16.mxu0 0
      %5966 = vmatpush1.bf16.msra.mxu0 %v5680
      %5967 = vmatprep.subr.bf16.mxu0 0
      %5968 = vmatpush1.bf16.msra.mxu0 %v5679
      %5969 = vmatprep.subr.bf16.mxu0 0
      %5970 = vmatpush1.bf16.msra.mxu0 %v5678
      %5971 = vmatprep.subr.bf16.mxu0 0
      %5972 = vmatpush1.bf16.msra.mxu0 %v5677
      %5973 = vmatprep.subr.bf16.mxu0 0
      %5974 = vmatpush1.bf16.msra.mxu0 %v5676
      %5975 = vmatprep.subr.bf16.mxu0 0
      %5976 = vmatpush1.bf16.msra.mxu0 %v5675
      %5977 = vmatprep.subr.bf16.mxu0 0
      %5978 = vmatpush1.bf16.msra.mxu0 %v5674
      %5979 = vmatprep.subr.bf16.mxu0 0
      %5980 = vmatpush1.bf16.msra.mxu0 %v5673
      %5981 = vmatprep.subr.bf16.mxu0 0
      %5982 = vmatpush2.bf16.msra.mxu0 %v5688
      %5983 = vmatprep.subr.bf16.mxu0 0
      %5984 = vmatpush2.bf16.msra.mxu0 %v5687
      %5985 = vmatprep.subr.bf16.mxu0 0
      %5986 = vmatpush2.bf16.msra.mxu0 %v5686
      %5987 = vmatprep.subr.bf16.mxu0 0
      %5988 = vmatpush2.bf16.msra.mxu0 %v5685
      %5989 = vmatprep.subr.bf16.mxu0 0
      %5990 = vmatpush2.bf16.msra.mxu0 %v5684
      %5991 = vmatprep.subr.bf16.mxu0 0
      %5992 = vmatpush2.bf16.msra.mxu0 %v5683
      %5993 = vmatprep.subr.bf16.mxu0 0
      %5994 = vmatpush2.bf16.msra.mxu0 %v5682
      %5995 = vmatprep.subr.bf16.mxu0 0
      %5996 = vmatpush2.bf16.msra.mxu0 %v5681
      %5997 = vmatprep.mubr.bf16.mxu0 %v5258
      %5998 = vmatmul.mubr.bf16.gmra.mxu0 %v5257
      %v5999 = vpop.f32.mrf.mxu0
      %v6000 = vadd.f32 %v5951, %v5999
      %v6001 = vpop.f32.mrf.mxu0
      %v6002 = vpop.f32.mrf.mxu0
      %v6003 = vadd.f32 %v5954, %v6002
      %v6004 = vpop.f32.mrf.mxu0
      %6005 = vmatprep.mubr.bf16.mxu0 %v5268
      %6006 = vmatmul.mubr.bf16.gmra.mxu0 %v5267
      %v6007 = vpop.f32.mrf.mxu0
      %v6008 = vadd.f32 %v5959, %v6007
      %v6009 = vpop.f32.mrf.mxu0
      %v6010 = vpop.f32.mrf.mxu0
      %v6011 = vadd.f32 %v5962, %v6010
      %v6012 = vpop.f32.mrf.mxu0
      %6013 = vdwg.mxu0
      %6014 = vst.msk [vmem:[%s280] sm:$0xff] %vm1282, %v6000
      %6015 = vst.msk [vmem:[%s280 + $0x8] sm:$0xff] %vm1282, %v6003
      %6016 = vst.msk [vmem:[%s280 + $0x10] sm:$0xff] %vm1282, %v6008
      %6017 = vst.msk [vmem:[%s280 + $0x18] sm:$0xff] %vm1282, %v6011
      %s6018 = smul.u32 4, %s18
      %p6019 = scmp.lt.s32.totalorder %s6018, 7
      %s6020 = scalar_select %p6019, %s6018, 7
      %s6021 = smul.addr %s6020, 8
      %s6022 = scalar_lea.vmem %s7, %s6021
      // Predicated region
      $region49: #{srcnn_forward.1} parent=47 // pred_check
        %p6023 = pneg %p188
      $region50: #{srcnn_forward.1} parent=47 // pred_check_branch
        %6025 = sbr.rel (%p6023) target = $region52
      $region51: #{srcnn_forward.1} parent=47 // pred_region
        %s6026 = smul.u32 4, %s18
      $region52: #{srcnn_forward.1} parent=47 // pred_fallthru
        _
    $region48: #{srcnn_forward.1} parent=5 // pred_fallthru
      _
    %p6027 = scmp.le.s32.totalorder 2, %s13
    // Predicated region
    $region53: #{srcnn_forward.1} parent=5 // pred_check
      %p6028 = pneg %p6027
    $region54: #{srcnn_forward.1} parent=5 // pred_check_branch
      %6030 = sbr.rel (%p6028) target = $region56
    $region55: #{srcnn_forward.1} parent=5 // pred_region
      %s6031 = ssub.s32 %s13, 2
      // Predicated region
      $region57: #{srcnn_forward.1} parent=55 // pred_check
        %p6032 = pneg %p194
      $region58: #{srcnn_forward.1} parent=55 // pred_check_branch
        %6034 = sbr.rel (%p6032) target = $region60
      $region59: #{srcnn_forward.1} parent=55 // pred_region
        %s6035 = smul.u32 4, %s19
        %p6036 = scmp.lt.s32.totalorder %s6035, 7
        %s6037 = scalar_select %p6036, %s6035, 7
        %s6038 = smul.addr %s6037, 8
        %s6039 = scalar_lea.vmem %s7, %s6038
      $region60: #{srcnn_forward.1} parent=55 // pred_fallthru
        _
    $region56: #{srcnn_forward.1} parent=5 // pred_fallthru
      _
  $region6: #{srcnn_forward.1} parent=0 // loop_footer
    %s17 = sadd.s32 1, %s13
  $region7: #{srcnn_forward.1} parent=0 // loop_footer_branch
    %12 = sbr.rel target = $region3
  $region8: #{srcnn_forward.1} parent=0 // loop_exit
    _

</llo_original>
